<compile_context>
chip_gen: v7x
topology: tpu7x:2x2x1
jax: 0.10.0
libtpu: 0.0.40
codegen_flags: <defaults>
</compile_context>

<pallas_src>
import jax
import jax.numpy as jnp
from jax import lax
from jax.experimental import pallas as pl
from jax.experimental.pallas import tpu as pltpu


# ------------------------------- Pallas kernels -------------------------------

def _conv_bn_relu_kernel(x0_ref, x1_ref, x2_ref, w_ref, shift_ref, o_ref):
    # One (n, d) output plane:  o = relu( conv3x3x3(x) * bn_scale + bn_shift )
    #   x{0,1,2}_ref : (1, 1, Hp, Wp*Cin)    padded planes d, d+1, d+2
    #   w_ref        : (3, 3, Wp*Cin, W*Cout) banded weights (kw + BN scale folded)
    #   shift_ref    : (1, W*Cout)
    #   o_ref        : (1, 1, H, W*Cout)     lane-dense store
    h = o_ref.shape[2]
    acc = jnp.zeros(o_ref.shape[2:], jnp.float32)
    for kd, xr in enumerate((x0_ref, x1_ref, x2_ref)):
        xk = xr[0, 0]                                     # (Hp, Wp*Cin)
        for kh in range(3):
            acc += jnp.dot(xk[kh:kh + h, :], w_ref[kd, kh],
                           preferred_element_type=jnp.float32)
    o_ref[0, 0] = jnp.maximum(acc + shift_ref[...], 0.0)


def _conv_bn_add_relu_kernel(x0_ref, x1_ref, x2_ref, w_ref, shift_ref, res_ref, o_ref):
    # o = relu( conv3x3x3(x) * bn_scale + bn_shift + residual )
    h = o_ref.shape[2]
    acc = jnp.zeros(o_ref.shape[2:], jnp.float32)
    for kd, xr in enumerate((x0_ref, x1_ref, x2_ref)):
        xk = xr[0, 0]
        for kh in range(3):
            acc += jnp.dot(xk[kh:kh + h, :], w_ref[kd, kh],
                           preferred_element_type=jnp.float32)
    o_ref[0, 0] = jnp.maximum(acc + shift_ref[...] + res_ref[0, 0], 0.0)


def _conv3d_bn(xp, bw, shift, residual=None):
    """Fused 3x3x3 conv + BN (+residual) + ReLU.

    xp       : (N, D+2, H+2, (W+2)*Cin)  zero-padded NDHWC with (W, C) flattened.
    bw       : (3, 3, (W+2)*Cin, W*Cout) banded weight (BN scale folded in).
    shift    : (1, W*Cout)               BN shift, tiled over w.
    residual : optional (N, D, H, W*Cout) channels-last residual.
    returns  : (N, D, H, W*Cout)
    """
    n, dp, hp, wpc = xp.shape
    d, h = dp - 2, hp - 2
    wcout = bw.shape[-1]

    # Three overlapping views of the padded array provide the D halo
    # (planes d, d+1, d+2) without materializing anything extra in HBM.
    x_specs = [
        pl.BlockSpec((1, 1, hp, wpc), lambda i, j: (i, j, 0, 0)),
        pl.BlockSpec((1, 1, hp, wpc), lambda i, j: (i, j + 1, 0, 0)),
        pl.BlockSpec((1, 1, hp, wpc), lambda i, j: (i, j + 2, 0, 0)),
    ]
    w_spec = pl.BlockSpec((3, 3, wpc, wcout), lambda i, j: (0, 0, 0, 0))  # resident
    s_spec = pl.BlockSpec((1, wcout), lambda i, j: (0, 0))
    o_spec = pl.BlockSpec((1, 1, h, wcout), lambda i, j: (i, j, 0, 0))

    if residual is None:
        kernel = _conv_bn_relu_kernel
        in_specs = x_specs + [w_spec, s_spec]
        args = (xp, xp, xp, bw, shift)
    else:
        kernel = _conv_bn_add_relu_kernel
        in_specs = x_specs + [w_spec, s_spec,
                              pl.BlockSpec((1, 1, h, wcout), lambda i, j: (i, j, 0, 0))]
        args = (xp, xp, xp, bw, shift, residual)

    return pl.pallas_call(
        kernel,
        out_shape=jax.ShapeDtypeStruct((n, d, h, wcout), jnp.float32),
        grid=(n, d),
        in_specs=in_specs,
        out_specs=o_spec,
        compiler_params=pltpu.CompilerParams(
            dimension_semantics=("parallel", "parallel")),
    )(*args)


# ------------------------------- JAX glue -------------------------------------

def _banded_weight_and_shift(wt, gamma, beta, mean, var, w_len, eps=1e-5):
    """Build the banded weight (kw tap + BN scale folded) and the tiled BN shift.

    wt: (Cout, Cin, 3, 3, 3) PyTorch conv3d weight.
    Returns bw (3, 3, (w_len+2)*Cin, w_len*Cout), shift (1, w_len*Cout):
        bw[kd, kh, ww*Cin + ci, w*Cout + co] = wt[co, ci, kd, kh, ww - w] * scale[co]
        for 0 <= ww - w <= 2, else 0.
    """
    cout, cin = wt.shape[0], wt.shape[1]
    scale = gamma / jnp.sqrt(var + eps)
    shift = beta - mean * scale

    wt_p = jnp.transpose(wt, (2, 3, 4, 1, 0)) * scale       # (3,3,3,Cin,Cout), scale folded
    wp = w_len + 2
    ww = jnp.arange(wp)[:, None]                            # padded w index
    w_ = jnp.arange(w_len)[None, :]                         # output w index
    kw = ww - w_
    valid = (kw >= 0) & (kw < 3)
    g = wt_p[:, :, jnp.clip(kw, 0, 2)]                      # (3,3,Wp,W,Cin,Cout)
    g = g * valid[None, None, :, :, None, None]
    bw = jnp.transpose(g, (0, 1, 2, 4, 3, 5)).reshape(3, 3, wp * cin, w_len * cout)
    shift_row = jnp.tile(shift, w_len).reshape(1, w_len * cout)
    return bw.astype(jnp.float32), shift_row.astype(jnp.float32)


def residual_block3d_forward(x, params):
    """residualBlock3D forward (stride=1, downsample=None).  x: (N, C, D, H, W)."""
    n, c, d, h, w = x.shape
    cout, cin = params["w1"].shape[0], params["w1"].shape[1]
    if cin != c or cout != c:
        raise ValueError("identity residual requires in_channels == n_filters")

    # Single layout change NCDHW -> NDHWC with (W, C) flattened into the lane dim.
    x_f = jnp.transpose(x, (0, 2, 3, 4, 1)).reshape(n, d, h, w * c)

    # convbnrelu1: conv3x3x3 (no bias) + BN + ReLU
    xp1 = jnp.pad(x_f, ((0, 0), (1, 1), (1, 1), (c, c)))    # pad d, h, w by 1
    bw1, sh1 = _banded_weight_and_shift(params["w1"], params["g1"], params["b1"],
                                        params["m1"], params["v1"], w)
    out1 = _conv3d_bn(xp1, bw1, sh1)                         # (N, D, H, W*Cout)

    # convbn2: conv3x3x3 (no bias) + BN, fused with += residual and ReLU
    xp2 = jnp.pad(out1, ((0, 0), (1, 1), (1, 1), (cout, cout)))
    bw2, sh2 = _banded_weight_and_shift(params["w2"], params["g2"], params["b2"],
                                        params["m2"], params["v2"], w)
    out2 = _conv3d_bn(xp2, bw2, sh2, residual=x_f)           # (N, D, H, W*Cout)

    return jnp.transpose(out2.reshape(n, d, h, w, cout), (0, 4, 1, 2, 3))


# ------------------------------- Reference ------------------------------------

def _reference_forward(x, params, eps=1e-5):
    dn = ("NCDHW", "OIDHW", "NCDHW")

    def conv(inp, wgt):
        return lax.conv_general_dilated(inp, wgt, window_strides=(1, 1, 1),
                                        padding=[(1, 1)] * 3, dimension_numbers=dn)

    def bn(inp, g, b, m, v):
        shp = (1, -1, 1, 1, 1)
        return (inp - m.reshape(shp)) / jnp.sqrt(v.reshape(shp) + eps) * g.reshape(shp) + b.reshape(shp)

    out = jax.nn.relu(bn(conv(x, params["w1"]), params["g1"], params["b1"], params["m1"], params["v1"]))
    out = bn(conv(out, params["w2"]), params["g2"], params["b2"], params["m2"], params["v2"])
    return jax.nn.relu(out + x)


# ------------------------------- Main ------------------------------------------

if __name__ == "__main__":
    # W*C = 128 -> lane-dense accumulator / residual add / output stores.
    N, C, D, H, W = 2, 8, 8, 8, 16
    COUT = C

    key = jax.random.PRNGKey(0)
    keys = jax.random.split(key, 12)

    x = jax.random.normal(keys[0], (N, C, D, H, W), dtype=jnp.float32)

    params = {
        "w1": jax.random.normal(keys[1], (COUT, C, 3, 3, 3), dtype=jnp.float32) * 0.1,
        "g1": jax.random.uniform(keys[2], (COUT,), jnp.float32, 0.5, 1.5),
        "b1": jax.random.normal(keys[3], (COUT,), dtype=jnp.float32) * 0.1,
        "m1": jax.random.normal(keys[4], (COUT,), dtype=jnp.float32) * 0.1,
        "v1": jax.random.uniform(keys[5], (COUT,), jnp.float32, 0.5, 1.5),
        "w2": jax.random.normal(keys[6], (COUT, COUT, 3, 3, 3), dtype=jnp.float32) * 0.1,
        "g2": jax.random.uniform(keys[7], (COUT,), jnp.float32, 0.5, 1.5),
        "b2": jax.random.normal(keys[8], (COUT,), dtype=jnp.float32) * 0.1,
        "m2": jax.random.normal(keys[9], (COUT,), dtype=jnp.float32) * 0.1,
        "v2": jax.random.uniform(keys[10], (COUT,), jnp.float32, 0.5, 1.5),
    }

    out = jax.jit(residual_block3d_forward)(x, params)
    out = jax.block_until_ready(out)

    ref = jax.block_until_ready(_reference_forward(x, params))
    assert out.shape == (N, COUT, D, H, W)
    assert jnp.allclose(out, ref, atol=5e-4, rtol=5e-4), \
        f"max abs err = {jnp.max(jnp.abs(out - ref))}"

    print("KERNEL_OK")
</pallas_src>

<mosaic_0001>
module attributes {stable_mosaic.version = 11 : i64} {
  func.func @_conv_bn_relu_kernel(%arg0: i32, %arg1: i32, %arg2: memref<1x1x10x144xf32, #tpu.memory_space<vmem>>, %arg3: memref<1x1x10x144xf32, #tpu.memory_space<vmem>>, %arg4: memref<1x1x10x144xf32, #tpu.memory_space<vmem>>, %arg5: memref<3x3x144x128xf32, #tpu.memory_space<vmem>>, %arg6: memref<1x128xf32, #tpu.memory_space<vmem>>, %arg7: memref<1x1x8x128xf32, #tpu.memory_space<vmem>>) attributes {dimension_semantics = [#tpu.dimension_semantics<parallel>, #tpu.dimension_semantics<parallel>], iteration_bounds = array<i64: 2, 8>, scalar_prefetch = 0 : i64, scratch_operands = 0 : i64, tpu.core_type = #tpu.core_type<tc>, window_params = [{transform_indices = @transform_0, window_bounds = array<i64: 1, 1, 10, 144>}, {transform_indices = @transform_1, window_bounds = array<i64: 1, 1, 10, 144>}, {transform_indices = @transform_2, window_bounds = array<i64: 1, 1, 10, 144>}, {pipeline_mode = #tpu.pipeline_mode<synchronous>, transform_indices = @transform_3, window_bounds = array<i64: 3, 3, 144, 128>}, {pipeline_mode = #tpu.pipeline_mode<synchronous>, transform_indices = @transform_4, window_bounds = array<i64: 1, 128>}, {transform_indices = @transform_5, window_bounds = array<i64: 1, 1, 8, 128>}]} {
    %cst = arith.constant 0.000000e+00 : f32
    %0 = vector.broadcast %cst : f32 to vector<8x128xf32>
    %c0 = arith.constant 0 : index
    %c0_0 = arith.constant 0 : index
    %c0_1 = arith.constant 0 : index
    %c0_2 = arith.constant 0 : index
    %1 = vector.load %arg2[%c0, %c0_0, %c0_1, %c0_2] : memref<1x1x10x144xf32, #tpu.memory_space<vmem>>, vector<1x1x10x144xf32>
    %2 = vector.shape_cast %1 : vector<1x1x10x144xf32> to vector<10x144xf32>
    %3 = vector.extract_strided_slice %2 {offsets = [0, 0], sizes = [8, 144], strides = [1, 1]} : vector<10x144xf32> to vector<8x144xf32>
    %c0_3 = arith.constant 0 : index
    %c0_4 = arith.constant 0 : index
    %c0_5 = arith.constant 0 : index
    %c0_6 = arith.constant 0 : index
    %4 = vector.load %arg5[%c0_3, %c0_4, %c0_5, %c0_6] : memref<3x3x144x128xf32, #tpu.memory_space<vmem>>, vector<1x1x144x128xf32>
    %5 = vector.shape_cast %4 : vector<1x1x144x128xf32> to vector<144x128xf32>
    %cst_7 = arith.constant dense<0.000000e+00> : vector<8x128xf32>
    %6 = tpu.matmul %3, %5, %cst_7 {dimension_numbers = #tpu.dot_dimension_numbers<[1], [0], [0], [1], [0, 0, 1, 1], [], []>} : vector<8x144xf32>, vector<144x128xf32>, vector<8x128xf32> -> vector<8x128xf32>
    %7 = arith.addf %0, %6 : vector<8x128xf32>
    %8 = vector.extract_strided_slice %2 {offsets = [1, 0], sizes = [8, 144], strides = [1, 1]} : vector<10x144xf32> to vector<8x144xf32>
    %c0_8 = arith.constant 0 : index
    %c1 = arith.constant 1 : index
    %c0_9 = arith.constant 0 : index
    %c0_10 = arith.constant 0 : index
    %9 = vector.load %arg5[%c0_8, %c1, %c0_9, %c0_10] : memref<3x3x144x128xf32, #tpu.memory_space<vmem>>, vector<1x1x144x128xf32>
    %10 = vector.shape_cast %9 : vector<1x1x144x128xf32> to vector<144x128xf32>
    %cst_11 = arith.constant dense<0.000000e+00> : vector<8x128xf32>
    %11 = tpu.matmul %8, %10, %cst_11 {dimension_numbers = #tpu.dot_dimension_numbers<[1], [0], [0], [1], [0, 0, 1, 1], [], []>} : vector<8x144xf32>, vector<144x128xf32>, vector<8x128xf32> -> vector<8x128xf32>
    %12 = arith.addf %7, %11 : vector<8x128xf32>
    %13 = vector.extract_strided_slice %2 {offsets = [2, 0], sizes = [8, 144], strides = [1, 1]} : vector<10x144xf32> to vector<8x144xf32>
    %c0_12 = arith.constant 0 : index
    %c2 = arith.constant 2 : index
    %c0_13 = arith.constant 0 : index
    %c0_14 = arith.constant 0 : index
    %14 = vector.load %arg5[%c0_12, %c2, %c0_13, %c0_14] : memref<3x3x144x128xf32, #tpu.memory_space<vmem>>, vector<1x1x144x128xf32>
    %15 = vector.shape_cast %14 : vector<1x1x144x128xf32> to vector<144x128xf32>
    %cst_15 = arith.constant dense<0.000000e+00> : vector<8x128xf32>
    %16 = tpu.matmul %13, %15, %cst_15 {dimension_numbers = #tpu.dot_dimension_numbers<[1], [0], [0], [1], [0, 0, 1, 1], [], []>} : vector<8x144xf32>, vector<144x128xf32>, vector<8x128xf32> -> vector<8x128xf32>
    %17 = arith.addf %12, %16 : vector<8x128xf32>
    %c0_16 = arith.constant 0 : index
    %c0_17 = arith.constant 0 : index
    %c0_18 = arith.constant 0 : index
    %c0_19 = arith.constant 0 : index
    %18 = vector.load %arg3[%c0_16, %c0_17, %c0_18, %c0_19] : memref<1x1x10x144xf32, #tpu.memory_space<vmem>>, vector<1x1x10x144xf32>
    %19 = vector.shape_cast %18 : vector<1x1x10x144xf32> to vector<10x144xf32>
    %20 = vector.extract_strided_slice %19 {offsets = [0, 0], sizes = [8, 144], strides = [1, 1]} : vector<10x144xf32> to vector<8x144xf32>
    %c1_20 = arith.constant 1 : index
    %c0_21 = arith.constant 0 : index
    %c0_22 = arith.constant 0 : index
    %c0_23 = arith.constant 0 : index
    %21 = vector.load %arg5[%c1_20, %c0_21, %c0_22, %c0_23] : memref<3x3x144x128xf32, #tpu.memory_space<vmem>>, vector<1x1x144x128xf32>
    %22 = vector.shape_cast %21 : vector<1x1x144x128xf32> to vector<144x128xf32>
    %cst_24 = arith.constant dense<0.000000e+00> : vector<8x128xf32>
    %23 = tpu.matmul %20, %22, %cst_24 {dimension_numbers = #tpu.dot_dimension_numbers<[1], [0], [0], [1], [0, 0, 1, 1], [], []>} : vector<8x144xf32>, vector<144x128xf32>, vector<8x128xf32> -> vector<8x128xf32>
    %24 = arith.addf %17, %23 : vector<8x128xf32>
    %25 = vector.extract_strided_slice %19 {offsets = [1, 0], sizes = [8, 144], strides = [1, 1]} : vector<10x144xf32> to vector<8x144xf32>
    %c1_25 = arith.constant 1 : index
    %c1_26 = arith.constant 1 : index
    %c0_27 = arith.constant 0 : index
    %c0_28 = arith.constant 0 : index
    %26 = vector.load %arg5[%c1_25, %c1_26, %c0_27, %c0_28] : memref<3x3x144x128xf32, #tpu.memory_space<vmem>>, vector<1x1x144x128xf32>
    %27 = vector.shape_cast %26 : vector<1x1x144x128xf32> to vector<144x128xf32>
    %cst_29 = arith.constant dense<0.000000e+00> : vector<8x128xf32>
    %28 = tpu.matmul %25, %27, %cst_29 {dimension_numbers = #tpu.dot_dimension_numbers<[1], [0], [0], [1], [0, 0, 1, 1], [], []>} : vector<8x144xf32>, vector<144x128xf32>, vector<8x128xf32> -> vector<8x128xf32>
    %29 = arith.addf %24, %28 : vector<8x128xf32>
    %30 = vector.extract_strided_slice %19 {offsets = [2, 0], sizes = [8, 144], strides = [1, 1]} : vector<10x144xf32> to vector<8x144xf32>
    %c1_30 = arith.constant 1 : index
    %c2_31 = arith.constant 2 : index
    %c0_32 = arith.constant 0 : index
    %c0_33 = arith.constant 0 : index
    %31 = vector.load %arg5[%c1_30, %c2_31, %c0_32, %c0_33] : memref<3x3x144x128xf32, #tpu.memory_space<vmem>>, vector<1x1x144x128xf32>
    %32 = vector.shape_cast %31 : vector<1x1x144x128xf32> to vector<144x128xf32>
    %cst_34 = arith.constant dense<0.000000e+00> : vector<8x128xf32>
    %33 = tpu.matmul %30, %32, %cst_34 {dimension_numbers = #tpu.dot_dimension_numbers<[1], [0], [0], [1], [0, 0, 1, 1], [], []>} : vector<8x144xf32>, vector<144x128xf32>, vector<8x128xf32> -> vector<8x128xf32>
    %34 = arith.addf %29, %33 : vector<8x128xf32>
    %c0_35 = arith.constant 0 : index
    %c0_36 = arith.constant 0 : index
    %c0_37 = arith.constant 0 : index
    %c0_38 = arith.constant 0 : index
    %35 = vector.load %arg4[%c0_35, %c0_36, %c0_37, %c0_38] : memref<1x1x10x144xf32, #tpu.memory_space<vmem>>, vector<1x1x10x144xf32>
    %36 = vector.shape_cast %35 : vector<1x1x10x144xf32> to vector<10x144xf32>
    %37 = vector.extract_strided_slice %36 {offsets = [0, 0], sizes = [8, 144], strides = [1, 1]} : vector<10x144xf32> to vector<8x144xf32>
    %c2_39 = arith.constant 2 : index
    %c0_40 = arith.constant 0 : index
    %c0_41 = arith.constant 0 : index
    %c0_42 = arith.constant 0 : index
    %38 = vector.load %arg5[%c2_39, %c0_40, %c0_41, %c0_42] : memref<3x3x144x128xf32, #tpu.memory_space<vmem>>, vector<1x1x144x128xf32>
    %39 = vector.shape_cast %38 : vector<1x1x144x128xf32> to vector<144x128xf32>
    %cst_43 = arith.constant dense<0.000000e+00> : vector<8x128xf32>
    %40 = tpu.matmul %37, %39, %cst_43 {dimension_numbers = #tpu.dot_dimension_numbers<[1], [0], [0], [1], [0, 0, 1, 1], [], []>} : vector<8x144xf32>, vector<144x128xf32>, vector<8x128xf32> -> vector<8x128xf32>
    %41 = arith.addf %34, %40 : vector<8x128xf32>
    %42 = vector.extract_strided_slice %36 {offsets = [1, 0], sizes = [8, 144], strides = [1, 1]} : vector<10x144xf32> to vector<8x144xf32>
    %c2_44 = arith.constant 2 : index
    %c1_45 = arith.constant 1 : index
    %c0_46 = arith.constant 0 : index
    %c0_47 = arith.constant 0 : index
    %43 = vector.load %arg5[%c2_44, %c1_45, %c0_46, %c0_47] : memref<3x3x144x128xf32, #tpu.memory_space<vmem>>, vector<1x1x144x128xf32>
    %44 = vector.shape_cast %43 : vector<1x1x144x128xf32> to vector<144x128xf32>
    %cst_48 = arith.constant dense<0.000000e+00> : vector<8x128xf32>
    %45 = tpu.matmul %42, %44, %cst_48 {dimension_numbers = #tpu.dot_dimension_numbers<[1], [0], [0], [1], [0, 0, 1, 1], [], []>} : vector<8x144xf32>, vector<144x128xf32>, vector<8x128xf32> -> vector<8x128xf32>
    %46 = arith.addf %41, %45 : vector<8x128xf32>
    %47 = vector.extract_strided_slice %36 {offsets = [2, 0], sizes = [8, 144], strides = [1, 1]} : vector<10x144xf32> to vector<8x144xf32>
    %c2_49 = arith.constant 2 : index
    %c2_50 = arith.constant 2 : index
    %c0_51 = arith.constant 0 : index
    %c0_52 = arith.constant 0 : index
    %48 = vector.load %arg5[%c2_49, %c2_50, %c0_51, %c0_52] : memref<3x3x144x128xf32, #tpu.memory_space<vmem>>, vector<1x1x144x128xf32>
    %49 = vector.shape_cast %48 : vector<1x1x144x128xf32> to vector<144x128xf32>
    %cst_53 = arith.constant dense<0.000000e+00> : vector<8x128xf32>
    %50 = tpu.matmul %47, %49, %cst_53 {dimension_numbers = #tpu.dot_dimension_numbers<[1], [0], [0], [1], [0, 0, 1, 1], [], []>} : vector<8x144xf32>, vector<144x128xf32>, vector<8x128xf32> -> vector<8x128xf32>
    %51 = arith.addf %46, %50 : vector<8x128xf32>
    %c0_54 = arith.constant 0 : index
    %c0_55 = arith.constant 0 : index
    %52 = vector.load %arg6[%c0_54, %c0_55] : memref<1x128xf32, #tpu.memory_space<vmem>>, vector<1x128xf32>
    %53 = vector.broadcast %52 : vector<1x128xf32> to vector<8x128xf32>
    %54 = arith.addf %51, %53 : vector<8x128xf32>
    %cst_56 = arith.constant 0.000000e+00 : f32
    %55 = vector.broadcast %cst_56 : f32 to vector<8x128xf32>
    %56 = arith.maximumf %54, %55 : vector<8x128xf32>
    %c0_57 = arith.constant 0 : index
    %c0_58 = arith.constant 0 : index
    %c0_59 = arith.constant 0 : index
    %c0_60 = arith.constant 0 : index
    %57 = vector.load %arg7[%c0_57, %c0_58, %c0_59, %c0_60] : memref<1x1x8x128xf32, #tpu.memory_space<vmem>>, vector<1x1x8x128xf32>
    %58 = vector.shape_cast %57 : vector<1x1x8x128xf32> to vector<8x128xf32>
    %59 = vector.shape_cast %56 : vector<8x128xf32> to vector<1x1x8x128xf32>
    tpu.vector_store %arg7[%c0_57, %c0_58, %c0_59, %c0_60], %59 {strides = array<i32>} : memref<1x1x8x128xf32, #tpu.memory_space<vmem>>, vector<1x1x8x128xf32>,
    return
  }
  func.func @transform_0(%arg0: i32, %arg1: i32) -> (i32, i32, i32, i32) {
    %c0_i32 = arith.constant 0 : i32
    %c0_i32_0 = arith.constant 0 : i32
    %c0_i32_1 = arith.constant 0 : i32
    return %arg0, %arg1, %c0_i32, %c0_i32_0 : i32, i32, i32, i32
  }
  func.func @transform_1(%arg0: i32, %arg1: i32) -> (i32, i32, i32, i32) {
    %c1_i32 = arith.constant 1 : i32
    %0 = arith.addi %arg1, %c1_i32 : i32
    %c0_i32 = arith.constant 0 : i32
    %c0_i32_0 = arith.constant 0 : i32
    %c0_i32_1 = arith.constant 0 : i32
    return %arg0, %0, %c0_i32, %c0_i32_0 : i32, i32, i32, i32
  }
  func.func @transform_2(%arg0: i32, %arg1: i32) -> (i32, i32, i32, i32) {
    %c2_i32 = arith.constant 2 : i32
    %0 = arith.addi %arg1, %c2_i32 : i32
    %c0_i32 = arith.constant 0 : i32
    %c0_i32_0 = arith.constant 0 : i32
    %c0_i32_1 = arith.constant 0 : i32
    return %arg0, %0, %c0_i32, %c0_i32_0 : i32, i32, i32, i32
  }
  func.func @transform_3(%arg0: i32, %arg1: i32) -> (i32, i32, i32, i32) {
    %c0_i32 = arith.constant 0 : i32
    %c0_i32_0 = arith.constant 0 : i32
    %c0_i32_1 = arith.constant 0 : i32
    %c0_i32_2 = arith.constant 0 : i32
    %c0_i32_3 = arith.constant 0 : i32
    return %c0_i32, %c0_i32_0, %c0_i32_1, %c0_i32_2 : i32, i32, i32, i32
  }
  func.func @transform_4(%arg0: i32, %arg1: i32) -> (i32, i32) {
    %c0_i32 = arith.constant 0 : i32
    %c0_i32_0 = arith.constant 0 : i32
    %c0_i32_1 = arith.constant 0 : i32
    return %c0_i32, %c0_i32_0 : i32, i32
  }
  func.func @transform_5(%arg0: i32, %arg1: i32) -> (i32, i32, i32, i32) {
    %c0_i32 = arith.constant 0 : i32
    %c0_i32_0 = arith.constant 0 : i32
    %c0_i32_1 = arith.constant 0 : i32
    return %arg0, %arg1, %c0_i32, %c0_i32_0 : i32, i32, i32, i32
  }
}

module attributes {stable_mosaic.version = 11 : i64} {
  func.func @_conv_bn_add_relu_kernel(%arg0: i32, %arg1: i32, %arg2: memref<1x1x10x144xf32, #tpu.memory_space<vmem>>, %arg3: memref<1x1x10x144xf32, #tpu.memory_space<vmem>>, %arg4: memref<1x1x10x144xf32, #tpu.memory_space<vmem>>, %arg5: memref<3x3x144x128xf32, #tpu.memory_space<vmem>>, %arg6: memref<1x128xf32, #tpu.memory_space<vmem>>, %arg7: memref<1x1x8x128xf32, #tpu.memory_space<vmem>>, %arg8: memref<1x1x8x128xf32, #tpu.memory_space<vmem>>) attributes {dimension_semantics = [#tpu.dimension_semantics<parallel>, #tpu.dimension_semantics<parallel>], iteration_bounds = array<i64: 2, 8>, scalar_prefetch = 0 : i64, scratch_operands = 0 : i64, tpu.core_type = #tpu.core_type<tc>, window_params = [{transform_indices = @transform_0, window_bounds = array<i64: 1, 1, 10, 144>}, {transform_indices = @transform_1, window_bounds = array<i64: 1, 1, 10, 144>}, {transform_indices = @transform_2, window_bounds = array<i64: 1, 1, 10, 144>}, {pipeline_mode = #tpu.pipeline_mode<synchronous>, transform_indices = @transform_3, window_bounds = array<i64: 3, 3, 144, 128>}, {pipeline_mode = #tpu.pipeline_mode<synchronous>, transform_indices = @transform_4, window_bounds = array<i64: 1, 128>}, {transform_indices = @transform_5, window_bounds = array<i64: 1, 1, 8, 128>}, {transform_indices = @transform_6, window_bounds = array<i64: 1, 1, 8, 128>}]} {
    %cst = arith.constant 0.000000e+00 : f32
    %0 = vector.broadcast %cst : f32 to vector<8x128xf32>
    %c0 = arith.constant 0 : index
    %c0_0 = arith.constant 0 : index
    %c0_1 = arith.constant 0 : index
    %c0_2 = arith.constant 0 : index
    %1 = vector.load %arg2[%c0, %c0_0, %c0_1, %c0_2] : memref<1x1x10x144xf32, #tpu.memory_space<vmem>>, vector<1x1x10x144xf32>
    %2 = vector.shape_cast %1 : vector<1x1x10x144xf32> to vector<10x144xf32>
    %3 = vector.extract_strided_slice %2 {offsets = [0, 0], sizes = [8, 144], strides = [1, 1]} : vector<10x144xf32> to vector<8x144xf32>
    %c0_3 = arith.constant 0 : index
    %c0_4 = arith.constant 0 : index
    %c0_5 = arith.constant 0 : index
    %c0_6 = arith.constant 0 : index
    %4 = vector.load %arg5[%c0_3, %c0_4, %c0_5, %c0_6] : memref<3x3x144x128xf32, #tpu.memory_space<vmem>>, vector<1x1x144x128xf32>
    %5 = vector.shape_cast %4 : vector<1x1x144x128xf32> to vector<144x128xf32>
    %cst_7 = arith.constant dense<0.000000e+00> : vector<8x128xf32>
    %6 = tpu.matmul %3, %5, %cst_7 {dimension_numbers = #tpu.dot_dimension_numbers<[1], [0], [0], [1], [0, 0, 1, 1], [], []>} : vector<8x144xf32>, vector<144x128xf32>, vector<8x128xf32> -> vector<8x128xf32>
    %7 = arith.addf %0, %6 : vector<8x128xf32>
    %8 = vector.extract_strided_slice %2 {offsets = [1, 0], sizes = [8, 144], strides = [1, 1]} : vector<10x144xf32> to vector<8x144xf32>
    %c0_8 = arith.constant 0 : index
    %c1 = arith.constant 1 : index
    %c0_9 = arith.constant 0 : index
    %c0_10 = arith.constant 0 : index
    %9 = vector.load %arg5[%c0_8, %c1, %c0_9, %c0_10] : memref<3x3x144x128xf32, #tpu.memory_space<vmem>>, vector<1x1x144x128xf32>
    %10 = vector.shape_cast %9 : vector<1x1x144x128xf32> to vector<144x128xf32>
    %cst_11 = arith.constant dense<0.000000e+00> : vector<8x128xf32>
    %11 = tpu.matmul %8, %10, %cst_11 {dimension_numbers = #tpu.dot_dimension_numbers<[1], [0], [0], [1], [0, 0, 1, 1], [], []>} : vector<8x144xf32>, vector<144x128xf32>, vector<8x128xf32> -> vector<8x128xf32>
    %12 = arith.addf %7, %11 : vector<8x128xf32>
    %13 = vector.extract_strided_slice %2 {offsets = [2, 0], sizes = [8, 144], strides = [1, 1]} : vector<10x144xf32> to vector<8x144xf32>
    %c0_12 = arith.constant 0 : index
    %c2 = arith.constant 2 : index
    %c0_13 = arith.constant 0 : index
    %c0_14 = arith.constant 0 : index
    %14 = vector.load %arg5[%c0_12, %c2, %c0_13, %c0_14] : memref<3x3x144x128xf32, #tpu.memory_space<vmem>>, vector<1x1x144x128xf32>
    %15 = vector.shape_cast %14 : vector<1x1x144x128xf32> to vector<144x128xf32>
    %cst_15 = arith.constant dense<0.000000e+00> : vector<8x128xf32>
    %16 = tpu.matmul %13, %15, %cst_15 {dimension_numbers = #tpu.dot_dimension_numbers<[1], [0], [0], [1], [0, 0, 1, 1], [], []>} : vector<8x144xf32>, vector<144x128xf32>, vector<8x128xf32> -> vector<8x128xf32>
    %17 = arith.addf %12, %16 : vector<8x128xf32>
    %c0_16 = arith.constant 0 : index
    %c0_17 = arith.constant 0 : index
    %c0_18 = arith.constant 0 : index
    %c0_19 = arith.constant 0 : index
    %18 = vector.load %arg3[%c0_16, %c0_17, %c0_18, %c0_19] : memref<1x1x10x144xf32, #tpu.memory_space<vmem>>, vector<1x1x10x144xf32>
    %19 = vector.shape_cast %18 : vector<1x1x10x144xf32> to vector<10x144xf32>
    %20 = vector.extract_strided_slice %19 {offsets = [0, 0], sizes = [8, 144], strides = [1, 1]} : vector<10x144xf32> to vector<8x144xf32>
    %c1_20 = arith.constant 1 : index
    %c0_21 = arith.constant 0 : index
    %c0_22 = arith.constant 0 : index
    %c0_23 = arith.constant 0 : index
    %21 = vector.load %arg5[%c1_20, %c0_21, %c0_22, %c0_23] : memref<3x3x144x128xf32, #tpu.memory_space<vmem>>, vector<1x1x144x128xf32>
    %22 = vector.shape_cast %21 : vector<1x1x144x128xf32> to vector<144x128xf32>
    %cst_24 = arith.constant dense<0.000000e+00> : vector<8x128xf32>
    %23 = tpu.matmul %20, %22, %cst_24 {dimension_numbers = #tpu.dot_dimension_numbers<[1], [0], [0], [1], [0, 0, 1, 1], [], []>} : vector<8x144xf32>, vector<144x128xf32>, vector<8x128xf32> -> vector<8x128xf32>
    %24 = arith.addf %17, %23 : vector<8x128xf32>
    %25 = vector.extract_strided_slice %19 {offsets = [1, 0], sizes = [8, 144], strides = [1, 1]} : vector<10x144xf32> to vector<8x144xf32>
    %c1_25 = arith.constant 1 : index
    %c1_26 = arith.constant 1 : index
    %c0_27 = arith.constant 0 : index
    %c0_28 = arith.constant 0 : index
    %26 = vector.load %arg5[%c1_25, %c1_26, %c0_27, %c0_28] : memref<3x3x144x128xf32, #tpu.memory_space<vmem>>, vector<1x1x144x128xf32>
    %27 = vector.shape_cast %26 : vector<1x1x144x128xf32> to vector<144x128xf32>
    %cst_29 = arith.constant dense<0.000000e+00> : vector<8x128xf32>
    %28 = tpu.matmul %25, %27, %cst_29 {dimension_numbers = #tpu.dot_dimension_numbers<[1], [0], [0], [1], [0, 0, 1, 1], [], []>} : vector<8x144xf32>, vector<144x128xf32>, vector<8x128xf32> -> vector<8x128xf32>
    %29 = arith.addf %24, %28 : vector<8x128xf32>
    %30 = vector.extract_strided_slice %19 {offsets = [2, 0], sizes = [8, 144], strides = [1, 1]} : vector<10x144xf32> to vector<8x144xf32>
    %c1_30 = arith.constant 1 : index
    %c2_31 = arith.constant 2 : index
    %c0_32 = arith.constant 0 : index
    %c0_33 = arith.constant 0 : index
    %31 = vector.load %arg5[%c1_30, %c2_31, %c0_32, %c0_33] : memref<3x3x144x128xf32, #tpu.memory_space<vmem>>, vector<1x1x144x128xf32>
    %32 = vector.shape_cast %31 : vector<1x1x144x128xf32> to vector<144x128xf32>
    %cst_34 = arith.constant dense<0.000000e+00> : vector<8x128xf32>
    %33 = tpu.matmul %30, %32, %cst_34 {dimension_numbers = #tpu.dot_dimension_numbers<[1], [0], [0], [1], [0, 0, 1, 1], [], []>} : vector<8x144xf32>, vector<144x128xf32>, vector<8x128xf32> -> vector<8x128xf32>
    %34 = arith.addf %29, %33 : vector<8x128xf32>
    %c0_35 = arith.constant 0 : index
    %c0_36 = arith.constant 0 : index
    %c0_37 = arith.constant 0 : index
    %c0_38 = arith.constant 0 : index
    %35 = vector.load %arg4[%c0_35, %c0_36, %c0_37, %c0_38] : memref<1x1x10x144xf32, #tpu.memory_space<vmem>>, vector<1x1x10x144xf32>
    %36 = vector.shape_cast %35 : vector<1x1x10x144xf32> to vector<10x144xf32>
    %37 = vector.extract_strided_slice %36 {offsets = [0, 0], sizes = [8, 144], strides = [1, 1]} : vector<10x144xf32> to vector<8x144xf32>
    %c2_39 = arith.constant 2 : index
    %c0_40 = arith.constant 0 : index
    %c0_41 = arith.constant 0 : index
    %c0_42 = arith.constant 0 : index
    %38 = vector.load %arg5[%c2_39, %c0_40, %c0_41, %c0_42] : memref<3x3x144x128xf32, #tpu.memory_space<vmem>>, vector<1x1x144x128xf32>
    %39 = vector.shape_cast %38 : vector<1x1x144x128xf32> to vector<144x128xf32>
    %cst_43 = arith.constant dense<0.000000e+00> : vector<8x128xf32>
    %40 = tpu.matmul %37, %39, %cst_43 {dimension_numbers = #tpu.dot_dimension_numbers<[1], [0], [0], [1], [0, 0, 1, 1], [], []>} : vector<8x144xf32>, vector<144x128xf32>, vector<8x128xf32> -> vector<8x128xf32>
    %41 = arith.addf %34, %40 : vector<8x128xf32>
    %42 = vector.extract_strided_slice %36 {offsets = [1, 0], sizes = [8, 144], strides = [1, 1]} : vector<10x144xf32> to vector<8x144xf32>
    %c2_44 = arith.constant 2 : index
    %c1_45 = arith.constant 1 : index
    %c0_46 = arith.constant 0 : index
    %c0_47 = arith.constant 0 : index
    %43 = vector.load %arg5[%c2_44, %c1_45, %c0_46, %c0_47] : memref<3x3x144x128xf32, #tpu.memory_space<vmem>>, vector<1x1x144x128xf32>
    %44 = vector.shape_cast %43 : vector<1x1x144x128xf32> to vector<144x128xf32>
    %cst_48 = arith.constant dense<0.000000e+00> : vector<8x128xf32>
    %45 = tpu.matmul %42, %44, %cst_48 {dimension_numbers = #tpu.dot_dimension_numbers<[1], [0], [0], [1], [0, 0, 1, 1], [], []>} : vector<8x144xf32>, vector<144x128xf32>, vector<8x128xf32> -> vector<8x128xf32>
    %46 = arith.addf %41, %45 : vector<8x128xf32>
    %47 = vector.extract_strided_slice %36 {offsets = [2, 0], sizes = [8, 144], strides = [1, 1]} : vector<10x144xf32> to vector<8x144xf32>
    %c2_49 = arith.constant 2 : index
    %c2_50 = arith.constant 2 : index
    %c0_51 = arith.constant 0 : index
    %c0_52 = arith.constant 0 : index
    %48 = vector.load %arg5[%c2_49, %c2_50, %c0_51, %c0_52] : memref<3x3x144x128xf32, #tpu.memory_space<vmem>>, vector<1x1x144x128xf32>
    %49 = vector.shape_cast %48 : vector<1x1x144x128xf32> to vector<144x128xf32>
    %cst_53 = arith.constant dense<0.000000e+00> : vector<8x128xf32>
    %50 = tpu.matmul %47, %49, %cst_53 {dimension_numbers = #tpu.dot_dimension_numbers<[1], [0], [0], [1], [0, 0, 1, 1], [], []>} : vector<8x144xf32>, vector<144x128xf32>, vector<8x128xf32> -> vector<8x128xf32>
    %51 = arith.addf %46, %50 : vector<8x128xf32>
    %c0_54 = arith.constant 0 : index
    %c0_55 = arith.constant 0 : index
    %52 = vector.load %arg6[%c0_54, %c0_55] : memref<1x128xf32, #tpu.memory_space<vmem>>, vector<1x128xf32>
    %53 = vector.broadcast %52 : vector<1x128xf32> to vector<8x128xf32>
    %54 = arith.addf %51, %53 : vector<8x128xf32>
    %c0_56 = arith.constant 0 : index
    %c0_57 = arith.constant 0 : index
    %c0_58 = arith.constant 0 : index
    %c0_59 = arith.constant 0 : index
    %55 = vector.load %arg7[%c0_56, %c0_57, %c0_58, %c0_59] : memref<1x1x8x128xf32, #tpu.memory_space<vmem>>, vector<1x1x8x128xf32>
    %56 = vector.shape_cast %55 : vector<1x1x8x128xf32> to vector<8x128xf32>
    %57 = arith.addf %54, %56 : vector<8x128xf32>
    %cst_60 = arith.constant 0.000000e+00 : f32
    %58 = vector.broadcast %cst_60 : f32 to vector<8x128xf32>
    %59 = arith.maximumf %57, %58 : vector<8x128xf32>
    %c0_61 = arith.constant 0 : index
    %c0_62 = arith.constant 0 : index
    %c0_63 = arith.constant 0 : index
    %c0_64 = arith.constant 0 : index
    %60 = vector.load %arg8[%c0_61, %c0_62, %c0_63, %c0_64] : memref<1x1x8x128xf32, #tpu.memory_space<vmem>>, vector<1x1x8x128xf32>
    %61 = vector.shape_cast %60 : vector<1x1x8x128xf32> to vector<8x128xf32>
    %62 = vector.shape_cast %59 : vector<8x128xf32> to vector<1x1x8x128xf32>
    tpu.vector_store %arg8[%c0_61, %c0_62, %c0_63, %c0_64], %62 {strides = array<i32>} : memref<1x1x8x128xf32, #tpu.memory_space<vmem>>, vector<1x1x8x128xf32>,
    return
  }
  func.func @transform_0(%arg0: i32, %arg1: i32) -> (i32, i32, i32, i32) {
    %c0_i32 = arith.constant 0 : i32
    %c0_i32_0 = arith.constant 0 : i32
    %c0_i32_1 = arith.constant 0 : i32
    return %arg0, %arg1, %c0_i32, %c0_i32_0 : i32, i32, i32, i32
  }
  func.func @transform_1(%arg0: i32, %arg1: i32) -> (i32, i32, i32, i32) {
    %c1_i32 = arith.constant 1 : i32
    %0 = arith.addi %arg1, %c1_i32 : i32
    %c0_i32 = arith.constant 0 : i32
    %c0_i32_0 = arith.constant 0 : i32
    %c0_i32_1 = arith.constant 0 : i32
    return %arg0, %0, %c0_i32, %c0_i32_0 : i32, i32, i32, i32
  }
  func.func @transform_2(%arg0: i32, %arg1: i32) -> (i32, i32, i32, i32) {
    %c2_i32 = arith.constant 2 : i32
    %0 = arith.addi %arg1, %c2_i32 : i32
    %c0_i32 = arith.constant 0 : i32
    %c0_i32_0 = arith.constant 0 : i32
    %c0_i32_1 = arith.constant 0 : i32
    return %arg0, %0, %c0_i32, %c0_i32_0 : i32, i32, i32, i32
  }
  func.func @transform_3(%arg0: i32, %arg1: i32) -> (i32, i32, i32, i32) {
    %c0_i32 = arith.constant 0 : i32
    %c0_i32_0 = arith.constant 0 : i32
    %c0_i32_1 = arith.constant 0 : i32
    %c0_i32_2 = arith.constant 0 : i32
    %c0_i32_3 = arith.constant 0 : i32
    return %c0_i32, %c0_i32_0, %c0_i32_1, %c0_i32_2 : i32, i32, i32, i32
  }
  func.func @transform_4(%arg0: i32, %arg1: i32) -> (i32, i32) {
    %c0_i32 = arith.constant 0 : i32
    %c0_i32_0 = arith.constant 0 : i32
    %c0_i32_1 = arith.constant 0 : i32
    return %c0_i32, %c0_i32_0 : i32, i32
  }
  func.func @transform_5(%arg0: i32, %arg1: i32) -> (i32, i32, i32, i32) {
    %c0_i32 = arith.constant 0 : i32
    %c0_i32_0 = arith.constant 0 : i32
    %c0_i32_1 = arith.constant 0 : i32
    return %arg0, %arg1, %c0_i32, %c0_i32_0 : i32, i32, i32, i32
  }
  func.func @transform_6(%arg0: i32, %arg1: i32) -> (i32, i32, i32, i32) {
    %c0_i32 = arith.constant 0 : i32
    %c0_i32_0 = arith.constant 0 : i32
    %c0_i32_1 = arith.constant 0 : i32
    return %arg0, %arg1, %c0_i32, %c0_i32_0 : i32, i32, i32, i32
  }
}

</mosaic_0001>

<llo_original>
// kernel: tile.13
$region0: #{tile.13}
  #allocation0 [shape = 's32[1]{0}', space=sflag, size = 0x4, scoped, tag = 'scoped memory for tile.13']
  %s0 = inlined_call_operand.vmem [shape: f32[8], index: 0, kind: input, shape index: {}]
  %s1 = inlined_call_operand.vmem [shape: f32[16,8], index: 1, kind: output, shape index: {}]
  // Predicated region
  $region2: #{tile.13} parent=0 // pred_check
    _
  $region3: #{tile.13} parent=0 // pred_check_branch
    %3 = sbr.rel (0) target = $region5
  $region4: #{tile.13} parent=0 // pred_region
    _
  $region5: #{tile.13} parent=0 // pred_fallthru
    _
  %v4 = vld [vmem:[%s0] ss:$0 sm:$0xff]
  %5 = vst [vmem:[%s1] sm:$0xff] %v4
  %s6 = scalar_lea.vmem %s1, 8
  %7 = vst [vmem:[%s6] sm:$0xff] %v4

// kernel: tile.14
$region0: #{tile.14}
  %s0 = inlined_call_operand.vmem [shape: f32[16,8], index: 0, kind: input, shape index: {}]
  %s1 = inlined_call_operand.vmem [shape: f32[1,128], index: 1, kind: output, shape index: {}]
  $region1: #{tile.14} parent=0
    #allocation0 [shape = 'u8[4096]{0}', space=vmem, size = 0x1000, scoped, tag = 'scoped mem for output reshape']
    %v2 = vld [vmem:[%s0] sm:$0x1]
    %vm3 = vcmask 64512
    %4 = vst.msk [vmem:[#allocation0] sm:$0x1] %vm3, %v2
    %s5 = scalar_lea.vmem %s0, 15
    %v6 = vld [vmem:[%s5] sm:$0x1]
    %7 = vrot.lane.b32.xlu0 %v6, 120
    %v8 = vpop.permute.xlu0 %7
    %vm9 = vcmask 1048512
    %10 = vst.msk [vmem:[#allocation0] sm:$0x1] %vm9, %v8
    %s11 = scalar_lea.vmem %s0, 14
    %v12 = vld [vmem:[%s11] sm:$0x1]
    %13 = vrot.lane.b32.xlu0 %v12, 112
    %v14 = vpop.permute.xlu0 %13
    %vm15 = vcmask 982912
    %16 = vst.msk [vmem:[#allocation0] sm:$0x1] %vm15, %v14
    %s17 = scalar_lea.vmem %s0, 13
    %v18 = vld [vmem:[%s17] sm:$0x1]
    %19 = vrot.lane.b32.xlu0 %v18, 104
    %v20 = vpop.permute.xlu0 %19
    %vm21 = vcmask 917312
    %22 = vst.msk [vmem:[#allocation0] sm:$0x1] %vm21, %v20
    %s23 = scalar_lea.vmem %s0, 12
    %v24 = vld [vmem:[%s23] sm:$0x1]
    %25 = vrot.lane.b32.xlu0 %v24, 96
    %v26 = vpop.permute.xlu0 %25
    %vm27 = vcmask 851712
    %28 = vst.msk [vmem:[#allocation0] sm:$0x1] %vm27, %v26
    %s29 = scalar_lea.vmem %s0, 11
    %v30 = vld [vmem:[%s29] sm:$0x1]
    %31 = vrot.lane.b32.xlu0 %v30, 88
    %v32 = vpop.permute.xlu0 %31
    %vm33 = vcmask 786112
    %34 = vst.msk [vmem:[#allocation0] sm:$0x1] %vm33, %v32
    %s35 = scalar_lea.vmem %s0, 10
    %v36 = vld [vmem:[%s35] sm:$0x1]
    %37 = vrot.lane.b32.xlu0 %v36, 80
    %v38 = vpop.permute.xlu0 %37
    %vm39 = vcmask 720512
    %40 = vst.msk [vmem:[#allocation0] sm:$0x1] %vm39, %v38
    %s41 = scalar_lea.vmem %s0, 9
    %v42 = vld [vmem:[%s41] sm:$0x1]
    %43 = vrot.lane.b32.xlu0 %v42, 72
    %v44 = vpop.permute.xlu0 %43
    %vm45 = vcmask 654912
    %46 = vst.msk [vmem:[#allocation0] sm:$0x1] %vm45, %v44
    %s47 = scalar_lea.vmem %s0, 8
    %v48 = vld [vmem:[%s47] sm:$0x1]
    %49 = vrot.lane.b32.xlu0 %v48, 64
    %v50 = vpop.permute.xlu0 %49
    %vm51 = vcmask 589312
    %52 = vst.msk [vmem:[#allocation0] sm:$0x1] %vm51, %v50
    %s53 = scalar_lea.vmem %s0, 7
    %v54 = vld [vmem:[%s53] sm:$0x1]
    %55 = vrot.lane.b32.xlu0 %v54, 56
    %v56 = vpop.permute.xlu0 %55
    %vm57 = vcmask 523712
    %58 = vst.msk [vmem:[#allocation0] sm:$0x1] %vm57, %v56
    %s59 = scalar_lea.vmem %s0, 6
    %v60 = vld [vmem:[%s59] sm:$0x1]
    %61 = vrot.lane.b32.xlu0 %v60, 48
    %v62 = vpop.permute.xlu0 %61
    %vm63 = vcmask 458112
    %64 = vst.msk [vmem:[#allocation0] sm:$0x1] %vm63, %v62
    %s65 = scalar_lea.vmem %s0, 5
    %v66 = vld [vmem:[%s65] sm:$0x1]
    %67 = vrot.lane.b32.xlu0 %v66, 40
    %v68 = vpop.permute.xlu0 %67
    %vm69 = vcmask 392512
    %70 = vst.msk [vmem:[#allocation0] sm:$0x1] %vm69, %v68
    %s71 = scalar_lea.vmem %s0, 4
    %v72 = vld [vmem:[%s71] sm:$0x1]
    %73 = vrot.lane.b32.xlu0 %v72, 32
    %v74 = vpop.permute.xlu0 %73
    %vm75 = vcmask 326912
    %76 = vst.msk [vmem:[#allocation0] sm:$0x1] %vm75, %v74
    %s77 = scalar_lea.vmem %s0, 3
    %v78 = vld [vmem:[%s77] sm:$0x1]
    %79 = vrot.lane.b32.xlu0 %v78, 24
    %v80 = vpop.permute.xlu0 %79
    %vm81 = vcmask 261312
    %82 = vst.msk [vmem:[#allocation0] sm:$0x1] %vm81, %v80
    %s83 = scalar_lea.vmem %s0, 2
    %v84 = vld [vmem:[%s83] sm:$0x1]
    %85 = vrot.lane.b32.xlu0 %v84, 16
    %v86 = vpop.permute.xlu0 %85
    %vm87 = vcmask 195712
    %88 = vst.msk [vmem:[#allocation0] sm:$0x1] %vm87, %v86
    %s89 = scalar_lea.vmem %s0, 1
    %v90 = vld [vmem:[%s89] sm:$0x1]
    %91 = vrot.lane.b32.xlu0 %v90, 8
    %v92 = vpop.permute.xlu0 %91
    %vm93 = vcmask 130112
    %94 = vst.msk [vmem:[#allocation0] sm:$0x1] %vm93, %v92
    %s96 = sshllo.u32 0, 1
    %v98 = vld [vmem:[#allocation0] sm:%s96]
    %s99 = sshllo.u32 0, 1
    %100 = vst [vmem:[%s1] sm:%s99] %v98

// kernel: residual_block3d_forward.2
$region0: #{residual_block3d_forward.2}
  #allocation0 [shape = 'u32[]', space=smem, size = 0x4, offset = 0x4, fixed_abs, tag = 'smem constant byte address 0x4 - core index']
  #allocation1 [shape = 'u32[144,128]{1,0:T(1,128)}', space=vmem, size = 0x12000, scoped, tag = 'internal scratch']
  %s0 = inlined_call_operand.vmem [shape: f32[2,10,10,144], index: 0, kind: input, shape index: {}, may-alias: {0,1,2}]
  %s1 = inlined_call_operand.vmem [shape: f32[2,10,10,144], index: 1, kind: input, shape index: {}, may-alias: {0,1,2}]
  %s2 = inlined_call_operand.vmem [shape: f32[2,10,10,144], index: 2, kind: input, shape index: {}, may-alias: {0,1,2}]
  %s3 = inlined_call_operand.vmem [shape: f32[3,3,144,128], index: 3, kind: input, shape index: {}]
  %s4 = inlined_call_operand.vmem [shape: f32[1,128], index: 4, kind: input, shape index: {}]
  %s5 = inlined_call_operand.vmem [shape: f32[2,8,8,128], index: 5, kind: output, shape index: {}]
  %s6 = sld [smem:[#allocation0]]
  $region53: #{residual_block3d_forward.2} parent=0
    _
  %s8 = ssub.s32 1, %s6
  %s9 = scalar_select 0, %s8, %s6
  loop: start=0, step=1, limit=18
  $region2: #{residual_block3d_forward.2} parent=0 // loop_pre_header
    _
  $region3: #{residual_block3d_forward.2} parent=0 // loop_header
    %s11 = sphi 0, %s15
    %p12 = scmp.ge.s32.totalorder %s11, 18
    %s18 = sphi 0, %s30
    %s19 = sphi 0, %s26
    %s20 = sphi 0, %s18
    %s21 = sphi 0, %s19
    %s22 = sphi 0, %s20
    %s23 = sphi 0, %s21
    %s35 = sphi 0, %s37
    %s38 = sphi 0, %s35
    %s39 = sphi 0, %s38
    %s55 = sphi 0, %s39
    %s65 = sphi 0, %s67
    %s68 = sphi 0, %s65
    %s69 = sphi 0, %s68
    %s85 = sphi 0, %s69
    %s95 = sphi 0, %s97
    %s98 = sphi 0, %s95
    %s99 = sphi 0, %s98
    %s115 = sphi 0, %s99
    %s119 = sphi 0, %s119
    %s121 = sphi 0, %s119
    %s122 = sphi 0, %s121
    %s136 = sphi 0, %s122
    %s140 = sphi 0, %s140
    %s142 = sphi 0, %s140
    %s143 = sphi 0, %s142
    %s157 = sphi 0, %s143
    %s165 = sphi 0, %s167
    %s168 = sphi 0, %s165
    %s169 = sphi 0, %s168
    %s185 = sphi 0, %s169
  $region4: #{residual_block3d_forward.2} parent=0 // loop_header_branch
    %14 = sbr.rel (%p12) target = $region8
  $region5: #{residual_block3d_forward.2} parent=0 // loop_body
    %s16 = ssub.s32 %s11, 1
    %s17 = ssub.s32 %s11, 2
    %s24 = sadd.s32 1, %s19
    %p25 = scmp.ge.s32.totalorder %s24, 8
    %s26 = scalar_select %p25, 0, %s24
    %s27 = sadd.s32 1, %s18
    %s28 = scalar_select %p25, %s27, %s18
    %p29 = scmp.ge.s32.totalorder %s28, 2
    %s30 = scalar_select %p29, 0, %s28
    %s31 = ssub.s32 %s18, %s30
    %s32 = ssub.s32 %s19, %s26
    %s33 = sor.u32 %s31, %s32
    %p34 = scmp.eq.s32.totalorder %s33, 0
    %s36 = sadd.s32 %s35, 1
    %s37 = scalar_select %p34, %s35, %s36
    %p40 = pneg %p34
    %p41 = scmp.eq.s32.totalorder %s11, 15
    %p42 = por %p40, %p41
    %p43 = scmp.ne.s32.totalorder %s35, %s38
    %p44 = scmp.eq.s32.totalorder %s11, 0
    %p45 = por %p43, %p44
    %p46 = scmp.ne.s32.totalorder %s35, %s38
    %p47 = scmp.eq.s32.totalorder %s16, 15
    %p48 = por %p46, %p47
    %p49 = scmp.ne.s32.totalorder %s38, %s39
    %p50 = scmp.eq.s32.totalorder %s16, 0
    %p51 = por %p49, %p50
    %p52 = scmp.ne.s32.totalorder %s38, %s39
    %p53 = scmp.eq.s32.totalorder %s17, 15
    %p54 = por %p52, %p53
    %p56 = scmp.ne.s32.totalorder %s39, %s55
    %p57 = scmp.eq.s32.totalorder %s17, 0
    %p58 = por %p56, %p57
    %s59 = sadd.s32 %s19, 1
    %s60 = sadd.s32 %s26, 1
    %s61 = ssub.s32 %s18, %s30
    %s62 = ssub.s32 %s59, %s60
    %s63 = sor.u32 %s61, %s62
    %p64 = scmp.eq.s32.totalorder %s63, 0
    %s66 = sadd.s32 %s65, 1
    %s67 = scalar_select %p64, %s65, %s66
    %p70 = pneg %p64
    %p71 = scmp.eq.s32.totalorder %s11, 15
    %p72 = por %p70, %p71
    %p73 = scmp.ne.s32.totalorder %s65, %s68
    %p74 = scmp.eq.s32.totalorder %s11, 0
    %p75 = por %p73, %p74
    %p76 = scmp.ne.s32.totalorder %s65, %s68
    %p77 = scmp.eq.s32.totalorder %s16, 15
    %p78 = por %p76, %p77
    %p79 = scmp.ne.s32.totalorder %s68, %s69
    %p80 = scmp.eq.s32.totalorder %s16, 0
    %p81 = por %p79, %p80
    %p82 = scmp.ne.s32.totalorder %s68, %s69
    %p83 = scmp.eq.s32.totalorder %s17, 15
    %p84 = por %p82, %p83
    %p86 = scmp.ne.s32.totalorder %s69, %s85
    %p87 = scmp.eq.s32.totalorder %s17, 0
    %p88 = por %p86, %p87
    %s89 = sadd.s32 %s19, 2
    %s90 = sadd.s32 %s26, 2
    %s91 = ssub.s32 %s18, %s30
    %s92 = ssub.s32 %s89, %s90
    %s93 = sor.u32 %s91, %s92
    %p94 = scmp.eq.s32.totalorder %s93, 0
    %s96 = sadd.s32 %s95, 1
    %s97 = scalar_select %p94, %s95, %s96
    %p100 = pneg %p94
    %p101 = scmp.eq.s32.totalorder %s11, 15
    %p102 = por %p100, %p101
    %p103 = scmp.ne.s32.totalorder %s95, %s98
    %p104 = scmp.eq.s32.totalorder %s11, 0
    %p105 = por %p103, %p104
    %p106 = scmp.ne.s32.totalorder %s95, %s98
    %p107 = scmp.eq.s32.totalorder %s16, 15
    %p108 = por %p106, %p107
    %p109 = scmp.ne.s32.totalorder %s98, %s99
    %p110 = scmp.eq.s32.totalorder %s16, 0
    %p111 = por %p109, %p110
    %p112 = scmp.ne.s32.totalorder %s98, %s99
    %p113 = scmp.eq.s32.totalorder %s17, 15
    %p114 = por %p112, %p113
    %p116 = scmp.ne.s32.totalorder %s99, %s115
    %p117 = scmp.eq.s32.totalorder %s17, 0
    %p118 = por %p116, %p117
    %s120 = sadd.s32 %s119, 1
    %p123 = scmp.eq.s32.totalorder %s11, 15
    %p124 = scmp.ne.s32.totalorder %s119, %s121
    %p125 = scmp.eq.s32.totalorder %s11, 0
    %p126 = por %p124, %p125
    %p127 = scmp.ne.s32.totalorder %s119, %s121
    %p128 = scmp.eq.s32.totalorder %s16, 15
    %p129 = por %p127, %p128
    %p130 = scmp.ne.s32.totalorder %s121, %s122
    %p131 = scmp.eq.s32.totalorder %s16, 0
    %p132 = por %p130, %p131
    %p133 = scmp.ne.s32.totalorder %s121, %s122
    %p134 = scmp.eq.s32.totalorder %s17, 15
    %p135 = por %p133, %p134
    %p137 = scmp.ne.s32.totalorder %s122, %s136
    %p138 = scmp.eq.s32.totalorder %s17, 0
    %p139 = por %p137, %p138
    %s141 = sadd.s32 %s140, 1
    %p144 = scmp.eq.s32.totalorder %s11, 15
    %p145 = scmp.ne.s32.totalorder %s140, %s142
    %p146 = scmp.eq.s32.totalorder %s11, 0
    %p147 = por %p145, %p146
    %p148 = scmp.ne.s32.totalorder %s140, %s142
    %p149 = scmp.eq.s32.totalorder %s16, 15
    %p150 = por %p148, %p149
    %p151 = scmp.ne.s32.totalorder %s142, %s143
    %p152 = scmp.eq.s32.totalorder %s16, 0
    %p153 = por %p151, %p152
    %p154 = scmp.ne.s32.totalorder %s142, %s143
    %p155 = scmp.eq.s32.totalorder %s17, 15
    %p156 = por %p154, %p155
    %p158 = scmp.ne.s32.totalorder %s143, %s157
    %p159 = scmp.eq.s32.totalorder %s17, 0
    %p160 = por %p158, %p159
    %s161 = ssub.s32 %s18, %s30
    %s162 = ssub.s32 %s19, %s26
    %s163 = sor.u32 %s161, %s162
    %p164 = scmp.eq.s32.totalorder %s163, 0
    %s166 = sadd.s32 %s165, 1
    %s167 = scalar_select %p164, %s165, %s166
    %p170 = pneg %p164
    %p171 = scmp.eq.s32.totalorder %s11, 15
    %p172 = por %p170, %p171
    %p173 = scmp.ne.s32.totalorder %s165, %s168
    %p174 = scmp.eq.s32.totalorder %s11, 0
    %p175 = por %p173, %p174
    %p176 = scmp.ne.s32.totalorder %s165, %s168
    %p177 = scmp.eq.s32.totalorder %s16, 15
    %p178 = por %p176, %p177
    %p179 = scmp.ne.s32.totalorder %s168, %s169
    %p180 = scmp.eq.s32.totalorder %s16, 0
    %p181 = por %p179, %p180
    %p182 = scmp.ne.s32.totalorder %s168, %s169
    %p183 = scmp.eq.s32.totalorder %s17, 15
    %p184 = por %p182, %p183
    %p186 = scmp.ne.s32.totalorder %s169, %s185
    %p187 = scmp.eq.s32.totalorder %s17, 0
    %p188 = por %p186, %p187
    %p189 = scmp.le.s32.totalorder 1, %s11
    %p190 = scmp.lt.s32.totalorder %s11, 17
    %p191 = pnand %p189, %p190
    %p192 = pneg %p191
    // Predicated region
    $region9: #{residual_block3d_forward.2} parent=5 // pred_check
      _
    $region10: #{residual_block3d_forward.2} parent=5 // pred_check_branch
      %194 = sbr.rel (%p191) target = $region12
    $region11: #{residual_block3d_forward.2} parent=5 // pred_region
      %s195 = ssub.s32 %s11, 1
      // Predicated region
      $region13: #{residual_block3d_forward.2} parent=11 // pred_check
        %p196 = pneg %p132
      $region14: #{residual_block3d_forward.2} parent=11 // pred_check_branch
        %198 = sbr.rel (%p196) target = $region16
      $region15: #{residual_block3d_forward.2} parent=11 // pred_region
        _
      $region16: #{residual_block3d_forward.2} parent=11 // pred_fallthru
        _
      // Predicated region
      $region17: #{residual_block3d_forward.2} parent=11 // pred_check
        %p199 = pneg %p153
      $region18: #{residual_block3d_forward.2} parent=11 // pred_check_branch
        %201 = sbr.rel (%p199) target = $region20
      $region19: #{residual_block3d_forward.2} parent=11 // pred_region
        _
      $region20: #{residual_block3d_forward.2} parent=11 // pred_fallthru
        _
    $region12: #{residual_block3d_forward.2} parent=5 // pred_fallthru
      _
    %p202 = scmp.lt.s32.totalorder %s11, 16
    // Predicated region
    $region21: #{residual_block3d_forward.2} parent=5 // pred_check
      %p203 = pneg %p202
    $region22: #{residual_block3d_forward.2} parent=5 // pred_check_branch
      %205 = sbr.rel (%p203) target = $region24
    $region23: #{residual_block3d_forward.2} parent=5 // pred_region
      // Predicated region
      $region25: #{residual_block3d_forward.2} parent=23 // pred_check
        %p206 = pneg %p45
      $region26: #{residual_block3d_forward.2} parent=23 // pred_check_branch
        %208 = sbr.rel (%p206) target = $region28
      $region27: #{residual_block3d_forward.2} parent=23 // pred_region
        %p209 = scmp.lt.s32.totalorder %s18, 1
        %s210 = scalar_select %p209, %s18, 1
        %p211 = scmp.lt.s32.totalorder %s19, 9
        %s212 = scalar_select %p211, %s19, 9
        %s213 = smul.addr %s212, 4
        %s214 = smul.addr %s210, 40
        %s215 = sadd.s32 %s213, %s214
        %s216 = smul.addr %s215, 8
        %s217 = scalar_lea.vmem %s0, %s216
      $region28: #{residual_block3d_forward.2} parent=23 // pred_fallthru
        _
      // Predicated region
      $region29: #{residual_block3d_forward.2} parent=23 // pred_check
        %p218 = pneg %p75
      $region30: #{residual_block3d_forward.2} parent=23 // pred_check_branch
        %220 = sbr.rel (%p218) target = $region32
      $region31: #{residual_block3d_forward.2} parent=23 // pred_region
        %s221 = sadd.s32 %s19, 1
        %p222 = scmp.lt.s32.totalorder %s18, 1
        %s223 = scalar_select %p222, %s18, 1
        %p224 = scmp.lt.s32.totalorder %s221, 9
        %s225 = scalar_select %p224, %s221, 9
        %s226 = smul.addr %s225, 4
        %s227 = smul.addr %s223, 40
        %s228 = sadd.s32 %s226, %s227
        %s229 = smul.addr %s228, 8
        %s230 = scalar_lea.vmem %s1, %s229
        %s231 = sadd.s32 %s19, 1
      $region32: #{residual_block3d_forward.2} parent=23 // pred_fallthru
        _
      // Predicated region
      $region33: #{residual_block3d_forward.2} parent=23 // pred_check
        %p232 = pneg %p105
      $region34: #{residual_block3d_forward.2} parent=23 // pred_check_branch
        %234 = sbr.rel (%p232) target = $region36
      $region35: #{residual_block3d_forward.2} parent=23 // pred_region
        %s235 = sadd.s32 %s19, 2
        %p236 = scmp.lt.s32.totalorder %s18, 1
        %s237 = scalar_select %p236, %s18, 1
        %p238 = scmp.lt.s32.totalorder %s235, 9
        %s239 = scalar_select %p238, %s235, 9
        %s240 = smul.addr %s239, 4
        %s241 = smul.addr %s237, 40
        %s242 = sadd.s32 %s240, %s241
        %s243 = smul.addr %s242, 8
        %s244 = scalar_lea.vmem %s2, %s243
        %s245 = sadd.s32 %s19, 2
      $region36: #{residual_block3d_forward.2} parent=23 // pred_fallthru
        _
    $region24: #{residual_block3d_forward.2} parent=5 // pred_fallthru
      _
    %p246 = scmp.le.s32.totalorder 1, %s11
    %p247 = scmp.lt.s32.totalorder %s11, 17
    %p248 = pnand %p246, %p247
    %p249 = pneg %p248
    // Predicated region
    $region37: #{residual_block3d_forward.2} parent=5 // pred_check
      _
    $region38: #{residual_block3d_forward.2} parent=5 // pred_check_branch
      %251 = sbr.rel (%p248) target = $region40
    $region39: #{residual_block3d_forward.2} parent=5 // pred_region
      %s252 = ssub.s32 %s11, 1
      %p253 = scmp.lt.s32.totalorder %s20, 1
      %s254 = scalar_select %p253, %s20, 1
      %p255 = scmp.lt.s32.totalorder %s21, 9
      %s256 = scalar_select %p255, %s21, 9
      %s257 = smul.addr %s256, 4
      %s258 = smul.addr %s254, 40
      %s259 = sadd.s32 %s257, %s258
      %s260 = smul.addr %s259, 8
      %s261 = scalar_lea.vmem %s0, %s260
      %p262 = pneg %p51
      %p263 = pneg %p48
      %s264 = sadd.s32 %s21, 1
      %p265 = scmp.lt.s32.totalorder %s20, 1
      %s266 = scalar_select %p265, %s20, 1
      %p267 = scmp.lt.s32.totalorder %s264, 9
      %s268 = scalar_select %p267, %s264, 9
      %s269 = smul.addr %s268, 4
      %s270 = smul.addr %s266, 40
      %s271 = sadd.s32 %s269, %s270
      %s272 = smul.addr %s271, 8
      %s273 = scalar_lea.vmem %s1, %s272
      %p274 = pneg %p81
      %p275 = pneg %p78
      %s276 = sadd.s32 %s21, 2
      %p277 = scmp.lt.s32.totalorder %s20, 1
      %s278 = scalar_select %p277, %s20, 1
      %p279 = scmp.lt.s32.totalorder %s276, 9
      %s280 = scalar_select %p279, %s276, 9
      %s281 = smul.addr %s280, 4
      %s282 = smul.addr %s278, 40
      %s283 = sadd.s32 %s281, %s282
      %s284 = smul.addr %s283, 8
      %s285 = scalar_lea.vmem %s2, %s284
      %p286 = pneg %p111
      %p287 = pneg %p108
      %p288 = pneg %p132
      %p289 = pneg %p129
      %p290 = pneg %p153
      %p291 = pneg %p150
      %p292 = pneg %p181
      %p293 = pneg %p178
      %p294 = scmp.lt.s32.totalorder %s20, 1
      %s295 = scalar_select %p294, %s20, 1
      %p296 = scmp.lt.s32.totalorder %s21, 7
      %s297 = scalar_select %p296, %s21, 7
      %s298 = smul.addr %s295, 8
      %s299 = sadd.s32 %s297, %s298
      %s300 = smul.addr %s299, 8
      %s301 = scalar_lea.vmem %s5, %s300
      %p302 = scmp.lt.s32.totalorder %s20, 1
      %s303 = scalar_select %p302, %s20, 1
      %p304 = scmp.lt.s32.totalorder %s21, 9
      %s305 = scalar_select %p304, %s21, 9
      %s306 = smul.addr %s305, 4
      %s307 = smul.addr %s303, 40
      %s308 = sadd.s32 %s306, %s307
      %s309 = smul.addr %s308, 8
      %s310 = scalar_lea.vmem %s0, %s309
      %s311 = sadd.s32 %s21, 1
      %p312 = scmp.lt.s32.totalorder %s20, 1
      %s313 = scalar_select %p312, %s20, 1
      %p314 = scmp.lt.s32.totalorder %s311, 9
      %s315 = scalar_select %p314, %s311, 9
      %s316 = smul.addr %s315, 4
      %s317 = smul.addr %s313, 40
      %s318 = sadd.s32 %s316, %s317
      %s319 = smul.addr %s318, 8
      %s320 = scalar_lea.vmem %s1, %s319
      %s321 = sadd.s32 %s21, 1
      %s322 = sadd.s32 %s21, 2
      %p323 = scmp.lt.s32.totalorder %s20, 1
      %s324 = scalar_select %p323, %s20, 1
      %p325 = scmp.lt.s32.totalorder %s322, 9
      %s326 = scalar_select %p325, %s322, 9
      %s327 = smul.addr %s326, 4
      %s328 = smul.addr %s324, 40
      %s329 = sadd.s32 %s327, %s328
      %s330 = smul.addr %s329, 8
      %s331 = scalar_lea.vmem %s2, %s330
      %s332 = sadd.s32 %s21, 2
      %p333 = scmp.lt.s32.totalorder %s20, 1
      %s334 = scalar_select %p333, %s20, 1
      %p335 = scmp.lt.s32.totalorder %s21, 7
      %s336 = scalar_select %p335, %s21, 7
      %s337 = smul.addr %s334, 8
      %s338 = sadd.s32 %s336, %s337
      %s339 = smul.addr %s338, 8
      %s340 = scalar_lea.vmem %s5, %s339
      %v341 = vld [vmem:[%s310] sm:$0xff]
      %v342 = vld [vmem:[%s310 + $0x8] sm:$0xff]
      %v343 = vld [vmem:[%s310 + $0x10] sm:$0x3]
      %v344 = vld [vmem:[%s310 + $0x18] sm:$0x3]
      %v345 = vld [vmem:[%s3] sm:$0xff]
      %v346 = vld [vmem:[%s3 + $0x8] sm:$0xff]
      %v347 = vld [vmem:[%s3 + $0x10] sm:$0xff]
      %v348 = vld [vmem:[%s3 + $0x18] sm:$0xff]
      %v349 = vld [vmem:[%s3 + $0x20] sm:$0xff]
      %v350 = vld [vmem:[%s3 + $0x28] sm:$0xff]
      %v351 = vld [vmem:[%s3 + $0x30] sm:$0xff]
      %v352 = vld [vmem:[%s3 + $0x38] sm:$0xff]
      %v353 = vld [vmem:[%s3 + $0x40] sm:$0xff]
      %v354 = vld [vmem:[%s3 + $0x48] sm:$0xff]
      %v355 = vld [vmem:[%s3 + $0x50] sm:$0xff]
      %v356 = vld [vmem:[%s3 + $0x58] sm:$0xff]
      %v357 = vld [vmem:[%s3 + $0x60] sm:$0xff]
      %v358 = vld [vmem:[%s3 + $0x68] sm:$0xff]
      %v359 = vld [vmem:[%s3 + $0x70] sm:$0xff]
      %v360 = vld [vmem:[%s3 + $0x78] sm:$0xff]
      %v361 = vld [vmem:[%s3 + $0x80] sm:$0xff]
      %v362 = vld [vmem:[%s3 + $0x88] sm:$0xff]
      %s363 = scalar_lea.vmem %s3, 144
      %v364 = vld [vmem:[%s363] sm:$0xff]
      %v365 = vld [vmem:[%s363 + $0x8] sm:$0xff]
      %v366 = vld [vmem:[%s363 + $0x10] sm:$0xff]
      %v367 = vld [vmem:[%s363 + $0x18] sm:$0xff]
      %v368 = vld [vmem:[%s363 + $0x20] sm:$0xff]
      %v369 = vld [vmem:[%s363 + $0x28] sm:$0xff]
      %v370 = vld [vmem:[%s363 + $0x30] sm:$0xff]
      %v371 = vld [vmem:[%s363 + $0x38] sm:$0xff]
      %v372 = vld [vmem:[%s363 + $0x40] sm:$0xff]
      %v373 = vld [vmem:[%s363 + $0x48] sm:$0xff]
      %v374 = vld [vmem:[%s363 + $0x50] sm:$0xff]
      %v375 = vld [vmem:[%s363 + $0x58] sm:$0xff]
      %v376 = vld [vmem:[%s363 + $0x60] sm:$0xff]
      %v377 = vld [vmem:[%s363 + $0x68] sm:$0xff]
      %v378 = vld [vmem:[%s363 + $0x70] sm:$0xff]
      %v379 = vld [vmem:[%s363 + $0x78] sm:$0xff]
      %v380 = vld [vmem:[%s363 + $0x80] sm:$0xff]
      %v381 = vld [vmem:[%s363 + $0x88] sm:$0xff]
      %vm386 = vcmask 1046528
      %v387 = vrot.slane %v341, 1
      %v388 = vrot.slane %v343, 1
      %v389 = vsel %vm386, %v387, %v388
      %v390 = vrot.slane %v342, 1
      %v391 = vrot.slane %v344, 1
      %v392 = vsel %vm386, %v390, %v391
      %vm394 = vcmask 130048
      %v395 = vsel %vm394, %v392, 0
      %397 = vmatprep.subr.mxu0 0.0
      %398 = vmatpush1.msra.mxu0 %v364
      %399 = vmatprep.subr.mxu0 0.0
      %400 = vmatpush1.msra.mxu0 %v365
      %401 = vmatprep.subr.mxu0 0.0
      %402 = vmatpush1.msra.mxu0 %v366
      %403 = vmatprep.subr.mxu0 0.0
      %404 = vmatpush1.msra.mxu0 %v367
      %405 = vmatprep.subr.mxu0 0.0
      %406 = vmatpush1.msra.mxu0 %v368
      %407 = vmatprep.subr.mxu0 0.0
      %408 = vmatpush1.msra.mxu0 %v369
      %409 = vmatprep.subr.mxu0 0.0
      %410 = vmatpush1.msra.mxu0 %v370
      %411 = vmatprep.subr.mxu0 0.0
      %412 = vmatpush1.msra.mxu0 %v371
      %413 = vmatprep.subr.mxu0 0.0
      %414 = vmatpush1.msra.mxu0 %v372
      %415 = vmatprep.subr.mxu0 0.0
      %416 = vmatpush1.msra.mxu0 %v373
      %417 = vmatprep.subr.mxu0 0.0
      %418 = vmatpush1.msra.mxu0 %v374
      %419 = vmatprep.subr.mxu0 0.0
      %420 = vmatpush1.msra.mxu0 %v375
      %421 = vmatprep.subr.mxu0 0.0
      %422 = vmatpush1.msra.mxu0 %v376
      %423 = vmatprep.subr.mxu0 0.0
      %424 = vmatpush1.msra.mxu0 %v377
      %425 = vmatprep.subr.mxu0 0.0
      %426 = vmatpush1.msra.mxu0 %v378
      %427 = vmatprep.subr.mxu0 0.0
      %428 = vmatpush1.msra.mxu0 %v379
      %429 = vmatprep.subr.mxu0 0.0
      %430 = vmatpush1.msra.mxu0 %v380
      %431 = vmatprep.subr.mxu0 0.0
      %432 = vmatpush1.msra.mxu0 %v381
      %433 = vmatprep.subr.mxu0 0.0
      %434 = vmatpush1.msra.mxu0 0.0
      %435 = vmatprep.subr.mxu0 0.0
      %436 = vmatpush1.msra.mxu0 0.0
      %437 = vmatprep.subr.mxu0 0.0
      %438 = vmatpush1.msra.mxu0 0.0
      %439 = vmatprep.subr.mxu0 0.0
      %440 = vmatpush1.msra.mxu0 0.0
      %441 = vmatprep.subr.mxu0 0.0
      %442 = vmatpush1.msra.mxu0 0.0
      %443 = vmatprep.subr.mxu0 0.0
      %444 = vmatpush1.msra.mxu0 0.0
      %445 = vmatprep.subr.mxu0 0.0
      %446 = vmatpush1.msra.mxu0 0.0
      %447 = vmatprep.subr.mxu0 0.0
      %448 = vmatpush1.msra.mxu0 0.0
      %449 = vmatprep.subr.mxu0 0.0
      %450 = vmatpush1.msra.mxu0 0.0
      %451 = vmatprep.subr.mxu0 0.0
      %452 = vmatpush1.msra.mxu0 0.0
      %453 = vmatprep.subr.mxu0 0.0
      %454 = vmatpush1.msra.mxu0 0.0
      %455 = vmatprep.subr.mxu0 0.0
      %456 = vmatpush1.msra.mxu0 0.0
      %457 = vmatprep.subr.mxu0 0.0
      %458 = vmatpush1.msra.mxu0 0.0
      %459 = vmatprep.subr.mxu0 0.0
      %460 = vmatpush1.msra.mxu0 0.0
      %461 = vmatprep.mubr.f32.mxu0 %v395
      %462 = vmatmul.mubr.f32.gmra.mrb[0].mxu0 %v389
      %v463 = vpop.f32.mrb[0].mxu0
      %v464 = vadd.f32 0.0, %v463
      %v465 = vpop.f32.mrb[0].mxu0
      %466 = vdwg.mxu0
      %v467 = vsel %vm394, %v342, 0
      %469 = vmatprep.subr.mxu0 0.0
      %470 = vmatpush1.msra.mxu0 %v345
      %471 = vmatprep.subr.mxu0 0.0
      %472 = vmatpush1.msra.mxu0 %v346
      %473 = vmatprep.subr.mxu0 0.0
      %474 = vmatpush1.msra.mxu0 %v347
      %475 = vmatprep.subr.mxu0 0.0
      %476 = vmatpush1.msra.mxu0 %v348
      %477 = vmatprep.subr.mxu0 0.0
      %478 = vmatpush1.msra.mxu0 %v349
      %479 = vmatprep.subr.mxu0 0.0
      %480 = vmatpush1.msra.mxu0 %v350
      %481 = vmatprep.subr.mxu0 0.0
      %482 = vmatpush1.msra.mxu0 %v351
      %483 = vmatprep.subr.mxu0 0.0
      %484 = vmatpush1.msra.mxu0 %v352
      %485 = vmatprep.subr.mxu0 0.0
      %486 = vmatpush1.msra.mxu0 %v353
      %487 = vmatprep.subr.mxu0 0.0
      %488 = vmatpush1.msra.mxu0 %v354
      %489 = vmatprep.subr.mxu0 0.0
      %490 = vmatpush1.msra.mxu0 %v355
      %491 = vmatprep.subr.mxu0 0.0
      %492 = vmatpush1.msra.mxu0 %v356
      %493 = vmatprep.subr.mxu0 0.0
      %494 = vmatpush1.msra.mxu0 %v357
      %495 = vmatprep.subr.mxu0 0.0
      %496 = vmatpush1.msra.mxu0 %v358
      %497 = vmatprep.subr.mxu0 0.0
      %498 = vmatpush1.msra.mxu0 %v359
      %499 = vmatprep.subr.mxu0 0.0
      %500 = vmatpush1.msra.mxu0 %v360
      %501 = vmatprep.subr.mxu0 0.0
      %502 = vmatpush1.msra.mxu0 %v361
      %503 = vmatprep.subr.mxu0 0.0
      %504 = vmatpush1.msra.mxu0 %v362
      %505 = vmatprep.subr.mxu0 0.0
      %506 = vmatpush1.msra.mxu0 0.0
      %507 = vmatprep.subr.mxu0 0.0
      %508 = vmatpush1.msra.mxu0 0.0
      %509 = vmatprep.subr.mxu0 0.0
      %510 = vmatpush1.msra.mxu0 0.0
      %511 = vmatprep.subr.mxu0 0.0
      %512 = vmatpush1.msra.mxu0 0.0
      %513 = vmatprep.subr.mxu0 0.0
      %514 = vmatpush1.msra.mxu0 0.0
      %515 = vmatprep.subr.mxu0 0.0
      %516 = vmatpush1.msra.mxu0 0.0
      %517 = vmatprep.subr.mxu0 0.0
      %518 = vmatpush1.msra.mxu0 0.0
      %519 = vmatprep.subr.mxu0 0.0
      %520 = vmatpush1.msra.mxu0 0.0
      %521 = vmatprep.subr.mxu0 0.0
      %522 = vmatpush1.msra.mxu0 0.0
      %523 = vmatprep.subr.mxu0 0.0
      %524 = vmatpush1.msra.mxu0 0.0
      %525 = vmatprep.subr.mxu0 0.0
      %526 = vmatpush1.msra.mxu0 0.0
      %527 = vmatprep.subr.mxu0 0.0
      %528 = vmatpush1.msra.mxu0 0.0
      %529 = vmatprep.subr.mxu0 0.0
      %530 = vmatpush1.msra.mxu0 0.0
      %531 = vmatprep.subr.mxu0 0.0
      %532 = vmatpush1.msra.mxu0 0.0
      %533 = vmatprep.mubr.f32.mxu0 %v467
      %534 = vmatmul.mubr.f32.gmra.mrb[0].mxu0 %v341
      %v535 = vpop.f32.mrb[0].mxu0
      %v536 = vadd.f32 %v464, %v535
      %v537 = vpop.f32.mrb[0].mxu0
      %538 = vdwg.mxu0
      %s539 = scalar_lea.vmem %s3, 288
      %v540 = vld [vmem:[%s539] sm:$0xff]
      %v541 = vld [vmem:[%s539 + $0x8] sm:$0xff]
      %v542 = vld [vmem:[%s539 + $0x10] sm:$0xff]
      %v543 = vld [vmem:[%s539 + $0x18] sm:$0xff]
      %v544 = vld [vmem:[%s539 + $0x20] sm:$0xff]
      %v545 = vld [vmem:[%s539 + $0x28] sm:$0xff]
      %v546 = vld [vmem:[%s539 + $0x30] sm:$0xff]
      %v547 = vld [vmem:[%s539 + $0x38] sm:$0xff]
      %v548 = vld [vmem:[%s539 + $0x40] sm:$0xff]
      %v549 = vld [vmem:[%s539 + $0x48] sm:$0xff]
      %v550 = vld [vmem:[%s539 + $0x50] sm:$0xff]
      %v551 = vld [vmem:[%s539 + $0x58] sm:$0xff]
      %v552 = vld [vmem:[%s539 + $0x60] sm:$0xff]
      %v553 = vld [vmem:[%s539 + $0x68] sm:$0xff]
      %v554 = vld [vmem:[%s539 + $0x70] sm:$0xff]
      %v555 = vld [vmem:[%s539 + $0x78] sm:$0xff]
      %v556 = vld [vmem:[%s539 + $0x80] sm:$0xff]
      %v557 = vld [vmem:[%s539 + $0x88] sm:$0xff]
      %vm558 = vcmask 1045504
      %v559 = vrot.slane %v341, 2
      %v560 = vrot.slane %v343, 2
      %v561 = vsel %vm558, %v559, %v560
      %v562 = vrot.slane %v342, 2
      %v563 = vrot.slane %v344, 2
      %v564 = vsel %vm558, %v562, %v563
      %v566 = vsel %vm394, %v564, 0
      %568 = vmatprep.subr.mxu0 0.0
      %569 = vmatpush1.msra.mxu0 %v540
      %570 = vmatprep.subr.mxu0 0.0
      %571 = vmatpush1.msra.mxu0 %v541
      %572 = vmatprep.subr.mxu0 0.0
      %573 = vmatpush1.msra.mxu0 %v542
      %574 = vmatprep.subr.mxu0 0.0
      %575 = vmatpush1.msra.mxu0 %v543
      %576 = vmatprep.subr.mxu0 0.0
      %577 = vmatpush1.msra.mxu0 %v544
      %578 = vmatprep.subr.mxu0 0.0
      %579 = vmatpush1.msra.mxu0 %v545
      %580 = vmatprep.subr.mxu0 0.0
      %581 = vmatpush1.msra.mxu0 %v546
      %582 = vmatprep.subr.mxu0 0.0
      %583 = vmatpush1.msra.mxu0 %v547
      %584 = vmatprep.subr.mxu0 0.0
      %585 = vmatpush1.msra.mxu0 %v548
      %586 = vmatprep.subr.mxu0 0.0
      %587 = vmatpush1.msra.mxu0 %v549
      %588 = vmatprep.subr.mxu0 0.0
      %589 = vmatpush1.msra.mxu0 %v550
      %590 = vmatprep.subr.mxu0 0.0
      %591 = vmatpush1.msra.mxu0 %v551
      %592 = vmatprep.subr.mxu0 0.0
      %593 = vmatpush1.msra.mxu0 %v552
      %594 = vmatprep.subr.mxu0 0.0
      %595 = vmatpush1.msra.mxu0 %v553
      %596 = vmatprep.subr.mxu0 0.0
      %597 = vmatpush1.msra.mxu0 %v554
      %598 = vmatprep.subr.mxu0 0.0
      %599 = vmatpush1.msra.mxu0 %v555
      %600 = vmatprep.subr.mxu0 0.0
      %601 = vmatpush1.msra.mxu0 %v556
      %602 = vmatprep.subr.mxu0 0.0
      %603 = vmatpush1.msra.mxu0 %v557
      %604 = vmatprep.subr.mxu0 0.0
      %605 = vmatpush1.msra.mxu0 0.0
      %606 = vmatprep.subr.mxu0 0.0
      %607 = vmatpush1.msra.mxu0 0.0
      %608 = vmatprep.subr.mxu0 0.0
      %609 = vmatpush1.msra.mxu0 0.0
      %610 = vmatprep.subr.mxu0 0.0
      %611 = vmatpush1.msra.mxu0 0.0
      %612 = vmatprep.subr.mxu0 0.0
      %613 = vmatpush1.msra.mxu0 0.0
      %614 = vmatprep.subr.mxu0 0.0
      %615 = vmatpush1.msra.mxu0 0.0
      %616 = vmatprep.subr.mxu0 0.0
      %617 = vmatpush1.msra.mxu0 0.0
      %618 = vmatprep.subr.mxu0 0.0
      %619 = vmatpush1.msra.mxu0 0.0
      %620 = vmatprep.subr.mxu0 0.0
      %621 = vmatpush1.msra.mxu0 0.0
      %622 = vmatprep.subr.mxu0 0.0
      %623 = vmatpush1.msra.mxu0 0.0
      %624 = vmatprep.subr.mxu0 0.0
      %625 = vmatpush1.msra.mxu0 0.0
      %626 = vmatprep.subr.mxu0 0.0
      %627 = vmatpush1.msra.mxu0 0.0
      %628 = vmatprep.subr.mxu0 0.0
      %629 = vmatpush1.msra.mxu0 0.0
      %630 = vmatprep.subr.mxu0 0.0
      %631 = vmatpush1.msra.mxu0 0.0
      %632 = vmatprep.mubr.f32.mxu0 %v566
      %633 = vmatmul.mubr.f32.gmra.mrb[0].mxu0 %v561
      %v634 = vpop.f32.mrb[0].mxu0
      %v635 = vadd.f32 0.0, %v634
      %v636 = vpop.f32.mrb[0].mxu0
      %637 = vdwg.mxu0
      %v638 = vadd.f32 %v536, %v635
      %v639 = vld [vmem:[%s320] sm:$0xff]
      %v640 = vld [vmem:[%s320 + $0x8] sm:$0xff]
      %v641 = vld [vmem:[%s320 + $0x10] sm:$0x3]
      %v642 = vld [vmem:[%s320 + $0x18] sm:$0x3]
      %s643 = scalar_lea.vmem %s3, 432
      %v644 = vld [vmem:[%s643] sm:$0xff]
      %v645 = vld [vmem:[%s643 + $0x8] sm:$0xff]
      %v646 = vld [vmem:[%s643 + $0x10] sm:$0xff]
      %v647 = vld [vmem:[%s643 + $0x18] sm:$0xff]
      %v648 = vld [vmem:[%s643 + $0x20] sm:$0xff]
      %v649 = vld [vmem:[%s643 + $0x28] sm:$0xff]
      %v650 = vld [vmem:[%s643 + $0x30] sm:$0xff]
      %v651 = vld [vmem:[%s643 + $0x38] sm:$0xff]
      %v652 = vld [vmem:[%s643 + $0x40] sm:$0xff]
      %v653 = vld [vmem:[%s643 + $0x48] sm:$0xff]
      %v654 = vld [vmem:[%s643 + $0x50] sm:$0xff]
      %v655 = vld [vmem:[%s643 + $0x58] sm:$0xff]
      %v656 = vld [vmem:[%s643 + $0x60] sm:$0xff]
      %v657 = vld [vmem:[%s643 + $0x68] sm:$0xff]
      %v658 = vld [vmem:[%s643 + $0x70] sm:$0xff]
      %v659 = vld [vmem:[%s643 + $0x78] sm:$0xff]
      %v660 = vld [vmem:[%s643 + $0x80] sm:$0xff]
      %v661 = vld [vmem:[%s643 + $0x88] sm:$0xff]
      %v663 = vsel %vm394, %v640, 0
      %665 = vmatprep.subr.mxu0 0.0
      %666 = vmatpush1.msra.mxu0 %v644
      %667 = vmatprep.subr.mxu0 0.0
      %668 = vmatpush1.msra.mxu0 %v645
      %669 = vmatprep.subr.mxu0 0.0
      %670 = vmatpush1.msra.mxu0 %v646
      %671 = vmatprep.subr.mxu0 0.0
      %672 = vmatpush1.msra.mxu0 %v647
      %673 = vmatprep.subr.mxu0 0.0
      %674 = vmatpush1.msra.mxu0 %v648
      %675 = vmatprep.subr.mxu0 0.0
      %676 = vmatpush1.msra.mxu0 %v649
      %677 = vmatprep.subr.mxu0 0.0
      %678 = vmatpush1.msra.mxu0 %v650
      %679 = vmatprep.subr.mxu0 0.0
      %680 = vmatpush1.msra.mxu0 %v651
      %681 = vmatprep.subr.mxu0 0.0
      %682 = vmatpush1.msra.mxu0 %v652
      %683 = vmatprep.subr.mxu0 0.0
      %684 = vmatpush1.msra.mxu0 %v653
      %685 = vmatprep.subr.mxu0 0.0
      %686 = vmatpush1.msra.mxu0 %v654
      %687 = vmatprep.subr.mxu0 0.0
      %688 = vmatpush1.msra.mxu0 %v655
      %689 = vmatprep.subr.mxu0 0.0
      %690 = vmatpush1.msra.mxu0 %v656
      %691 = vmatprep.subr.mxu0 0.0
      %692 = vmatpush1.msra.mxu0 %v657
      %693 = vmatprep.subr.mxu0 0.0
      %694 = vmatpush1.msra.mxu0 %v658
      %695 = vmatprep.subr.mxu0 0.0
      %696 = vmatpush1.msra.mxu0 %v659
      %697 = vmatprep.subr.mxu0 0.0
      %698 = vmatpush1.msra.mxu0 %v660
      %699 = vmatprep.subr.mxu0 0.0
      %700 = vmatpush1.msra.mxu0 %v661
      %701 = vmatprep.subr.mxu0 0.0
      %702 = vmatpush1.msra.mxu0 0.0
      %703 = vmatprep.subr.mxu0 0.0
      %704 = vmatpush1.msra.mxu0 0.0
      %705 = vmatprep.subr.mxu0 0.0
      %706 = vmatpush1.msra.mxu0 0.0
      %707 = vmatprep.subr.mxu0 0.0
      %708 = vmatpush1.msra.mxu0 0.0
      %709 = vmatprep.subr.mxu0 0.0
      %710 = vmatpush1.msra.mxu0 0.0
      %711 = vmatprep.subr.mxu0 0.0
      %712 = vmatpush1.msra.mxu0 0.0
      %713 = vmatprep.subr.mxu0 0.0
      %714 = vmatpush1.msra.mxu0 0.0
      %715 = vmatprep.subr.mxu0 0.0
      %716 = vmatpush1.msra.mxu0 0.0
      %717 = vmatprep.subr.mxu0 0.0
      %718 = vmatpush1.msra.mxu0 0.0
      %719 = vmatprep.subr.mxu0 0.0
      %720 = vmatpush1.msra.mxu0 0.0
      %721 = vmatprep.subr.mxu0 0.0
      %722 = vmatpush1.msra.mxu0 0.0
      %723 = vmatprep.subr.mxu0 0.0
      %724 = vmatpush1.msra.mxu0 0.0
      %725 = vmatprep.subr.mxu0 0.0
      %726 = vmatpush1.msra.mxu0 0.0
      %727 = vmatprep.subr.mxu0 0.0
      %728 = vmatpush1.msra.mxu0 0.0
      %729 = vmatprep.mubr.f32.mxu0 %v663
      %730 = vmatmul.mubr.f32.gmra.mrb[0].mxu0 %v639
      %v731 = vpop.f32.mrb[0].mxu0
      %v732 = vadd.f32 0.0, %v731
      %v733 = vpop.f32.mrb[0].mxu0
      %734 = vdwg.mxu0
      %v735 = vadd.f32 %v638, %v732
      %s736 = scalar_lea.vmem %s3, 576
      %v737 = vld [vmem:[%s736] sm:$0xff]
      %v738 = vld [vmem:[%s736 + $0x8] sm:$0xff]
      %v739 = vld [vmem:[%s736 + $0x10] sm:$0xff]
      %v740 = vld [vmem:[%s736 + $0x18] sm:$0xff]
      %v741 = vld [vmem:[%s736 + $0x20] sm:$0xff]
      %v742 = vld [vmem:[%s736 + $0x28] sm:$0xff]
      %v743 = vld [vmem:[%s736 + $0x30] sm:$0xff]
      %v744 = vld [vmem:[%s736 + $0x38] sm:$0xff]
      %v745 = vld [vmem:[%s736 + $0x40] sm:$0xff]
      %v746 = vld [vmem:[%s736 + $0x48] sm:$0xff]
      %v747 = vld [vmem:[%s736 + $0x50] sm:$0xff]
      %v748 = vld [vmem:[%s736 + $0x58] sm:$0xff]
      %v749 = vld [vmem:[%s736 + $0x60] sm:$0xff]
      %v750 = vld [vmem:[%s736 + $0x68] sm:$0xff]
      %v751 = vld [vmem:[%s736 + $0x70] sm:$0xff]
      %v752 = vld [vmem:[%s736 + $0x78] sm:$0xff]
      %v753 = vld [vmem:[%s736 + $0x80] sm:$0xff]
      %v754 = vld [vmem:[%s736 + $0x88] sm:$0xff]
      %v758 = vrot.slane %v639, 1
      %v759 = vrot.slane %v641, 1
      %v760 = vsel %vm386, %v758, %v759
      %v761 = vrot.slane %v640, 1
      %v762 = vrot.slane %v642, 1
      %v763 = vsel %vm386, %v761, %v762
      %v765 = vsel %vm394, %v763, 0
      %767 = vmatprep.subr.mxu0 0.0
      %768 = vmatpush1.msra.mxu0 %v737
      %769 = vmatprep.subr.mxu0 0.0
      %770 = vmatpush1.msra.mxu0 %v738
      %771 = vmatprep.subr.mxu0 0.0
      %772 = vmatpush1.msra.mxu0 %v739
      %773 = vmatprep.subr.mxu0 0.0
      %774 = vmatpush1.msra.mxu0 %v740
      %775 = vmatprep.subr.mxu0 0.0
      %776 = vmatpush1.msra.mxu0 %v741
      %777 = vmatprep.subr.mxu0 0.0
      %778 = vmatpush1.msra.mxu0 %v742
      %779 = vmatprep.subr.mxu0 0.0
      %780 = vmatpush1.msra.mxu0 %v743
      %781 = vmatprep.subr.mxu0 0.0
      %782 = vmatpush1.msra.mxu0 %v744
      %783 = vmatprep.subr.mxu0 0.0
      %784 = vmatpush1.msra.mxu0 %v745
      %785 = vmatprep.subr.mxu0 0.0
      %786 = vmatpush1.msra.mxu0 %v746
      %787 = vmatprep.subr.mxu0 0.0
      %788 = vmatpush1.msra.mxu0 %v747
      %789 = vmatprep.subr.mxu0 0.0
      %790 = vmatpush1.msra.mxu0 %v748
      %791 = vmatprep.subr.mxu0 0.0
      %792 = vmatpush1.msra.mxu0 %v749
      %793 = vmatprep.subr.mxu0 0.0
      %794 = vmatpush1.msra.mxu0 %v750
      %795 = vmatprep.subr.mxu0 0.0
      %796 = vmatpush1.msra.mxu0 %v751
      %797 = vmatprep.subr.mxu0 0.0
      %798 = vmatpush1.msra.mxu0 %v752
      %799 = vmatprep.subr.mxu0 0.0
      %800 = vmatpush1.msra.mxu0 %v753
      %801 = vmatprep.subr.mxu0 0.0
      %802 = vmatpush1.msra.mxu0 %v754
      %803 = vmatprep.subr.mxu0 0.0
      %804 = vmatpush1.msra.mxu0 0.0
      %805 = vmatprep.subr.mxu0 0.0
      %806 = vmatpush1.msra.mxu0 0.0
      %807 = vmatprep.subr.mxu0 0.0
      %808 = vmatpush1.msra.mxu0 0.0
      %809 = vmatprep.subr.mxu0 0.0
      %810 = vmatpush1.msra.mxu0 0.0
      %811 = vmatprep.subr.mxu0 0.0
      %812 = vmatpush1.msra.mxu0 0.0
      %813 = vmatprep.subr.mxu0 0.0
      %814 = vmatpush1.msra.mxu0 0.0
      %815 = vmatprep.subr.mxu0 0.0
      %816 = vmatpush1.msra.mxu0 0.0
      %817 = vmatprep.subr.mxu0 0.0
      %818 = vmatpush1.msra.mxu0 0.0
      %819 = vmatprep.subr.mxu0 0.0
      %820 = vmatpush1.msra.mxu0 0.0
      %821 = vmatprep.subr.mxu0 0.0
      %822 = vmatpush1.msra.mxu0 0.0
      %823 = vmatprep.subr.mxu0 0.0
      %824 = vmatpush1.msra.mxu0 0.0
      %825 = vmatprep.subr.mxu0 0.0
      %826 = vmatpush1.msra.mxu0 0.0
      %827 = vmatprep.subr.mxu0 0.0
      %828 = vmatpush1.msra.mxu0 0.0
      %829 = vmatprep.subr.mxu0 0.0
      %830 = vmatpush1.msra.mxu0 0.0
      %831 = vmatprep.mubr.f32.mxu0 %v765
      %832 = vmatmul.mubr.f32.gmra.mrb[0].mxu0 %v760
      %v833 = vpop.f32.mrb[0].mxu0
      %v834 = vadd.f32 0.0, %v833
      %v835 = vpop.f32.mrb[0].mxu0
      %836 = vdwg.mxu0
      %v837 = vadd.f32 %v735, %v834
      %s838 = scalar_lea.vmem %s3, 720
      %v839 = vld [vmem:[%s838] sm:$0xff]
      %v840 = vld [vmem:[%s838 + $0x8] sm:$0xff]
      %v841 = vld [vmem:[%s838 + $0x10] sm:$0xff]
      %v842 = vld [vmem:[%s838 + $0x18] sm:$0xff]
      %v843 = vld [vmem:[%s838 + $0x20] sm:$0xff]
      %v844 = vld [vmem:[%s838 + $0x28] sm:$0xff]
      %v845 = vld [vmem:[%s838 + $0x30] sm:$0xff]
      %v846 = vld [vmem:[%s838 + $0x38] sm:$0xff]
      %v847 = vld [vmem:[%s838 + $0x40] sm:$0xff]
      %v848 = vld [vmem:[%s838 + $0x48] sm:$0xff]
      %v849 = vld [vmem:[%s838 + $0x50] sm:$0xff]
      %v850 = vld [vmem:[%s838 + $0x58] sm:$0xff]
      %v851 = vld [vmem:[%s838 + $0x60] sm:$0xff]
      %v852 = vld [vmem:[%s838 + $0x68] sm:$0xff]
      %v853 = vld [vmem:[%s838 + $0x70] sm:$0xff]
      %v854 = vld [vmem:[%s838 + $0x78] sm:$0xff]
      %v855 = vld [vmem:[%s838 + $0x80] sm:$0xff]
      %v856 = vld [vmem:[%s838 + $0x88] sm:$0xff]
      %v857 = vrot.slane %v639, 2
      %v858 = vrot.slane %v641, 2
      %v859 = vsel %vm558, %v857, %v858
      %v860 = vrot.slane %v640, 2
      %v861 = vrot.slane %v642, 2
      %v862 = vsel %vm558, %v860, %v861
      %v864 = vsel %vm394, %v862, 0
      %866 = vmatprep.subr.mxu0 0.0
      %867 = vmatpush1.msra.mxu0 %v839
      %868 = vmatprep.subr.mxu0 0.0
      %869 = vmatpush1.msra.mxu0 %v840
      %870 = vmatprep.subr.mxu0 0.0
      %871 = vmatpush1.msra.mxu0 %v841
      %872 = vmatprep.subr.mxu0 0.0
      %873 = vmatpush1.msra.mxu0 %v842
      %874 = vmatprep.subr.mxu0 0.0
      %875 = vmatpush1.msra.mxu0 %v843
      %876 = vmatprep.subr.mxu0 0.0
      %877 = vmatpush1.msra.mxu0 %v844
      %878 = vmatprep.subr.mxu0 0.0
      %879 = vmatpush1.msra.mxu0 %v845
      %880 = vmatprep.subr.mxu0 0.0
      %881 = vmatpush1.msra.mxu0 %v846
      %882 = vmatprep.subr.mxu0 0.0
      %883 = vmatpush1.msra.mxu0 %v847
      %884 = vmatprep.subr.mxu0 0.0
      %885 = vmatpush1.msra.mxu0 %v848
      %886 = vmatprep.subr.mxu0 0.0
      %887 = vmatpush1.msra.mxu0 %v849
      %888 = vmatprep.subr.mxu0 0.0
      %889 = vmatpush1.msra.mxu0 %v850
      %890 = vmatprep.subr.mxu0 0.0
      %891 = vmatpush1.msra.mxu0 %v851
      %892 = vmatprep.subr.mxu0 0.0
      %893 = vmatpush1.msra.mxu0 %v852
      %894 = vmatprep.subr.mxu0 0.0
      %895 = vmatpush1.msra.mxu0 %v853
      %896 = vmatprep.subr.mxu0 0.0
      %897 = vmatpush1.msra.mxu0 %v854
      %898 = vmatprep.subr.mxu0 0.0
      %899 = vmatpush1.msra.mxu0 %v855
      %900 = vmatprep.subr.mxu0 0.0
      %901 = vmatpush1.msra.mxu0 %v856
      %902 = vmatprep.subr.mxu0 0.0
      %903 = vmatpush1.msra.mxu0 0.0
      %904 = vmatprep.subr.mxu0 0.0
      %905 = vmatpush1.msra.mxu0 0.0
      %906 = vmatprep.subr.mxu0 0.0
      %907 = vmatpush1.msra.mxu0 0.0
      %908 = vmatprep.subr.mxu0 0.0
      %909 = vmatpush1.msra.mxu0 0.0
      %910 = vmatprep.subr.mxu0 0.0
      %911 = vmatpush1.msra.mxu0 0.0
      %912 = vmatprep.subr.mxu0 0.0
      %913 = vmatpush1.msra.mxu0 0.0
      %914 = vmatprep.subr.mxu0 0.0
      %915 = vmatpush1.msra.mxu0 0.0
      %916 = vmatprep.subr.mxu0 0.0
      %917 = vmatpush1.msra.mxu0 0.0
      %918 = vmatprep.subr.mxu0 0.0
      %919 = vmatpush1.msra.mxu0 0.0
      %920 = vmatprep.subr.mxu0 0.0
      %921 = vmatpush1.msra.mxu0 0.0
      %922 = vmatprep.subr.mxu0 0.0
      %923 = vmatpush1.msra.mxu0 0.0
      %924 = vmatprep.subr.mxu0 0.0
      %925 = vmatpush1.msra.mxu0 0.0
      %926 = vmatprep.subr.mxu0 0.0
      %927 = vmatpush1.msra.mxu0 0.0
      %928 = vmatprep.subr.mxu0 0.0
      %929 = vmatpush1.msra.mxu0 0.0
      %930 = vmatprep.mubr.f32.mxu0 %v864
      %931 = vmatmul.mubr.f32.gmra.mrb[0].mxu0 %v859
      %v932 = vpop.f32.mrb[0].mxu0
      %v933 = vadd.f32 0.0, %v932
      %v934 = vpop.f32.mrb[0].mxu0
      %935 = vdwg.mxu0
      %v936 = vadd.f32 %v837, %v933
      %v937 = vld [vmem:[%s331] sm:$0xff]
      %v938 = vld [vmem:[%s331 + $0x8] sm:$0xff]
      %v939 = vld [vmem:[%s331 + $0x10] sm:$0x3]
      %v940 = vld [vmem:[%s331 + $0x18] sm:$0x3]
      %s941 = scalar_lea.vmem %s3, 864
      %v942 = vld [vmem:[%s941] sm:$0xff]
      %v943 = vld [vmem:[%s941 + $0x8] sm:$0xff]
      %v944 = vld [vmem:[%s941 + $0x10] sm:$0xff]
      %v945 = vld [vmem:[%s941 + $0x18] sm:$0xff]
      %v946 = vld [vmem:[%s941 + $0x20] sm:$0xff]
      %v947 = vld [vmem:[%s941 + $0x28] sm:$0xff]
      %v948 = vld [vmem:[%s941 + $0x30] sm:$0xff]
      %v949 = vld [vmem:[%s941 + $0x38] sm:$0xff]
      %v950 = vld [vmem:[%s941 + $0x40] sm:$0xff]
      %v951 = vld [vmem:[%s941 + $0x48] sm:$0xff]
      %v952 = vld [vmem:[%s941 + $0x50] sm:$0xff]
      %v953 = vld [vmem:[%s941 + $0x58] sm:$0xff]
      %v954 = vld [vmem:[%s941 + $0x60] sm:$0xff]
      %v955 = vld [vmem:[%s941 + $0x68] sm:$0xff]
      %v956 = vld [vmem:[%s941 + $0x70] sm:$0xff]
      %v957 = vld [vmem:[%s941 + $0x78] sm:$0xff]
      %v958 = vld [vmem:[%s941 + $0x80] sm:$0xff]
      %v959 = vld [vmem:[%s941 + $0x88] sm:$0xff]
      %v961 = vsel %vm394, %v938, 0
      %963 = vmatprep.subr.mxu0 0.0
      %964 = vmatpush1.msra.mxu0 %v942
      %965 = vmatprep.subr.mxu0 0.0
      %966 = vmatpush1.msra.mxu0 %v943
      %967 = vmatprep.subr.mxu0 0.0
      %968 = vmatpush1.msra.mxu0 %v944
      %969 = vmatprep.subr.mxu0 0.0
      %970 = vmatpush1.msra.mxu0 %v945
      %971 = vmatprep.subr.mxu0 0.0
      %972 = vmatpush1.msra.mxu0 %v946
      %973 = vmatprep.subr.mxu0 0.0
      %974 = vmatpush1.msra.mxu0 %v947
      %975 = vmatprep.subr.mxu0 0.0
      %976 = vmatpush1.msra.mxu0 %v948
      %977 = vmatprep.subr.mxu0 0.0
      %978 = vmatpush1.msra.mxu0 %v949
      %979 = vmatprep.subr.mxu0 0.0
      %980 = vmatpush1.msra.mxu0 %v950
      %981 = vmatprep.subr.mxu0 0.0
      %982 = vmatpush1.msra.mxu0 %v951
      %983 = vmatprep.subr.mxu0 0.0
      %984 = vmatpush1.msra.mxu0 %v952
      %985 = vmatprep.subr.mxu0 0.0
      %986 = vmatpush1.msra.mxu0 %v953
      %987 = vmatprep.subr.mxu0 0.0
      %988 = vmatpush1.msra.mxu0 %v954
      %989 = vmatprep.subr.mxu0 0.0
      %990 = vmatpush1.msra.mxu0 %v955
      %991 = vmatprep.subr.mxu0 0.0
      %992 = vmatpush1.msra.mxu0 %v956
      %993 = vmatprep.subr.mxu0 0.0
      %994 = vmatpush1.msra.mxu0 %v957
      %995 = vmatprep.subr.mxu0 0.0
      %996 = vmatpush1.msra.mxu0 %v958
      %997 = vmatprep.subr.mxu0 0.0
      %998 = vmatpush1.msra.mxu0 %v959
      %999 = vmatprep.subr.mxu0 0.0
      %1000 = vmatpush1.msra.mxu0 0.0
      %1001 = vmatprep.subr.mxu0 0.0
      %1002 = vmatpush1.msra.mxu0 0.0
      %1003 = vmatprep.subr.mxu0 0.0
      %1004 = vmatpush1.msra.mxu0 0.0
      %1005 = vmatprep.subr.mxu0 0.0
      %1006 = vmatpush1.msra.mxu0 0.0
      %1007 = vmatprep.subr.mxu0 0.0
      %1008 = vmatpush1.msra.mxu0 0.0
      %1009 = vmatprep.subr.mxu0 0.0
      %1010 = vmatpush1.msra.mxu0 0.0
      %1011 = vmatprep.subr.mxu0 0.0
      %1012 = vmatpush1.msra.mxu0 0.0
      %1013 = vmatprep.subr.mxu0 0.0
      %1014 = vmatpush1.msra.mxu0 0.0
      %1015 = vmatprep.subr.mxu0 0.0
      %1016 = vmatpush1.msra.mxu0 0.0
      %1017 = vmatprep.subr.mxu0 0.0
      %1018 = vmatpush1.msra.mxu0 0.0
      %1019 = vmatprep.subr.mxu0 0.0
      %1020 = vmatpush1.msra.mxu0 0.0
      %1021 = vmatprep.subr.mxu0 0.0
      %1022 = vmatpush1.msra.mxu0 0.0
      %1023 = vmatprep.subr.mxu0 0.0
      %1024 = vmatpush1.msra.mxu0 0.0
      %1025 = vmatprep.subr.mxu0 0.0
      %1026 = vmatpush1.msra.mxu0 0.0
      %1027 = vmatprep.mubr.f32.mxu0 %v961
      %1028 = vmatmul.mubr.f32.gmra.mrb[0].mxu0 %v937
      %v1029 = vpop.f32.mrb[0].mxu0
      %v1030 = vadd.f32 0.0, %v1029
      %v1031 = vpop.f32.mrb[0].mxu0
      %1032 = vdwg.mxu0
      %v1033 = vadd.f32 %v936, %v1030
      %s1034 = scalar_lea.vmem %s3, 1008
      %v1035 = vld [vmem:[%s1034] sm:$0xff]
      %v1036 = vld [vmem:[%s1034 + $0x8] sm:$0xff]
      %v1037 = vld [vmem:[%s1034 + $0x10] sm:$0xff]
      %v1038 = vld [vmem:[%s1034 + $0x18] sm:$0xff]
      %v1039 = vld [vmem:[%s1034 + $0x20] sm:$0xff]
      %v1040 = vld [vmem:[%s1034 + $0x28] sm:$0xff]
      %v1041 = vld [vmem:[%s1034 + $0x30] sm:$0xff]
      %v1042 = vld [vmem:[%s1034 + $0x38] sm:$0xff]
      %v1043 = vld [vmem:[%s1034 + $0x40] sm:$0xff]
      %v1044 = vld [vmem:[%s1034 + $0x48] sm:$0xff]
      %v1045 = vld [vmem:[%s1034 + $0x50] sm:$0xff]
      %v1046 = vld [vmem:[%s1034 + $0x58] sm:$0xff]
      %v1047 = vld [vmem:[%s1034 + $0x60] sm:$0xff]
      %v1048 = vld [vmem:[%s1034 + $0x68] sm:$0xff]
      %v1049 = vld [vmem:[%s1034 + $0x70] sm:$0xff]
      %v1050 = vld [vmem:[%s1034 + $0x78] sm:$0xff]
      %v1051 = vld [vmem:[%s1034 + $0x80] sm:$0xff]
      %v1052 = vld [vmem:[%s1034 + $0x88] sm:$0xff]
      %v1056 = vrot.slane %v937, 1
      %v1057 = vrot.slane %v939, 1
      %v1058 = vsel %vm386, %v1056, %v1057
      %v1059 = vrot.slane %v938, 1
      %v1060 = vrot.slane %v940, 1
      %v1061 = vsel %vm386, %v1059, %v1060
      %v1063 = vsel %vm394, %v1061, 0
      %1065 = vmatprep.subr.mxu0 0.0
      %1066 = vmatpush1.msra.mxu0 %v1035
      %1067 = vmatprep.subr.mxu0 0.0
      %1068 = vmatpush1.msra.mxu0 %v1036
      %1069 = vmatprep.subr.mxu0 0.0
      %1070 = vmatpush1.msra.mxu0 %v1037
      %1071 = vmatprep.subr.mxu0 0.0
      %1072 = vmatpush1.msra.mxu0 %v1038
      %1073 = vmatprep.subr.mxu0 0.0
      %1074 = vmatpush1.msra.mxu0 %v1039
      %1075 = vmatprep.subr.mxu0 0.0
      %1076 = vmatpush1.msra.mxu0 %v1040
      %1077 = vmatprep.subr.mxu0 0.0
      %1078 = vmatpush1.msra.mxu0 %v1041
      %1079 = vmatprep.subr.mxu0 0.0
      %1080 = vmatpush1.msra.mxu0 %v1042
      %1081 = vmatprep.subr.mxu0 0.0
      %1082 = vmatpush1.msra.mxu0 %v1043
      %1083 = vmatprep.subr.mxu0 0.0
      %1084 = vmatpush1.msra.mxu0 %v1044
      %1085 = vmatprep.subr.mxu0 0.0
      %1086 = vmatpush1.msra.mxu0 %v1045
      %1087 = vmatprep.subr.mxu0 0.0
      %1088 = vmatpush1.msra.mxu0 %v1046
      %1089 = vmatprep.subr.mxu0 0.0
      %1090 = vmatpush1.msra.mxu0 %v1047
      %1091 = vmatprep.subr.mxu0 0.0
      %1092 = vmatpush1.msra.mxu0 %v1048
      %1093 = vmatprep.subr.mxu0 0.0
      %1094 = vmatpush1.msra.mxu0 %v1049
      %1095 = vmatprep.subr.mxu0 0.0
      %1096 = vmatpush1.msra.mxu0 %v1050
      %1097 = vmatprep.subr.mxu0 0.0
      %1098 = vmatpush1.msra.mxu0 %v1051
      %1099 = vmatprep.subr.mxu0 0.0
      %1100 = vmatpush1.msra.mxu0 %v1052
      %1101 = vmatprep.subr.mxu0 0.0
      %1102 = vmatpush1.msra.mxu0 0.0
      %1103 = vmatprep.subr.mxu0 0.0
      %1104 = vmatpush1.msra.mxu0 0.0
      %1105 = vmatprep.subr.mxu0 0.0
      %1106 = vmatpush1.msra.mxu0 0.0
      %1107 = vmatprep.subr.mxu0 0.0
      %1108 = vmatpush1.msra.mxu0 0.0
      %1109 = vmatprep.subr.mxu0 0.0
      %1110 = vmatpush1.msra.mxu0 0.0
      %1111 = vmatprep.subr.mxu0 0.0
      %1112 = vmatpush1.msra.mxu0 0.0
      %1113 = vmatprep.subr.mxu0 0.0
      %1114 = vmatpush1.msra.mxu0 0.0
      %1115 = vmatprep.subr.mxu0 0.0
      %1116 = vmatpush1.msra.mxu0 0.0
      %1117 = vmatprep.subr.mxu0 0.0
      %1118 = vmatpush1.msra.mxu0 0.0
      %1119 = vmatprep.subr.mxu0 0.0
      %1120 = vmatpush1.msra.mxu0 0.0
      %1121 = vmatprep.subr.mxu0 0.0
      %1122 = vmatpush1.msra.mxu0 0.0
      %1123 = vmatprep.subr.mxu0 0.0
      %1124 = vmatpush1.msra.mxu0 0.0
      %1125 = vmatprep.subr.mxu0 0.0
      %1126 = vmatpush1.msra.mxu0 0.0
      %1127 = vmatprep.subr.mxu0 0.0
      %1128 = vmatpush1.msra.mxu0 0.0
      %1129 = vmatprep.mubr.f32.mxu0 %v1063
      %1130 = vmatmul.mubr.f32.gmra.mrb[0].mxu0 %v1058
      %v1131 = vpop.f32.mrb[0].mxu0
      %v1132 = vadd.f32 0.0, %v1131
      %v1133 = vpop.f32.mrb[0].mxu0
      %1134 = vdwg.mxu0
      %v1135 = vadd.f32 %v1033, %v1132
      %s1136 = scalar_lea.vmem %s3, 1152
      %v1137 = vld [vmem:[%s1136] sm:$0xff]
      %v1138 = vld [vmem:[%s1136 + $0x8] sm:$0xff]
      %v1139 = vld [vmem:[%s1136 + $0x10] sm:$0xff]
      %v1140 = vld [vmem:[%s1136 + $0x18] sm:$0xff]
      %v1141 = vld [vmem:[%s1136 + $0x20] sm:$0xff]
      %v1142 = vld [vmem:[%s1136 + $0x28] sm:$0xff]
      %v1143 = vld [vmem:[%s1136 + $0x30] sm:$0xff]
      %v1144 = vld [vmem:[%s1136 + $0x38] sm:$0xff]
      %v1145 = vld [vmem:[%s1136 + $0x40] sm:$0xff]
      %v1146 = vld [vmem:[%s1136 + $0x48] sm:$0xff]
      %v1147 = vld [vmem:[%s1136 + $0x50] sm:$0xff]
      %v1148 = vld [vmem:[%s1136 + $0x58] sm:$0xff]
      %v1149 = vld [vmem:[%s1136 + $0x60] sm:$0xff]
      %v1150 = vld [vmem:[%s1136 + $0x68] sm:$0xff]
      %v1151 = vld [vmem:[%s1136 + $0x70] sm:$0xff]
      %v1152 = vld [vmem:[%s1136 + $0x78] sm:$0xff]
      %v1153 = vld [vmem:[%s1136 + $0x80] sm:$0xff]
      %v1154 = vld [vmem:[%s1136 + $0x88] sm:$0xff]
      %v1155 = vrot.slane %v937, 2
      %v1156 = vrot.slane %v939, 2
      %v1157 = vsel %vm558, %v1155, %v1156
      %v1158 = vrot.slane %v938, 2
      %v1159 = vrot.slane %v940, 2
      %v1160 = vsel %vm558, %v1158, %v1159
      %v1162 = vsel %vm394, %v1160, 0
      %1164 = vmatprep.subr.mxu0 0.0
      %1165 = vmatpush1.msra.mxu0 %v1137
      %1166 = vmatprep.subr.mxu0 0.0
      %1167 = vmatpush1.msra.mxu0 %v1138
      %1168 = vmatprep.subr.mxu0 0.0
      %1169 = vmatpush1.msra.mxu0 %v1139
      %1170 = vmatprep.subr.mxu0 0.0
      %1171 = vmatpush1.msra.mxu0 %v1140
      %1172 = vmatprep.subr.mxu0 0.0
      %1173 = vmatpush1.msra.mxu0 %v1141
      %1174 = vmatprep.subr.mxu0 0.0
      %1175 = vmatpush1.msra.mxu0 %v1142
      %1176 = vmatprep.subr.mxu0 0.0
      %1177 = vmatpush1.msra.mxu0 %v1143
      %1178 = vmatprep.subr.mxu0 0.0
      %1179 = vmatpush1.msra.mxu0 %v1144
      %1180 = vmatprep.subr.mxu0 0.0
      %1181 = vmatpush1.msra.mxu0 %v1145
      %1182 = vmatprep.subr.mxu0 0.0
      %1183 = vmatpush1.msra.mxu0 %v1146
      %1184 = vmatprep.subr.mxu0 0.0
      %1185 = vmatpush1.msra.mxu0 %v1147
      %1186 = vmatprep.subr.mxu0 0.0
      %1187 = vmatpush1.msra.mxu0 %v1148
      %1188 = vmatprep.subr.mxu0 0.0
      %1189 = vmatpush1.msra.mxu0 %v1149
      %1190 = vmatprep.subr.mxu0 0.0
      %1191 = vmatpush1.msra.mxu0 %v1150
      %1192 = vmatprep.subr.mxu0 0.0
      %1193 = vmatpush1.msra.mxu0 %v1151
      %1194 = vmatprep.subr.mxu0 0.0
      %1195 = vmatpush1.msra.mxu0 %v1152
      %1196 = vmatprep.subr.mxu0 0.0
      %1197 = vmatpush1.msra.mxu0 %v1153
      %1198 = vmatprep.subr.mxu0 0.0
      %1199 = vmatpush1.msra.mxu0 %v1154
      %1200 = vmatprep.subr.mxu0 0.0
      %1201 = vmatpush1.msra.mxu0 0.0
      %1202 = vmatprep.subr.mxu0 0.0
      %1203 = vmatpush1.msra.mxu0 0.0
      %1204 = vmatprep.subr.mxu0 0.0
      %1205 = vmatpush1.msra.mxu0 0.0
      %1206 = vmatprep.subr.mxu0 0.0
      %1207 = vmatpush1.msra.mxu0 0.0
      %1208 = vmatprep.subr.mxu0 0.0
      %1209 = vmatpush1.msra.mxu0 0.0
      %1210 = vmatprep.subr.mxu0 0.0
      %1211 = vmatpush1.msra.mxu0 0.0
      %1212 = vmatprep.subr.mxu0 0.0
      %1213 = vmatpush1.msra.mxu0 0.0
      %1214 = vmatprep.subr.mxu0 0.0
      %1215 = vmatpush1.msra.mxu0 0.0
      %1216 = vmatprep.subr.mxu0 0.0
      %1217 = vmatpush1.msra.mxu0 0.0
      %1218 = vmatprep.subr.mxu0 0.0
      %1219 = vmatpush1.msra.mxu0 0.0
      %1220 = vmatprep.subr.mxu0 0.0
      %1221 = vmatpush1.msra.mxu0 0.0
      %1222 = vmatprep.subr.mxu0 0.0
      %1223 = vmatpush1.msra.mxu0 0.0
      %1224 = vmatprep.subr.mxu0 0.0
      %1225 = vmatpush1.msra.mxu0 0.0
      %1226 = vmatprep.subr.mxu0 0.0
      %1227 = vmatpush1.msra.mxu0 0.0
      %1228 = vmatprep.mubr.f32.mxu0 %v1162
      %1229 = vmatmul.mubr.f32.gmra.mrb[0].mxu0 %v1157
      %v1230 = vpop.f32.mrb[0].mxu0
      %v1231 = vadd.f32 0.0, %v1230
      %v1232 = vpop.f32.mrb[0].mxu0
      %1233 = vdwg.mxu0
      %v1234 = vadd.f32 %v1135, %v1231
      %v1235 = vld [vmem:[%s4] sm:$0x1]
      %v1237 = vlaneseq
      %v1238 = vshrl.u32 %v1237, 7
      %v1239 = vsub.s32 0, %v1238
      %v1240 = vrot.slane %v1235, %v1239
      %v1242 = vadd.f32 %v1234, %v1240
      %v1243 = vmax.f32 %v1242, 0.0
      %1244 = vst [vmem:[%s340] sm:$0xff] %v1243
      %p1245 = scmp.lt.s32.totalorder %s20, 1
      %s1246 = scalar_select %p1245, %s20, 1
      %p1247 = scmp.lt.s32.totalorder %s21, 7
      %s1248 = scalar_select %p1247, %s21, 7
      %s1249 = smul.addr %s1246, 8
      %s1250 = sadd.s32 %s1248, %s1249
      %s1251 = smul.addr %s1250, 8
      %s1252 = scalar_lea.vmem %s5, %s1251
      // Predicated region
      $region41: #{residual_block3d_forward.2} parent=39 // pred_check
        %p1253 = pneg %p178
      $region42: #{residual_block3d_forward.2} parent=39 // pred_check_branch
        %1255 = sbr.rel (%p1253) target = $region44
      $region43: #{residual_block3d_forward.2} parent=39 // pred_region
        _
      $region44: #{residual_block3d_forward.2} parent=39 // pred_fallthru
        _
    $region40: #{residual_block3d_forward.2} parent=5 // pred_fallthru
      _
    %p1256 = scmp.le.s32.totalorder 2, %s11
    // Predicated region
    $region45: #{residual_block3d_forward.2} parent=5 // pred_check
      %p1257 = pneg %p1256
    $region46: #{residual_block3d_forward.2} parent=5 // pred_check_branch
      %1259 = sbr.rel (%p1257) target = $region48
    $region47: #{residual_block3d_forward.2} parent=5 // pred_region
      %s1260 = ssub.s32 %s11, 2
      // Predicated region
      $region49: #{residual_block3d_forward.2} parent=47 // pred_check
        %p1261 = pneg %p184
      $region50: #{residual_block3d_forward.2} parent=47 // pred_check_branch
        %1263 = sbr.rel (%p1261) target = $region52
      $region51: #{residual_block3d_forward.2} parent=47 // pred_region
        %p1264 = scmp.lt.s32.totalorder %s22, 1
        %s1265 = scalar_select %p1264, %s22, 1
        %p1266 = scmp.lt.s32.totalorder %s23, 7
        %s1267 = scalar_select %p1266, %s23, 7
        %s1268 = smul.addr %s1265, 8
        %s1269 = sadd.s32 %s1267, %s1268
        %s1270 = smul.addr %s1269, 8
        %s1271 = scalar_lea.vmem %s5, %s1270
      $region52: #{residual_block3d_forward.2} parent=47 // pred_fallthru
        _
    $region48: #{residual_block3d_forward.2} parent=5 // pred_fallthru
      _
  $region6: #{residual_block3d_forward.2} parent=0 // loop_footer
    %s15 = sadd.s32 1, %s11
  $region7: #{residual_block3d_forward.2} parent=0 // loop_footer_branch
    %10 = sbr.rel target = $region3
  $region8: #{residual_block3d_forward.2} parent=0 // loop_exit
    _

// kernel: residual_block3d_forward.3
$region0: #{residual_block3d_forward.3}
  #allocation0 [shape = 'u32[]', space=smem, size = 0x4, offset = 0x4, fixed_abs, tag = 'smem constant byte address 0x4 - core index']
  #allocation1 [shape = 'u32[144,128]{1,0:T(1,128)}', space=vmem, size = 0x12000, scoped, tag = 'internal scratch']
  %s0 = inlined_call_operand.vmem [shape: f32[2,10,10,144], index: 0, kind: input, shape index: {}, may-alias: {0,1,2}]
  %s1 = inlined_call_operand.vmem [shape: f32[2,10,10,144], index: 1, kind: input, shape index: {}, may-alias: {0,1,2}]
  %s2 = inlined_call_operand.vmem [shape: f32[2,10,10,144], index: 2, kind: input, shape index: {}, may-alias: {0,1,2}]
  %s3 = inlined_call_operand.vmem [shape: f32[3,3,144,128], index: 3, kind: input, shape index: {}]
  %s4 = inlined_call_operand.vmem [shape: f32[1,128], index: 4, kind: input, shape index: {}]
  %s5 = inlined_call_operand.vmem [shape: f32[2,8,8,128], index: 5, kind: input, shape index: {}]
  %s6 = inlined_call_operand.vmem [shape: f32[2,8,8,128], index: 6, kind: output, shape index: {}]
  %s7 = sld [smem:[#allocation0]]
  $region57: #{residual_block3d_forward.3} parent=0
    _
  %s9 = ssub.s32 1, %s7
  %s10 = scalar_select 0, %s9, %s7
  loop: start=0, step=1, limit=18
  $region2: #{residual_block3d_forward.3} parent=0 // loop_pre_header
    _
  $region3: #{residual_block3d_forward.3} parent=0 // loop_header
    %s12 = sphi 0, %s16
    %p13 = scmp.ge.s32.totalorder %s12, 18
    %s19 = sphi 0, %s31
    %s20 = sphi 0, %s27
    %s21 = sphi 0, %s19
    %s22 = sphi 0, %s20
    %s23 = sphi 0, %s21
    %s24 = sphi 0, %s22
    %s36 = sphi 0, %s38
    %s39 = sphi 0, %s36
    %s40 = sphi 0, %s39
    %s56 = sphi 0, %s40
    %s66 = sphi 0, %s68
    %s69 = sphi 0, %s66
    %s70 = sphi 0, %s69
    %s86 = sphi 0, %s70
    %s96 = sphi 0, %s98
    %s99 = sphi 0, %s96
    %s100 = sphi 0, %s99
    %s116 = sphi 0, %s100
    %s120 = sphi 0, %s120
    %s122 = sphi 0, %s120
    %s123 = sphi 0, %s122
    %s137 = sphi 0, %s123
    %s141 = sphi 0, %s141
    %s143 = sphi 0, %s141
    %s144 = sphi 0, %s143
    %s158 = sphi 0, %s144
    %s166 = sphi 0, %s168
    %s169 = sphi 0, %s166
    %s170 = sphi 0, %s169
    %s186 = sphi 0, %s170
    %s194 = sphi 0, %s196
    %s197 = sphi 0, %s194
    %s198 = sphi 0, %s197
    %s214 = sphi 0, %s198
  $region4: #{residual_block3d_forward.3} parent=0 // loop_header_branch
    %15 = sbr.rel (%p13) target = $region8
  $region5: #{residual_block3d_forward.3} parent=0 // loop_body
    %s17 = ssub.s32 %s12, 1
    %s18 = ssub.s32 %s12, 2
    %s25 = sadd.s32 1, %s20
    %p26 = scmp.ge.s32.totalorder %s25, 8
    %s27 = scalar_select %p26, 0, %s25
    %s28 = sadd.s32 1, %s19
    %s29 = scalar_select %p26, %s28, %s19
    %p30 = scmp.ge.s32.totalorder %s29, 2
    %s31 = scalar_select %p30, 0, %s29
    %s32 = ssub.s32 %s19, %s31
    %s33 = ssub.s32 %s20, %s27
    %s34 = sor.u32 %s32, %s33
    %p35 = scmp.eq.s32.totalorder %s34, 0
    %s37 = sadd.s32 %s36, 1
    %s38 = scalar_select %p35, %s36, %s37
    %p41 = pneg %p35
    %p42 = scmp.eq.s32.totalorder %s12, 15
    %p43 = por %p41, %p42
    %p44 = scmp.ne.s32.totalorder %s36, %s39
    %p45 = scmp.eq.s32.totalorder %s12, 0
    %p46 = por %p44, %p45
    %p47 = scmp.ne.s32.totalorder %s36, %s39
    %p48 = scmp.eq.s32.totalorder %s17, 15
    %p49 = por %p47, %p48
    %p50 = scmp.ne.s32.totalorder %s39, %s40
    %p51 = scmp.eq.s32.totalorder %s17, 0
    %p52 = por %p50, %p51
    %p53 = scmp.ne.s32.totalorder %s39, %s40
    %p54 = scmp.eq.s32.totalorder %s18, 15
    %p55 = por %p53, %p54
    %p57 = scmp.ne.s32.totalorder %s40, %s56
    %p58 = scmp.eq.s32.totalorder %s18, 0
    %p59 = por %p57, %p58
    %s60 = sadd.s32 %s20, 1
    %s61 = sadd.s32 %s27, 1
    %s62 = ssub.s32 %s19, %s31
    %s63 = ssub.s32 %s60, %s61
    %s64 = sor.u32 %s62, %s63
    %p65 = scmp.eq.s32.totalorder %s64, 0
    %s67 = sadd.s32 %s66, 1
    %s68 = scalar_select %p65, %s66, %s67
    %p71 = pneg %p65
    %p72 = scmp.eq.s32.totalorder %s12, 15
    %p73 = por %p71, %p72
    %p74 = scmp.ne.s32.totalorder %s66, %s69
    %p75 = scmp.eq.s32.totalorder %s12, 0
    %p76 = por %p74, %p75
    %p77 = scmp.ne.s32.totalorder %s66, %s69
    %p78 = scmp.eq.s32.totalorder %s17, 15
    %p79 = por %p77, %p78
    %p80 = scmp.ne.s32.totalorder %s69, %s70
    %p81 = scmp.eq.s32.totalorder %s17, 0
    %p82 = por %p80, %p81
    %p83 = scmp.ne.s32.totalorder %s69, %s70
    %p84 = scmp.eq.s32.totalorder %s18, 15
    %p85 = por %p83, %p84
    %p87 = scmp.ne.s32.totalorder %s70, %s86
    %p88 = scmp.eq.s32.totalorder %s18, 0
    %p89 = por %p87, %p88
    %s90 = sadd.s32 %s20, 2
    %s91 = sadd.s32 %s27, 2
    %s92 = ssub.s32 %s19, %s31
    %s93 = ssub.s32 %s90, %s91
    %s94 = sor.u32 %s92, %s93
    %p95 = scmp.eq.s32.totalorder %s94, 0
    %s97 = sadd.s32 %s96, 1
    %s98 = scalar_select %p95, %s96, %s97
    %p101 = pneg %p95
    %p102 = scmp.eq.s32.totalorder %s12, 15
    %p103 = por %p101, %p102
    %p104 = scmp.ne.s32.totalorder %s96, %s99
    %p105 = scmp.eq.s32.totalorder %s12, 0
    %p106 = por %p104, %p105
    %p107 = scmp.ne.s32.totalorder %s96, %s99
    %p108 = scmp.eq.s32.totalorder %s17, 15
    %p109 = por %p107, %p108
    %p110 = scmp.ne.s32.totalorder %s99, %s100
    %p111 = scmp.eq.s32.totalorder %s17, 0
    %p112 = por %p110, %p111
    %p113 = scmp.ne.s32.totalorder %s99, %s100
    %p114 = scmp.eq.s32.totalorder %s18, 15
    %p115 = por %p113, %p114
    %p117 = scmp.ne.s32.totalorder %s100, %s116
    %p118 = scmp.eq.s32.totalorder %s18, 0
    %p119 = por %p117, %p118
    %s121 = sadd.s32 %s120, 1
    %p124 = scmp.eq.s32.totalorder %s12, 15
    %p125 = scmp.ne.s32.totalorder %s120, %s122
    %p126 = scmp.eq.s32.totalorder %s12, 0
    %p127 = por %p125, %p126
    %p128 = scmp.ne.s32.totalorder %s120, %s122
    %p129 = scmp.eq.s32.totalorder %s17, 15
    %p130 = por %p128, %p129
    %p131 = scmp.ne.s32.totalorder %s122, %s123
    %p132 = scmp.eq.s32.totalorder %s17, 0
    %p133 = por %p131, %p132
    %p134 = scmp.ne.s32.totalorder %s122, %s123
    %p135 = scmp.eq.s32.totalorder %s18, 15
    %p136 = por %p134, %p135
    %p138 = scmp.ne.s32.totalorder %s123, %s137
    %p139 = scmp.eq.s32.totalorder %s18, 0
    %p140 = por %p138, %p139
    %s142 = sadd.s32 %s141, 1
    %p145 = scmp.eq.s32.totalorder %s12, 15
    %p146 = scmp.ne.s32.totalorder %s141, %s143
    %p147 = scmp.eq.s32.totalorder %s12, 0
    %p148 = por %p146, %p147
    %p149 = scmp.ne.s32.totalorder %s141, %s143
    %p150 = scmp.eq.s32.totalorder %s17, 15
    %p151 = por %p149, %p150
    %p152 = scmp.ne.s32.totalorder %s143, %s144
    %p153 = scmp.eq.s32.totalorder %s17, 0
    %p154 = por %p152, %p153
    %p155 = scmp.ne.s32.totalorder %s143, %s144
    %p156 = scmp.eq.s32.totalorder %s18, 15
    %p157 = por %p155, %p156
    %p159 = scmp.ne.s32.totalorder %s144, %s158
    %p160 = scmp.eq.s32.totalorder %s18, 0
    %p161 = por %p159, %p160
    %s162 = ssub.s32 %s19, %s31
    %s163 = ssub.s32 %s20, %s27
    %s164 = sor.u32 %s162, %s163
    %p165 = scmp.eq.s32.totalorder %s164, 0
    %s167 = sadd.s32 %s166, 1
    %s168 = scalar_select %p165, %s166, %s167
    %p171 = pneg %p165
    %p172 = scmp.eq.s32.totalorder %s12, 15
    %p173 = por %p171, %p172
    %p174 = scmp.ne.s32.totalorder %s166, %s169
    %p175 = scmp.eq.s32.totalorder %s12, 0
    %p176 = por %p174, %p175
    %p177 = scmp.ne.s32.totalorder %s166, %s169
    %p178 = scmp.eq.s32.totalorder %s17, 15
    %p179 = por %p177, %p178
    %p180 = scmp.ne.s32.totalorder %s169, %s170
    %p181 = scmp.eq.s32.totalorder %s17, 0
    %p182 = por %p180, %p181
    %p183 = scmp.ne.s32.totalorder %s169, %s170
    %p184 = scmp.eq.s32.totalorder %s18, 15
    %p185 = por %p183, %p184
    %p187 = scmp.ne.s32.totalorder %s170, %s186
    %p188 = scmp.eq.s32.totalorder %s18, 0
    %p189 = por %p187, %p188
    %s190 = ssub.s32 %s19, %s31
    %s191 = ssub.s32 %s20, %s27
    %s192 = sor.u32 %s190, %s191
    %p193 = scmp.eq.s32.totalorder %s192, 0
    %s195 = sadd.s32 %s194, 1
    %s196 = scalar_select %p193, %s194, %s195
    %p199 = pneg %p193
    %p200 = scmp.eq.s32.totalorder %s12, 15
    %p201 = por %p199, %p200
    %p202 = scmp.ne.s32.totalorder %s194, %s197
    %p203 = scmp.eq.s32.totalorder %s12, 0
    %p204 = por %p202, %p203
    %p205 = scmp.ne.s32.totalorder %s194, %s197
    %p206 = scmp.eq.s32.totalorder %s17, 15
    %p207 = por %p205, %p206
    %p208 = scmp.ne.s32.totalorder %s197, %s198
    %p209 = scmp.eq.s32.totalorder %s17, 0
    %p210 = por %p208, %p209
    %p211 = scmp.ne.s32.totalorder %s197, %s198
    %p212 = scmp.eq.s32.totalorder %s18, 15
    %p213 = por %p211, %p212
    %p215 = scmp.ne.s32.totalorder %s198, %s214
    %p216 = scmp.eq.s32.totalorder %s18, 0
    %p217 = por %p215, %p216
    %p218 = scmp.le.s32.totalorder 1, %s12
    %p219 = scmp.lt.s32.totalorder %s12, 17
    %p220 = pnand %p218, %p219
    %p221 = pneg %p220
    // Predicated region
    $region9: #{residual_block3d_forward.3} parent=5 // pred_check
      _
    $region10: #{residual_block3d_forward.3} parent=5 // pred_check_branch
      %223 = sbr.rel (%p220) target = $region12
    $region11: #{residual_block3d_forward.3} parent=5 // pred_region
      %s224 = ssub.s32 %s12, 1
      // Predicated region
      $region13: #{residual_block3d_forward.3} parent=11 // pred_check
        %p225 = pneg %p133
      $region14: #{residual_block3d_forward.3} parent=11 // pred_check_branch
        %227 = sbr.rel (%p225) target = $region16
      $region15: #{residual_block3d_forward.3} parent=11 // pred_region
        _
      $region16: #{residual_block3d_forward.3} parent=11 // pred_fallthru
        _
      // Predicated region
      $region17: #{residual_block3d_forward.3} parent=11 // pred_check
        %p228 = pneg %p154
      $region18: #{residual_block3d_forward.3} parent=11 // pred_check_branch
        %230 = sbr.rel (%p228) target = $region20
      $region19: #{residual_block3d_forward.3} parent=11 // pred_region
        _
      $region20: #{residual_block3d_forward.3} parent=11 // pred_fallthru
        _
    $region12: #{residual_block3d_forward.3} parent=5 // pred_fallthru
      _
    %p231 = scmp.lt.s32.totalorder %s12, 16
    // Predicated region
    $region21: #{residual_block3d_forward.3} parent=5 // pred_check
      %p232 = pneg %p231
    $region22: #{residual_block3d_forward.3} parent=5 // pred_check_branch
      %234 = sbr.rel (%p232) target = $region24
    $region23: #{residual_block3d_forward.3} parent=5 // pred_region
      // Predicated region
      $region25: #{residual_block3d_forward.3} parent=23 // pred_check
        %p235 = pneg %p46
      $region26: #{residual_block3d_forward.3} parent=23 // pred_check_branch
        %237 = sbr.rel (%p235) target = $region28
      $region27: #{residual_block3d_forward.3} parent=23 // pred_region
        %p238 = scmp.lt.s32.totalorder %s19, 1
        %s239 = scalar_select %p238, %s19, 1
        %p240 = scmp.lt.s32.totalorder %s20, 9
        %s241 = scalar_select %p240, %s20, 9
        %s242 = smul.addr %s241, 4
        %s243 = smul.addr %s239, 40
        %s244 = sadd.s32 %s242, %s243
        %s245 = smul.addr %s244, 8
        %s246 = scalar_lea.vmem %s0, %s245
      $region28: #{residual_block3d_forward.3} parent=23 // pred_fallthru
        _
      // Predicated region
      $region29: #{residual_block3d_forward.3} parent=23 // pred_check
        %p247 = pneg %p76
      $region30: #{residual_block3d_forward.3} parent=23 // pred_check_branch
        %249 = sbr.rel (%p247) target = $region32
      $region31: #{residual_block3d_forward.3} parent=23 // pred_region
        %s250 = sadd.s32 %s20, 1
        %p251 = scmp.lt.s32.totalorder %s19, 1
        %s252 = scalar_select %p251, %s19, 1
        %p253 = scmp.lt.s32.totalorder %s250, 9
        %s254 = scalar_select %p253, %s250, 9
        %s255 = smul.addr %s254, 4
        %s256 = smul.addr %s252, 40
        %s257 = sadd.s32 %s255, %s256
        %s258 = smul.addr %s257, 8
        %s259 = scalar_lea.vmem %s1, %s258
        %s260 = sadd.s32 %s20, 1
      $region32: #{residual_block3d_forward.3} parent=23 // pred_fallthru
        _
      // Predicated region
      $region33: #{residual_block3d_forward.3} parent=23 // pred_check
        %p261 = pneg %p106
      $region34: #{residual_block3d_forward.3} parent=23 // pred_check_branch
        %263 = sbr.rel (%p261) target = $region36
      $region35: #{residual_block3d_forward.3} parent=23 // pred_region
        %s264 = sadd.s32 %s20, 2
        %p265 = scmp.lt.s32.totalorder %s19, 1
        %s266 = scalar_select %p265, %s19, 1
        %p267 = scmp.lt.s32.totalorder %s264, 9
        %s268 = scalar_select %p267, %s264, 9
        %s269 = smul.addr %s268, 4
        %s270 = smul.addr %s266, 40
        %s271 = sadd.s32 %s269, %s270
        %s272 = smul.addr %s271, 8
        %s273 = scalar_lea.vmem %s2, %s272
        %s274 = sadd.s32 %s20, 2
      $region36: #{residual_block3d_forward.3} parent=23 // pred_fallthru
        _
      // Predicated region
      $region37: #{residual_block3d_forward.3} parent=23 // pred_check
        %p275 = pneg %p176
      $region38: #{residual_block3d_forward.3} parent=23 // pred_check_branch
        %277 = sbr.rel (%p275) target = $region40
      $region39: #{residual_block3d_forward.3} parent=23 // pred_region
        %p278 = scmp.lt.s32.totalorder %s19, 1
        %s279 = scalar_select %p278, %s19, 1
        %p280 = scmp.lt.s32.totalorder %s20, 7
        %s281 = scalar_select %p280, %s20, 7
        %s282 = smul.addr %s279, 8
        %s283 = sadd.s32 %s281, %s282
        %s284 = smul.addr %s283, 8
        %s285 = scalar_lea.vmem %s5, %s284
      $region40: #{residual_block3d_forward.3} parent=23 // pred_fallthru
        _
    $region24: #{residual_block3d_forward.3} parent=5 // pred_fallthru
      _
    %p286 = scmp.le.s32.totalorder 1, %s12
    %p287 = scmp.lt.s32.totalorder %s12, 17
    %p288 = pnand %p286, %p287
    %p289 = pneg %p288
    // Predicated region
    $region41: #{residual_block3d_forward.3} parent=5 // pred_check
      _
    $region42: #{residual_block3d_forward.3} parent=5 // pred_check_branch
      %291 = sbr.rel (%p288) target = $region44
    $region43: #{residual_block3d_forward.3} parent=5 // pred_region
      %s292 = ssub.s32 %s12, 1
      %p293 = scmp.lt.s32.totalorder %s21, 1
      %s294 = scalar_select %p293, %s21, 1
      %p295 = scmp.lt.s32.totalorder %s22, 9
      %s296 = scalar_select %p295, %s22, 9
      %s297 = smul.addr %s296, 4
      %s298 = smul.addr %s294, 40
      %s299 = sadd.s32 %s297, %s298
      %s300 = smul.addr %s299, 8
      %s301 = scalar_lea.vmem %s0, %s300
      %p302 = pneg %p52
      %p303 = pneg %p49
      %s304 = sadd.s32 %s22, 1
      %p305 = scmp.lt.s32.totalorder %s21, 1
      %s306 = scalar_select %p305, %s21, 1
      %p307 = scmp.lt.s32.totalorder %s304, 9
      %s308 = scalar_select %p307, %s304, 9
      %s309 = smul.addr %s308, 4
      %s310 = smul.addr %s306, 40
      %s311 = sadd.s32 %s309, %s310
      %s312 = smul.addr %s311, 8
      %s313 = scalar_lea.vmem %s1, %s312
      %p314 = pneg %p82
      %p315 = pneg %p79
      %s316 = sadd.s32 %s22, 2
      %p317 = scmp.lt.s32.totalorder %s21, 1
      %s318 = scalar_select %p317, %s21, 1
      %p319 = scmp.lt.s32.totalorder %s316, 9
      %s320 = scalar_select %p319, %s316, 9
      %s321 = smul.addr %s320, 4
      %s322 = smul.addr %s318, 40
      %s323 = sadd.s32 %s321, %s322
      %s324 = smul.addr %s323, 8
      %s325 = scalar_lea.vmem %s2, %s324
      %p326 = pneg %p112
      %p327 = pneg %p109
      %p328 = pneg %p133
      %p329 = pneg %p130
      %p330 = pneg %p154
      %p331 = pneg %p151
      %p332 = scmp.lt.s32.totalorder %s21, 1
      %s333 = scalar_select %p332, %s21, 1
      %p334 = scmp.lt.s32.totalorder %s22, 7
      %s335 = scalar_select %p334, %s22, 7
      %s336 = smul.addr %s333, 8
      %s337 = sadd.s32 %s335, %s336
      %s338 = smul.addr %s337, 8
      %s339 = scalar_lea.vmem %s5, %s338
      %p340 = pneg %p182
      %p341 = pneg %p179
      %p342 = pneg %p210
      %p343 = pneg %p207
      %p344 = scmp.lt.s32.totalorder %s21, 1
      %s345 = scalar_select %p344, %s21, 1
      %p346 = scmp.lt.s32.totalorder %s22, 7
      %s347 = scalar_select %p346, %s22, 7
      %s348 = smul.addr %s345, 8
      %s349 = sadd.s32 %s347, %s348
      %s350 = smul.addr %s349, 8
      %s351 = scalar_lea.vmem %s6, %s350
      %p352 = scmp.lt.s32.totalorder %s21, 1
      %s353 = scalar_select %p352, %s21, 1
      %p354 = scmp.lt.s32.totalorder %s22, 9
      %s355 = scalar_select %p354, %s22, 9
      %s356 = smul.addr %s355, 4
      %s357 = smul.addr %s353, 40
      %s358 = sadd.s32 %s356, %s357
      %s359 = smul.addr %s358, 8
      %s360 = scalar_lea.vmem %s0, %s359
      %s361 = sadd.s32 %s22, 1
      %p362 = scmp.lt.s32.totalorder %s21, 1
      %s363 = scalar_select %p362, %s21, 1
      %p364 = scmp.lt.s32.totalorder %s361, 9
      %s365 = scalar_select %p364, %s361, 9
      %s366 = smul.addr %s365, 4
      %s367 = smul.addr %s363, 40
      %s368 = sadd.s32 %s366, %s367
      %s369 = smul.addr %s368, 8
      %s370 = scalar_lea.vmem %s1, %s369
      %s371 = sadd.s32 %s22, 1
      %s372 = sadd.s32 %s22, 2
      %p373 = scmp.lt.s32.totalorder %s21, 1
      %s374 = scalar_select %p373, %s21, 1
      %p375 = scmp.lt.s32.totalorder %s372, 9
      %s376 = scalar_select %p375, %s372, 9
      %s377 = smul.addr %s376, 4
      %s378 = smul.addr %s374, 40
      %s379 = sadd.s32 %s377, %s378
      %s380 = smul.addr %s379, 8
      %s381 = scalar_lea.vmem %s2, %s380
      %s382 = sadd.s32 %s22, 2
      %p383 = scmp.lt.s32.totalorder %s21, 1
      %s384 = scalar_select %p383, %s21, 1
      %p385 = scmp.lt.s32.totalorder %s22, 7
      %s386 = scalar_select %p385, %s22, 7
      %s387 = smul.addr %s384, 8
      %s388 = sadd.s32 %s386, %s387
      %s389 = smul.addr %s388, 8
      %s390 = scalar_lea.vmem %s5, %s389
      %p391 = scmp.lt.s32.totalorder %s21, 1
      %s392 = scalar_select %p391, %s21, 1
      %p393 = scmp.lt.s32.totalorder %s22, 7
      %s394 = scalar_select %p393, %s22, 7
      %s395 = smul.addr %s392, 8
      %s396 = sadd.s32 %s394, %s395
      %s397 = smul.addr %s396, 8
      %s398 = scalar_lea.vmem %s6, %s397
      %v399 = vld [vmem:[%s360] sm:$0xff]
      %v400 = vld [vmem:[%s360 + $0x8] sm:$0xff]
      %v401 = vld [vmem:[%s360 + $0x10] sm:$0x3]
      %v402 = vld [vmem:[%s360 + $0x18] sm:$0x3]
      %v403 = vld [vmem:[%s3] sm:$0xff]
      %v404 = vld [vmem:[%s3 + $0x8] sm:$0xff]
      %v405 = vld [vmem:[%s3 + $0x10] sm:$0xff]
      %v406 = vld [vmem:[%s3 + $0x18] sm:$0xff]
      %v407 = vld [vmem:[%s3 + $0x20] sm:$0xff]
      %v408 = vld [vmem:[%s3 + $0x28] sm:$0xff]
      %v409 = vld [vmem:[%s3 + $0x30] sm:$0xff]
      %v410 = vld [vmem:[%s3 + $0x38] sm:$0xff]
      %v411 = vld [vmem:[%s3 + $0x40] sm:$0xff]
      %v412 = vld [vmem:[%s3 + $0x48] sm:$0xff]
      %v413 = vld [vmem:[%s3 + $0x50] sm:$0xff]
      %v414 = vld [vmem:[%s3 + $0x58] sm:$0xff]
      %v415 = vld [vmem:[%s3 + $0x60] sm:$0xff]
      %v416 = vld [vmem:[%s3 + $0x68] sm:$0xff]
      %v417 = vld [vmem:[%s3 + $0x70] sm:$0xff]
      %v418 = vld [vmem:[%s3 + $0x78] sm:$0xff]
      %v419 = vld [vmem:[%s3 + $0x80] sm:$0xff]
      %v420 = vld [vmem:[%s3 + $0x88] sm:$0xff]
      %s421 = scalar_lea.vmem %s3, 144
      %v422 = vld [vmem:[%s421] sm:$0xff]
      %v423 = vld [vmem:[%s421 + $0x8] sm:$0xff]
      %v424 = vld [vmem:[%s421 + $0x10] sm:$0xff]
      %v425 = vld [vmem:[%s421 + $0x18] sm:$0xff]
      %v426 = vld [vmem:[%s421 + $0x20] sm:$0xff]
      %v427 = vld [vmem:[%s421 + $0x28] sm:$0xff]
      %v428 = vld [vmem:[%s421 + $0x30] sm:$0xff]
      %v429 = vld [vmem:[%s421 + $0x38] sm:$0xff]
      %v430 = vld [vmem:[%s421 + $0x40] sm:$0xff]
      %v431 = vld [vmem:[%s421 + $0x48] sm:$0xff]
      %v432 = vld [vmem:[%s421 + $0x50] sm:$0xff]
      %v433 = vld [vmem:[%s421 + $0x58] sm:$0xff]
      %v434 = vld [vmem:[%s421 + $0x60] sm:$0xff]
      %v435 = vld [vmem:[%s421 + $0x68] sm:$0xff]
      %v436 = vld [vmem:[%s421 + $0x70] sm:$0xff]
      %v437 = vld [vmem:[%s421 + $0x78] sm:$0xff]
      %v438 = vld [vmem:[%s421 + $0x80] sm:$0xff]
      %v439 = vld [vmem:[%s421 + $0x88] sm:$0xff]
      %vm444 = vcmask 1046528
      %v445 = vrot.slane %v399, 1
      %v446 = vrot.slane %v401, 1
      %v447 = vsel %vm444, %v445, %v446
      %v448 = vrot.slane %v400, 1
      %v449 = vrot.slane %v402, 1
      %v450 = vsel %vm444, %v448, %v449
      %vm452 = vcmask 130048
      %v453 = vsel %vm452, %v450, 0
      %455 = vmatprep.subr.mxu0 0.0
      %456 = vmatpush1.msra.mxu0 %v422
      %457 = vmatprep.subr.mxu0 0.0
      %458 = vmatpush1.msra.mxu0 %v423
      %459 = vmatprep.subr.mxu0 0.0
      %460 = vmatpush1.msra.mxu0 %v424
      %461 = vmatprep.subr.mxu0 0.0
      %462 = vmatpush1.msra.mxu0 %v425
      %463 = vmatprep.subr.mxu0 0.0
      %464 = vmatpush1.msra.mxu0 %v426
      %465 = vmatprep.subr.mxu0 0.0
      %466 = vmatpush1.msra.mxu0 %v427
      %467 = vmatprep.subr.mxu0 0.0
      %468 = vmatpush1.msra.mxu0 %v428
      %469 = vmatprep.subr.mxu0 0.0
      %470 = vmatpush1.msra.mxu0 %v429
      %471 = vmatprep.subr.mxu0 0.0
      %472 = vmatpush1.msra.mxu0 %v430
      %473 = vmatprep.subr.mxu0 0.0
      %474 = vmatpush1.msra.mxu0 %v431
      %475 = vmatprep.subr.mxu0 0.0
      %476 = vmatpush1.msra.mxu0 %v432
      %477 = vmatprep.subr.mxu0 0.0
      %478 = vmatpush1.msra.mxu0 %v433
      %479 = vmatprep.subr.mxu0 0.0
      %480 = vmatpush1.msra.mxu0 %v434
      %481 = vmatprep.subr.mxu0 0.0
      %482 = vmatpush1.msra.mxu0 %v435
      %483 = vmatprep.subr.mxu0 0.0
      %484 = vmatpush1.msra.mxu0 %v436
      %485 = vmatprep.subr.mxu0 0.0
      %486 = vmatpush1.msra.mxu0 %v437
      %487 = vmatprep.subr.mxu0 0.0
      %488 = vmatpush1.msra.mxu0 %v438
      %489 = vmatprep.subr.mxu0 0.0
      %490 = vmatpush1.msra.mxu0 %v439
      %491 = vmatprep.subr.mxu0 0.0
      %492 = vmatpush1.msra.mxu0 0.0
      %493 = vmatprep.subr.mxu0 0.0
      %494 = vmatpush1.msra.mxu0 0.0
      %495 = vmatprep.subr.mxu0 0.0
      %496 = vmatpush1.msra.mxu0 0.0
      %497 = vmatprep.subr.mxu0 0.0
      %498 = vmatpush1.msra.mxu0 0.0
      %499 = vmatprep.subr.mxu0 0.0
      %500 = vmatpush1.msra.mxu0 0.0
      %501 = vmatprep.subr.mxu0 0.0
      %502 = vmatpush1.msra.mxu0 0.0
      %503 = vmatprep.subr.mxu0 0.0
      %504 = vmatpush1.msra.mxu0 0.0
      %505 = vmatprep.subr.mxu0 0.0
      %506 = vmatpush1.msra.mxu0 0.0
      %507 = vmatprep.subr.mxu0 0.0
      %508 = vmatpush1.msra.mxu0 0.0
      %509 = vmatprep.subr.mxu0 0.0
      %510 = vmatpush1.msra.mxu0 0.0
      %511 = vmatprep.subr.mxu0 0.0
      %512 = vmatpush1.msra.mxu0 0.0
      %513 = vmatprep.subr.mxu0 0.0
      %514 = vmatpush1.msra.mxu0 0.0
      %515 = vmatprep.subr.mxu0 0.0
      %516 = vmatpush1.msra.mxu0 0.0
      %517 = vmatprep.subr.mxu0 0.0
      %518 = vmatpush1.msra.mxu0 0.0
      %519 = vmatprep.mubr.f32.mxu0 %v453
      %520 = vmatmul.mubr.f32.gmra.mrb[0].mxu0 %v447
      %v521 = vpop.f32.mrb[0].mxu0
      %v522 = vadd.f32 0.0, %v521
      %v523 = vpop.f32.mrb[0].mxu0
      %524 = vdwg.mxu0
      %v525 = vsel %vm452, %v400, 0
      %527 = vmatprep.subr.mxu0 0.0
      %528 = vmatpush1.msra.mxu0 %v403
      %529 = vmatprep.subr.mxu0 0.0
      %530 = vmatpush1.msra.mxu0 %v404
      %531 = vmatprep.subr.mxu0 0.0
      %532 = vmatpush1.msra.mxu0 %v405
      %533 = vmatprep.subr.mxu0 0.0
      %534 = vmatpush1.msra.mxu0 %v406
      %535 = vmatprep.subr.mxu0 0.0
      %536 = vmatpush1.msra.mxu0 %v407
      %537 = vmatprep.subr.mxu0 0.0
      %538 = vmatpush1.msra.mxu0 %v408
      %539 = vmatprep.subr.mxu0 0.0
      %540 = vmatpush1.msra.mxu0 %v409
      %541 = vmatprep.subr.mxu0 0.0
      %542 = vmatpush1.msra.mxu0 %v410
      %543 = vmatprep.subr.mxu0 0.0
      %544 = vmatpush1.msra.mxu0 %v411
      %545 = vmatprep.subr.mxu0 0.0
      %546 = vmatpush1.msra.mxu0 %v412
      %547 = vmatprep.subr.mxu0 0.0
      %548 = vmatpush1.msra.mxu0 %v413
      %549 = vmatprep.subr.mxu0 0.0
      %550 = vmatpush1.msra.mxu0 %v414
      %551 = vmatprep.subr.mxu0 0.0
      %552 = vmatpush1.msra.mxu0 %v415
      %553 = vmatprep.subr.mxu0 0.0
      %554 = vmatpush1.msra.mxu0 %v416
      %555 = vmatprep.subr.mxu0 0.0
      %556 = vmatpush1.msra.mxu0 %v417
      %557 = vmatprep.subr.mxu0 0.0
      %558 = vmatpush1.msra.mxu0 %v418
      %559 = vmatprep.subr.mxu0 0.0
      %560 = vmatpush1.msra.mxu0 %v419
      %561 = vmatprep.subr.mxu0 0.0
      %562 = vmatpush1.msra.mxu0 %v420
      %563 = vmatprep.subr.mxu0 0.0
      %564 = vmatpush1.msra.mxu0 0.0
      %565 = vmatprep.subr.mxu0 0.0
      %566 = vmatpush1.msra.mxu0 0.0
      %567 = vmatprep.subr.mxu0 0.0
      %568 = vmatpush1.msra.mxu0 0.0
      %569 = vmatprep.subr.mxu0 0.0
      %570 = vmatpush1.msra.mxu0 0.0
      %571 = vmatprep.subr.mxu0 0.0
      %572 = vmatpush1.msra.mxu0 0.0
      %573 = vmatprep.subr.mxu0 0.0
      %574 = vmatpush1.msra.mxu0 0.0
      %575 = vmatprep.subr.mxu0 0.0
      %576 = vmatpush1.msra.mxu0 0.0
      %577 = vmatprep.subr.mxu0 0.0
      %578 = vmatpush1.msra.mxu0 0.0
      %579 = vmatprep.subr.mxu0 0.0
      %580 = vmatpush1.msra.mxu0 0.0
      %581 = vmatprep.subr.mxu0 0.0
      %582 = vmatpush1.msra.mxu0 0.0
      %583 = vmatprep.subr.mxu0 0.0
      %584 = vmatpush1.msra.mxu0 0.0
      %585 = vmatprep.subr.mxu0 0.0
      %586 = vmatpush1.msra.mxu0 0.0
      %587 = vmatprep.subr.mxu0 0.0
      %588 = vmatpush1.msra.mxu0 0.0
      %589 = vmatprep.subr.mxu0 0.0
      %590 = vmatpush1.msra.mxu0 0.0
      %591 = vmatprep.mubr.f32.mxu0 %v525
      %592 = vmatmul.mubr.f32.gmra.mrb[0].mxu0 %v399
      %v593 = vpop.f32.mrb[0].mxu0
      %v594 = vadd.f32 %v522, %v593
      %v595 = vpop.f32.mrb[0].mxu0
      %596 = vdwg.mxu0
      %s597 = scalar_lea.vmem %s3, 288
      %v598 = vld [vmem:[%s597] sm:$0xff]
      %v599 = vld [vmem:[%s597 + $0x8] sm:$0xff]
      %v600 = vld [vmem:[%s597 + $0x10] sm:$0xff]
      %v601 = vld [vmem:[%s597 + $0x18] sm:$0xff]
      %v602 = vld [vmem:[%s597 + $0x20] sm:$0xff]
      %v603 = vld [vmem:[%s597 + $0x28] sm:$0xff]
      %v604 = vld [vmem:[%s597 + $0x30] sm:$0xff]
      %v605 = vld [vmem:[%s597 + $0x38] sm:$0xff]
      %v606 = vld [vmem:[%s597 + $0x40] sm:$0xff]
      %v607 = vld [vmem:[%s597 + $0x48] sm:$0xff]
      %v608 = vld [vmem:[%s597 + $0x50] sm:$0xff]
      %v609 = vld [vmem:[%s597 + $0x58] sm:$0xff]
      %v610 = vld [vmem:[%s597 + $0x60] sm:$0xff]
      %v611 = vld [vmem:[%s597 + $0x68] sm:$0xff]
      %v612 = vld [vmem:[%s597 + $0x70] sm:$0xff]
      %v613 = vld [vmem:[%s597 + $0x78] sm:$0xff]
      %v614 = vld [vmem:[%s597 + $0x80] sm:$0xff]
      %v615 = vld [vmem:[%s597 + $0x88] sm:$0xff]
      %vm616 = vcmask 1045504
      %v617 = vrot.slane %v399, 2
      %v618 = vrot.slane %v401, 2
      %v619 = vsel %vm616, %v617, %v618
      %v620 = vrot.slane %v400, 2
      %v621 = vrot.slane %v402, 2
      %v622 = vsel %vm616, %v620, %v621
      %v624 = vsel %vm452, %v622, 0
      %626 = vmatprep.subr.mxu0 0.0
      %627 = vmatpush1.msra.mxu0 %v598
      %628 = vmatprep.subr.mxu0 0.0
      %629 = vmatpush1.msra.mxu0 %v599
      %630 = vmatprep.subr.mxu0 0.0
      %631 = vmatpush1.msra.mxu0 %v600
      %632 = vmatprep.subr.mxu0 0.0
      %633 = vmatpush1.msra.mxu0 %v601
      %634 = vmatprep.subr.mxu0 0.0
      %635 = vmatpush1.msra.mxu0 %v602
      %636 = vmatprep.subr.mxu0 0.0
      %637 = vmatpush1.msra.mxu0 %v603
      %638 = vmatprep.subr.mxu0 0.0
      %639 = vmatpush1.msra.mxu0 %v604
      %640 = vmatprep.subr.mxu0 0.0
      %641 = vmatpush1.msra.mxu0 %v605
      %642 = vmatprep.subr.mxu0 0.0
      %643 = vmatpush1.msra.mxu0 %v606
      %644 = vmatprep.subr.mxu0 0.0
      %645 = vmatpush1.msra.mxu0 %v607
      %646 = vmatprep.subr.mxu0 0.0
      %647 = vmatpush1.msra.mxu0 %v608
      %648 = vmatprep.subr.mxu0 0.0
      %649 = vmatpush1.msra.mxu0 %v609
      %650 = vmatprep.subr.mxu0 0.0
      %651 = vmatpush1.msra.mxu0 %v610
      %652 = vmatprep.subr.mxu0 0.0
      %653 = vmatpush1.msra.mxu0 %v611
      %654 = vmatprep.subr.mxu0 0.0
      %655 = vmatpush1.msra.mxu0 %v612
      %656 = vmatprep.subr.mxu0 0.0
      %657 = vmatpush1.msra.mxu0 %v613
      %658 = vmatprep.subr.mxu0 0.0
      %659 = vmatpush1.msra.mxu0 %v614
      %660 = vmatprep.subr.mxu0 0.0
      %661 = vmatpush1.msra.mxu0 %v615
      %662 = vmatprep.subr.mxu0 0.0
      %663 = vmatpush1.msra.mxu0 0.0
      %664 = vmatprep.subr.mxu0 0.0
      %665 = vmatpush1.msra.mxu0 0.0
      %666 = vmatprep.subr.mxu0 0.0
      %667 = vmatpush1.msra.mxu0 0.0
      %668 = vmatprep.subr.mxu0 0.0
      %669 = vmatpush1.msra.mxu0 0.0
      %670 = vmatprep.subr.mxu0 0.0
      %671 = vmatpush1.msra.mxu0 0.0
      %672 = vmatprep.subr.mxu0 0.0
      %673 = vmatpush1.msra.mxu0 0.0
      %674 = vmatprep.subr.mxu0 0.0
      %675 = vmatpush1.msra.mxu0 0.0
      %676 = vmatprep.subr.mxu0 0.0
      %677 = vmatpush1.msra.mxu0 0.0
      %678 = vmatprep.subr.mxu0 0.0
      %679 = vmatpush1.msra.mxu0 0.0
      %680 = vmatprep.subr.mxu0 0.0
      %681 = vmatpush1.msra.mxu0 0.0
      %682 = vmatprep.subr.mxu0 0.0
      %683 = vmatpush1.msra.mxu0 0.0
      %684 = vmatprep.subr.mxu0 0.0
      %685 = vmatpush1.msra.mxu0 0.0
      %686 = vmatprep.subr.mxu0 0.0
      %687 = vmatpush1.msra.mxu0 0.0
      %688 = vmatprep.subr.mxu0 0.0
      %689 = vmatpush1.msra.mxu0 0.0
      %690 = vmatprep.mubr.f32.mxu0 %v624
      %691 = vmatmul.mubr.f32.gmra.mrb[0].mxu0 %v619
      %v692 = vpop.f32.mrb[0].mxu0
      %v693 = vadd.f32 0.0, %v692
      %v694 = vpop.f32.mrb[0].mxu0
      %695 = vdwg.mxu0
      %v696 = vadd.f32 %v594, %v693
      %v697 = vld [vmem:[%s370] sm:$0xff]
      %v698 = vld [vmem:[%s370 + $0x8] sm:$0xff]
      %v699 = vld [vmem:[%s370 + $0x10] sm:$0x3]
      %v700 = vld [vmem:[%s370 + $0x18] sm:$0x3]
      %s701 = scalar_lea.vmem %s3, 432
      %v702 = vld [vmem:[%s701] sm:$0xff]
      %v703 = vld [vmem:[%s701 + $0x8] sm:$0xff]
      %v704 = vld [vmem:[%s701 + $0x10] sm:$0xff]
      %v705 = vld [vmem:[%s701 + $0x18] sm:$0xff]
      %v706 = vld [vmem:[%s701 + $0x20] sm:$0xff]
      %v707 = vld [vmem:[%s701 + $0x28] sm:$0xff]
      %v708 = vld [vmem:[%s701 + $0x30] sm:$0xff]
      %v709 = vld [vmem:[%s701 + $0x38] sm:$0xff]
      %v710 = vld [vmem:[%s701 + $0x40] sm:$0xff]
      %v711 = vld [vmem:[%s701 + $0x48] sm:$0xff]
      %v712 = vld [vmem:[%s701 + $0x50] sm:$0xff]
      %v713 = vld [vmem:[%s701 + $0x58] sm:$0xff]
      %v714 = vld [vmem:[%s701 + $0x60] sm:$0xff]
      %v715 = vld [vmem:[%s701 + $0x68] sm:$0xff]
      %v716 = vld [vmem:[%s701 + $0x70] sm:$0xff]
      %v717 = vld [vmem:[%s701 + $0x78] sm:$0xff]
      %v718 = vld [vmem:[%s701 + $0x80] sm:$0xff]
      %v719 = vld [vmem:[%s701 + $0x88] sm:$0xff]
      %v721 = vsel %vm452, %v698, 0
      %723 = vmatprep.subr.mxu0 0.0
      %724 = vmatpush1.msra.mxu0 %v702
      %725 = vmatprep.subr.mxu0 0.0
      %726 = vmatpush1.msra.mxu0 %v703
      %727 = vmatprep.subr.mxu0 0.0
      %728 = vmatpush1.msra.mxu0 %v704
      %729 = vmatprep.subr.mxu0 0.0
      %730 = vmatpush1.msra.mxu0 %v705
      %731 = vmatprep.subr.mxu0 0.0
      %732 = vmatpush1.msra.mxu0 %v706
      %733 = vmatprep.subr.mxu0 0.0
      %734 = vmatpush1.msra.mxu0 %v707
      %735 = vmatprep.subr.mxu0 0.0
      %736 = vmatpush1.msra.mxu0 %v708
      %737 = vmatprep.subr.mxu0 0.0
      %738 = vmatpush1.msra.mxu0 %v709
      %739 = vmatprep.subr.mxu0 0.0
      %740 = vmatpush1.msra.mxu0 %v710
      %741 = vmatprep.subr.mxu0 0.0
      %742 = vmatpush1.msra.mxu0 %v711
      %743 = vmatprep.subr.mxu0 0.0
      %744 = vmatpush1.msra.mxu0 %v712
      %745 = vmatprep.subr.mxu0 0.0
      %746 = vmatpush1.msra.mxu0 %v713
      %747 = vmatprep.subr.mxu0 0.0
      %748 = vmatpush1.msra.mxu0 %v714
      %749 = vmatprep.subr.mxu0 0.0
      %750 = vmatpush1.msra.mxu0 %v715
      %751 = vmatprep.subr.mxu0 0.0
      %752 = vmatpush1.msra.mxu0 %v716
      %753 = vmatprep.subr.mxu0 0.0
      %754 = vmatpush1.msra.mxu0 %v717
      %755 = vmatprep.subr.mxu0 0.0
      %756 = vmatpush1.msra.mxu0 %v718
      %757 = vmatprep.subr.mxu0 0.0
      %758 = vmatpush1.msra.mxu0 %v719
      %759 = vmatprep.subr.mxu0 0.0
      %760 = vmatpush1.msra.mxu0 0.0
      %761 = vmatprep.subr.mxu0 0.0
      %762 = vmatpush1.msra.mxu0 0.0
      %763 = vmatprep.subr.mxu0 0.0
      %764 = vmatpush1.msra.mxu0 0.0
      %765 = vmatprep.subr.mxu0 0.0
      %766 = vmatpush1.msra.mxu0 0.0
      %767 = vmatprep.subr.mxu0 0.0
      %768 = vmatpush1.msra.mxu0 0.0
      %769 = vmatprep.subr.mxu0 0.0
      %770 = vmatpush1.msra.mxu0 0.0
      %771 = vmatprep.subr.mxu0 0.0
      %772 = vmatpush1.msra.mxu0 0.0
      %773 = vmatprep.subr.mxu0 0.0
      %774 = vmatpush1.msra.mxu0 0.0
      %775 = vmatprep.subr.mxu0 0.0
      %776 = vmatpush1.msra.mxu0 0.0
      %777 = vmatprep.subr.mxu0 0.0
      %778 = vmatpush1.msra.mxu0 0.0
      %779 = vmatprep.subr.mxu0 0.0
      %780 = vmatpush1.msra.mxu0 0.0
      %781 = vmatprep.subr.mxu0 0.0
      %782 = vmatpush1.msra.mxu0 0.0
      %783 = vmatprep.subr.mxu0 0.0
      %784 = vmatpush1.msra.mxu0 0.0
      %785 = vmatprep.subr.mxu0 0.0
      %786 = vmatpush1.msra.mxu0 0.0
      %787 = vmatprep.mubr.f32.mxu0 %v721
      %788 = vmatmul.mubr.f32.gmra.mrb[0].mxu0 %v697
      %v789 = vpop.f32.mrb[0].mxu0
      %v790 = vadd.f32 0.0, %v789
      %v791 = vpop.f32.mrb[0].mxu0
      %792 = vdwg.mxu0
      %v793 = vadd.f32 %v696, %v790
      %s794 = scalar_lea.vmem %s3, 576
      %v795 = vld [vmem:[%s794] sm:$0xff]
      %v796 = vld [vmem:[%s794 + $0x8] sm:$0xff]
      %v797 = vld [vmem:[%s794 + $0x10] sm:$0xff]
      %v798 = vld [vmem:[%s794 + $0x18] sm:$0xff]
      %v799 = vld [vmem:[%s794 + $0x20] sm:$0xff]
      %v800 = vld [vmem:[%s794 + $0x28] sm:$0xff]
      %v801 = vld [vmem:[%s794 + $0x30] sm:$0xff]
      %v802 = vld [vmem:[%s794 + $0x38] sm:$0xff]
      %v803 = vld [vmem:[%s794 + $0x40] sm:$0xff]
      %v804 = vld [vmem:[%s794 + $0x48] sm:$0xff]
      %v805 = vld [vmem:[%s794 + $0x50] sm:$0xff]
      %v806 = vld [vmem:[%s794 + $0x58] sm:$0xff]
      %v807 = vld [vmem:[%s794 + $0x60] sm:$0xff]
      %v808 = vld [vmem:[%s794 + $0x68] sm:$0xff]
      %v809 = vld [vmem:[%s794 + $0x70] sm:$0xff]
      %v810 = vld [vmem:[%s794 + $0x78] sm:$0xff]
      %v811 = vld [vmem:[%s794 + $0x80] sm:$0xff]
      %v812 = vld [vmem:[%s794 + $0x88] sm:$0xff]
      %v816 = vrot.slane %v697, 1
      %v817 = vrot.slane %v699, 1
      %v818 = vsel %vm444, %v816, %v817
      %v819 = vrot.slane %v698, 1
      %v820 = vrot.slane %v700, 1
      %v821 = vsel %vm444, %v819, %v820
      %v823 = vsel %vm452, %v821, 0
      %825 = vmatprep.subr.mxu0 0.0
      %826 = vmatpush1.msra.mxu0 %v795
      %827 = vmatprep.subr.mxu0 0.0
      %828 = vmatpush1.msra.mxu0 %v796
      %829 = vmatprep.subr.mxu0 0.0
      %830 = vmatpush1.msra.mxu0 %v797
      %831 = vmatprep.subr.mxu0 0.0
      %832 = vmatpush1.msra.mxu0 %v798
      %833 = vmatprep.subr.mxu0 0.0
      %834 = vmatpush1.msra.mxu0 %v799
      %835 = vmatprep.subr.mxu0 0.0
      %836 = vmatpush1.msra.mxu0 %v800
      %837 = vmatprep.subr.mxu0 0.0
      %838 = vmatpush1.msra.mxu0 %v801
      %839 = vmatprep.subr.mxu0 0.0
      %840 = vmatpush1.msra.mxu0 %v802
      %841 = vmatprep.subr.mxu0 0.0
      %842 = vmatpush1.msra.mxu0 %v803
      %843 = vmatprep.subr.mxu0 0.0
      %844 = vmatpush1.msra.mxu0 %v804
      %845 = vmatprep.subr.mxu0 0.0
      %846 = vmatpush1.msra.mxu0 %v805
      %847 = vmatprep.subr.mxu0 0.0
      %848 = vmatpush1.msra.mxu0 %v806
      %849 = vmatprep.subr.mxu0 0.0
      %850 = vmatpush1.msra.mxu0 %v807
      %851 = vmatprep.subr.mxu0 0.0
      %852 = vmatpush1.msra.mxu0 %v808
      %853 = vmatprep.subr.mxu0 0.0
      %854 = vmatpush1.msra.mxu0 %v809
      %855 = vmatprep.subr.mxu0 0.0
      %856 = vmatpush1.msra.mxu0 %v810
      %857 = vmatprep.subr.mxu0 0.0
      %858 = vmatpush1.msra.mxu0 %v811
      %859 = vmatprep.subr.mxu0 0.0
      %860 = vmatpush1.msra.mxu0 %v812
      %861 = vmatprep.subr.mxu0 0.0
      %862 = vmatpush1.msra.mxu0 0.0
      %863 = vmatprep.subr.mxu0 0.0
      %864 = vmatpush1.msra.mxu0 0.0
      %865 = vmatprep.subr.mxu0 0.0
      %866 = vmatpush1.msra.mxu0 0.0
      %867 = vmatprep.subr.mxu0 0.0
      %868 = vmatpush1.msra.mxu0 0.0
      %869 = vmatprep.subr.mxu0 0.0
      %870 = vmatpush1.msra.mxu0 0.0
      %871 = vmatprep.subr.mxu0 0.0
      %872 = vmatpush1.msra.mxu0 0.0
      %873 = vmatprep.subr.mxu0 0.0
      %874 = vmatpush1.msra.mxu0 0.0
      %875 = vmatprep.subr.mxu0 0.0
      %876 = vmatpush1.msra.mxu0 0.0
      %877 = vmatprep.subr.mxu0 0.0
      %878 = vmatpush1.msra.mxu0 0.0
      %879 = vmatprep.subr.mxu0 0.0
      %880 = vmatpush1.msra.mxu0 0.0
      %881 = vmatprep.subr.mxu0 0.0
      %882 = vmatpush1.msra.mxu0 0.0
      %883 = vmatprep.subr.mxu0 0.0
      %884 = vmatpush1.msra.mxu0 0.0
      %885 = vmatprep.subr.mxu0 0.0
      %886 = vmatpush1.msra.mxu0 0.0
      %887 = vmatprep.subr.mxu0 0.0
      %888 = vmatpush1.msra.mxu0 0.0
      %889 = vmatprep.mubr.f32.mxu0 %v823
      %890 = vmatmul.mubr.f32.gmra.mrb[0].mxu0 %v818
      %v891 = vpop.f32.mrb[0].mxu0
      %v892 = vadd.f32 0.0, %v891
      %v893 = vpop.f32.mrb[0].mxu0
      %894 = vdwg.mxu0
      %v895 = vadd.f32 %v793, %v892
      %s896 = scalar_lea.vmem %s3, 720
      %v897 = vld [vmem:[%s896] sm:$0xff]
      %v898 = vld [vmem:[%s896 + $0x8] sm:$0xff]
      %v899 = vld [vmem:[%s896 + $0x10] sm:$0xff]
      %v900 = vld [vmem:[%s896 + $0x18] sm:$0xff]
      %v901 = vld [vmem:[%s896 + $0x20] sm:$0xff]
      %v902 = vld [vmem:[%s896 + $0x28] sm:$0xff]
      %v903 = vld [vmem:[%s896 + $0x30] sm:$0xff]
      %v904 = vld [vmem:[%s896 + $0x38] sm:$0xff]
      %v905 = vld [vmem:[%s896 + $0x40] sm:$0xff]
      %v906 = vld [vmem:[%s896 + $0x48] sm:$0xff]
      %v907 = vld [vmem:[%s896 + $0x50] sm:$0xff]
      %v908 = vld [vmem:[%s896 + $0x58] sm:$0xff]
      %v909 = vld [vmem:[%s896 + $0x60] sm:$0xff]
      %v910 = vld [vmem:[%s896 + $0x68] sm:$0xff]
      %v911 = vld [vmem:[%s896 + $0x70] sm:$0xff]
      %v912 = vld [vmem:[%s896 + $0x78] sm:$0xff]
      %v913 = vld [vmem:[%s896 + $0x80] sm:$0xff]
      %v914 = vld [vmem:[%s896 + $0x88] sm:$0xff]
      %v915 = vrot.slane %v697, 2
      %v916 = vrot.slane %v699, 2
      %v917 = vsel %vm616, %v915, %v916
      %v918 = vrot.slane %v698, 2
      %v919 = vrot.slane %v700, 2
      %v920 = vsel %vm616, %v918, %v919
      %v922 = vsel %vm452, %v920, 0
      %924 = vmatprep.subr.mxu0 0.0
      %925 = vmatpush1.msra.mxu0 %v897
      %926 = vmatprep.subr.mxu0 0.0
      %927 = vmatpush1.msra.mxu0 %v898
      %928 = vmatprep.subr.mxu0 0.0
      %929 = vmatpush1.msra.mxu0 %v899
      %930 = vmatprep.subr.mxu0 0.0
      %931 = vmatpush1.msra.mxu0 %v900
      %932 = vmatprep.subr.mxu0 0.0
      %933 = vmatpush1.msra.mxu0 %v901
      %934 = vmatprep.subr.mxu0 0.0
      %935 = vmatpush1.msra.mxu0 %v902
      %936 = vmatprep.subr.mxu0 0.0
      %937 = vmatpush1.msra.mxu0 %v903
      %938 = vmatprep.subr.mxu0 0.0
      %939 = vmatpush1.msra.mxu0 %v904
      %940 = vmatprep.subr.mxu0 0.0
      %941 = vmatpush1.msra.mxu0 %v905
      %942 = vmatprep.subr.mxu0 0.0
      %943 = vmatpush1.msra.mxu0 %v906
      %944 = vmatprep.subr.mxu0 0.0
      %945 = vmatpush1.msra.mxu0 %v907
      %946 = vmatprep.subr.mxu0 0.0
      %947 = vmatpush1.msra.mxu0 %v908
      %948 = vmatprep.subr.mxu0 0.0
      %949 = vmatpush1.msra.mxu0 %v909
      %950 = vmatprep.subr.mxu0 0.0
      %951 = vmatpush1.msra.mxu0 %v910
      %952 = vmatprep.subr.mxu0 0.0
      %953 = vmatpush1.msra.mxu0 %v911
      %954 = vmatprep.subr.mxu0 0.0
      %955 = vmatpush1.msra.mxu0 %v912
      %956 = vmatprep.subr.mxu0 0.0
      %957 = vmatpush1.msra.mxu0 %v913
      %958 = vmatprep.subr.mxu0 0.0
      %959 = vmatpush1.msra.mxu0 %v914
      %960 = vmatprep.subr.mxu0 0.0
      %961 = vmatpush1.msra.mxu0 0.0
      %962 = vmatprep.subr.mxu0 0.0
      %963 = vmatpush1.msra.mxu0 0.0
      %964 = vmatprep.subr.mxu0 0.0
      %965 = vmatpush1.msra.mxu0 0.0
      %966 = vmatprep.subr.mxu0 0.0
      %967 = vmatpush1.msra.mxu0 0.0
      %968 = vmatprep.subr.mxu0 0.0
      %969 = vmatpush1.msra.mxu0 0.0
      %970 = vmatprep.subr.mxu0 0.0
      %971 = vmatpush1.msra.mxu0 0.0
      %972 = vmatprep.subr.mxu0 0.0
      %973 = vmatpush1.msra.mxu0 0.0
      %974 = vmatprep.subr.mxu0 0.0
      %975 = vmatpush1.msra.mxu0 0.0
      %976 = vmatprep.subr.mxu0 0.0
      %977 = vmatpush1.msra.mxu0 0.0
      %978 = vmatprep.subr.mxu0 0.0
      %979 = vmatpush1.msra.mxu0 0.0
      %980 = vmatprep.subr.mxu0 0.0
      %981 = vmatpush1.msra.mxu0 0.0
      %982 = vmatprep.subr.mxu0 0.0
      %983 = vmatpush1.msra.mxu0 0.0
      %984 = vmatprep.subr.mxu0 0.0
      %985 = vmatpush1.msra.mxu0 0.0
      %986 = vmatprep.subr.mxu0 0.0
      %987 = vmatpush1.msra.mxu0 0.0
      %988 = vmatprep.mubr.f32.mxu0 %v922
      %989 = vmatmul.mubr.f32.gmra.mrb[0].mxu0 %v917
      %v990 = vpop.f32.mrb[0].mxu0
      %v991 = vadd.f32 0.0, %v990
      %v992 = vpop.f32.mrb[0].mxu0
      %993 = vdwg.mxu0
      %v994 = vadd.f32 %v895, %v991
      %v995 = vld [vmem:[%s381] sm:$0xff]
      %v996 = vld [vmem:[%s381 + $0x8] sm:$0xff]
      %v997 = vld [vmem:[%s381 + $0x10] sm:$0x3]
      %v998 = vld [vmem:[%s381 + $0x18] sm:$0x3]
      %s999 = scalar_lea.vmem %s3, 864
      %v1000 = vld [vmem:[%s999] sm:$0xff]
      %v1001 = vld [vmem:[%s999 + $0x8] sm:$0xff]
      %v1002 = vld [vmem:[%s999 + $0x10] sm:$0xff]
      %v1003 = vld [vmem:[%s999 + $0x18] sm:$0xff]
      %v1004 = vld [vmem:[%s999 + $0x20] sm:$0xff]
      %v1005 = vld [vmem:[%s999 + $0x28] sm:$0xff]
      %v1006 = vld [vmem:[%s999 + $0x30] sm:$0xff]
      %v1007 = vld [vmem:[%s999 + $0x38] sm:$0xff]
      %v1008 = vld [vmem:[%s999 + $0x40] sm:$0xff]
      %v1009 = vld [vmem:[%s999 + $0x48] sm:$0xff]
      %v1010 = vld [vmem:[%s999 + $0x50] sm:$0xff]
      %v1011 = vld [vmem:[%s999 + $0x58] sm:$0xff]
      %v1012 = vld [vmem:[%s999 + $0x60] sm:$0xff]
      %v1013 = vld [vmem:[%s999 + $0x68] sm:$0xff]
      %v1014 = vld [vmem:[%s999 + $0x70] sm:$0xff]
      %v1015 = vld [vmem:[%s999 + $0x78] sm:$0xff]
      %v1016 = vld [vmem:[%s999 + $0x80] sm:$0xff]
      %v1017 = vld [vmem:[%s999 + $0x88] sm:$0xff]
      %v1019 = vsel %vm452, %v996, 0
      %1021 = vmatprep.subr.mxu0 0.0
      %1022 = vmatpush1.msra.mxu0 %v1000
      %1023 = vmatprep.subr.mxu0 0.0
      %1024 = vmatpush1.msra.mxu0 %v1001
      %1025 = vmatprep.subr.mxu0 0.0
      %1026 = vmatpush1.msra.mxu0 %v1002
      %1027 = vmatprep.subr.mxu0 0.0
      %1028 = vmatpush1.msra.mxu0 %v1003
      %1029 = vmatprep.subr.mxu0 0.0
      %1030 = vmatpush1.msra.mxu0 %v1004
      %1031 = vmatprep.subr.mxu0 0.0
      %1032 = vmatpush1.msra.mxu0 %v1005
      %1033 = vmatprep.subr.mxu0 0.0
      %1034 = vmatpush1.msra.mxu0 %v1006
      %1035 = vmatprep.subr.mxu0 0.0
      %1036 = vmatpush1.msra.mxu0 %v1007
      %1037 = vmatprep.subr.mxu0 0.0
      %1038 = vmatpush1.msra.mxu0 %v1008
      %1039 = vmatprep.subr.mxu0 0.0
      %1040 = vmatpush1.msra.mxu0 %v1009
      %1041 = vmatprep.subr.mxu0 0.0
      %1042 = vmatpush1.msra.mxu0 %v1010
      %1043 = vmatprep.subr.mxu0 0.0
      %1044 = vmatpush1.msra.mxu0 %v1011
      %1045 = vmatprep.subr.mxu0 0.0
      %1046 = vmatpush1.msra.mxu0 %v1012
      %1047 = vmatprep.subr.mxu0 0.0
      %1048 = vmatpush1.msra.mxu0 %v1013
      %1049 = vmatprep.subr.mxu0 0.0
      %1050 = vmatpush1.msra.mxu0 %v1014
      %1051 = vmatprep.subr.mxu0 0.0
      %1052 = vmatpush1.msra.mxu0 %v1015
      %1053 = vmatprep.subr.mxu0 0.0
      %1054 = vmatpush1.msra.mxu0 %v1016
      %1055 = vmatprep.subr.mxu0 0.0
      %1056 = vmatpush1.msra.mxu0 %v1017
      %1057 = vmatprep.subr.mxu0 0.0
      %1058 = vmatpush1.msra.mxu0 0.0
      %1059 = vmatprep.subr.mxu0 0.0
      %1060 = vmatpush1.msra.mxu0 0.0
      %1061 = vmatprep.subr.mxu0 0.0
      %1062 = vmatpush1.msra.mxu0 0.0
      %1063 = vmatprep.subr.mxu0 0.0
      %1064 = vmatpush1.msra.mxu0 0.0
      %1065 = vmatprep.subr.mxu0 0.0
      %1066 = vmatpush1.msra.mxu0 0.0
      %1067 = vmatprep.subr.mxu0 0.0
      %1068 = vmatpush1.msra.mxu0 0.0
      %1069 = vmatprep.subr.mxu0 0.0
      %1070 = vmatpush1.msra.mxu0 0.0
      %1071 = vmatprep.subr.mxu0 0.0
      %1072 = vmatpush1.msra.mxu0 0.0
      %1073 = vmatprep.subr.mxu0 0.0
      %1074 = vmatpush1.msra.mxu0 0.0
      %1075 = vmatprep.subr.mxu0 0.0
      %1076 = vmatpush1.msra.mxu0 0.0
      %1077 = vmatprep.subr.mxu0 0.0
      %1078 = vmatpush1.msra.mxu0 0.0
      %1079 = vmatprep.subr.mxu0 0.0
      %1080 = vmatpush1.msra.mxu0 0.0
      %1081 = vmatprep.subr.mxu0 0.0
      %1082 = vmatpush1.msra.mxu0 0.0
      %1083 = vmatprep.subr.mxu0 0.0
      %1084 = vmatpush1.msra.mxu0 0.0
      %1085 = vmatprep.mubr.f32.mxu0 %v1019
      %1086 = vmatmul.mubr.f32.gmra.mrb[0].mxu0 %v995
      %v1087 = vpop.f32.mrb[0].mxu0
      %v1088 = vadd.f32 0.0, %v1087
      %v1089 = vpop.f32.mrb[0].mxu0
      %1090 = vdwg.mxu0
      %v1091 = vadd.f32 %v994, %v1088
      %s1092 = scalar_lea.vmem %s3, 1008
      %v1093 = vld [vmem:[%s1092] sm:$0xff]
      %v1094 = vld [vmem:[%s1092 + $0x8] sm:$0xff]
      %v1095 = vld [vmem:[%s1092 + $0x10] sm:$0xff]
      %v1096 = vld [vmem:[%s1092 + $0x18] sm:$0xff]
      %v1097 = vld [vmem:[%s1092 + $0x20] sm:$0xff]
      %v1098 = vld [vmem:[%s1092 + $0x28] sm:$0xff]
      %v1099 = vld [vmem:[%s1092 + $0x30] sm:$0xff]
      %v1100 = vld [vmem:[%s1092 + $0x38] sm:$0xff]
      %v1101 = vld [vmem:[%s1092 + $0x40] sm:$0xff]
      %v1102 = vld [vmem:[%s1092 + $0x48] sm:$0xff]
      %v1103 = vld [vmem:[%s1092 + $0x50] sm:$0xff]
      %v1104 = vld [vmem:[%s1092 + $0x58] sm:$0xff]
      %v1105 = vld [vmem:[%s1092 + $0x60] sm:$0xff]
      %v1106 = vld [vmem:[%s1092 + $0x68] sm:$0xff]
      %v1107 = vld [vmem:[%s1092 + $0x70] sm:$0xff]
      %v1108 = vld [vmem:[%s1092 + $0x78] sm:$0xff]
      %v1109 = vld [vmem:[%s1092 + $0x80] sm:$0xff]
      %v1110 = vld [vmem:[%s1092 + $0x88] sm:$0xff]
      %v1114 = vrot.slane %v995, 1
      %v1115 = vrot.slane %v997, 1
      %v1116 = vsel %vm444, %v1114, %v1115
      %v1117 = vrot.slane %v996, 1
      %v1118 = vrot.slane %v998, 1
      %v1119 = vsel %vm444, %v1117, %v1118
      %v1121 = vsel %vm452, %v1119, 0
      %1123 = vmatprep.subr.mxu0 0.0
      %1124 = vmatpush1.msra.mxu0 %v1093
      %1125 = vmatprep.subr.mxu0 0.0
      %1126 = vmatpush1.msra.mxu0 %v1094
      %1127 = vmatprep.subr.mxu0 0.0
      %1128 = vmatpush1.msra.mxu0 %v1095
      %1129 = vmatprep.subr.mxu0 0.0
      %1130 = vmatpush1.msra.mxu0 %v1096
      %1131 = vmatprep.subr.mxu0 0.0
      %1132 = vmatpush1.msra.mxu0 %v1097
      %1133 = vmatprep.subr.mxu0 0.0
      %1134 = vmatpush1.msra.mxu0 %v1098
      %1135 = vmatprep.subr.mxu0 0.0
      %1136 = vmatpush1.msra.mxu0 %v1099
      %1137 = vmatprep.subr.mxu0 0.0
      %1138 = vmatpush1.msra.mxu0 %v1100
      %1139 = vmatprep.subr.mxu0 0.0
      %1140 = vmatpush1.msra.mxu0 %v1101
      %1141 = vmatprep.subr.mxu0 0.0
      %1142 = vmatpush1.msra.mxu0 %v1102
      %1143 = vmatprep.subr.mxu0 0.0
      %1144 = vmatpush1.msra.mxu0 %v1103
      %1145 = vmatprep.subr.mxu0 0.0
      %1146 = vmatpush1.msra.mxu0 %v1104
      %1147 = vmatprep.subr.mxu0 0.0
      %1148 = vmatpush1.msra.mxu0 %v1105
      %1149 = vmatprep.subr.mxu0 0.0
      %1150 = vmatpush1.msra.mxu0 %v1106
      %1151 = vmatprep.subr.mxu0 0.0
      %1152 = vmatpush1.msra.mxu0 %v1107
      %1153 = vmatprep.subr.mxu0 0.0
      %1154 = vmatpush1.msra.mxu0 %v1108
      %1155 = vmatprep.subr.mxu0 0.0
      %1156 = vmatpush1.msra.mxu0 %v1109
      %1157 = vmatprep.subr.mxu0 0.0
      %1158 = vmatpush1.msra.mxu0 %v1110
      %1159 = vmatprep.subr.mxu0 0.0
      %1160 = vmatpush1.msra.mxu0 0.0
      %1161 = vmatprep.subr.mxu0 0.0
      %1162 = vmatpush1.msra.mxu0 0.0
      %1163 = vmatprep.subr.mxu0 0.0
      %1164 = vmatpush1.msra.mxu0 0.0
      %1165 = vmatprep.subr.mxu0 0.0
      %1166 = vmatpush1.msra.mxu0 0.0
      %1167 = vmatprep.subr.mxu0 0.0
      %1168 = vmatpush1.msra.mxu0 0.0
      %1169 = vmatprep.subr.mxu0 0.0
      %1170 = vmatpush1.msra.mxu0 0.0
      %1171 = vmatprep.subr.mxu0 0.0
      %1172 = vmatpush1.msra.mxu0 0.0
      %1173 = vmatprep.subr.mxu0 0.0
      %1174 = vmatpush1.msra.mxu0 0.0
      %1175 = vmatprep.subr.mxu0 0.0
      %1176 = vmatpush1.msra.mxu0 0.0
      %1177 = vmatprep.subr.mxu0 0.0
      %1178 = vmatpush1.msra.mxu0 0.0
      %1179 = vmatprep.subr.mxu0 0.0
      %1180 = vmatpush1.msra.mxu0 0.0
      %1181 = vmatprep.subr.mxu0 0.0
      %1182 = vmatpush1.msra.mxu0 0.0
      %1183 = vmatprep.subr.mxu0 0.0
      %1184 = vmatpush1.msra.mxu0 0.0
      %1185 = vmatprep.subr.mxu0 0.0
      %1186 = vmatpush1.msra.mxu0 0.0
      %1187 = vmatprep.mubr.f32.mxu0 %v1121
      %1188 = vmatmul.mubr.f32.gmra.mrb[0].mxu0 %v1116
      %v1189 = vpop.f32.mrb[0].mxu0
      %v1190 = vadd.f32 0.0, %v1189
      %v1191 = vpop.f32.mrb[0].mxu0
      %1192 = vdwg.mxu0
      %v1193 = vadd.f32 %v1091, %v1190
      %s1194 = scalar_lea.vmem %s3, 1152
      %v1195 = vld [vmem:[%s1194] sm:$0xff]
      %v1196 = vld [vmem:[%s1194 + $0x8] sm:$0xff]
      %v1197 = vld [vmem:[%s1194 + $0x10] sm:$0xff]
      %v1198 = vld [vmem:[%s1194 + $0x18] sm:$0xff]
      %v1199 = vld [vmem:[%s1194 + $0x20] sm:$0xff]
      %v1200 = vld [vmem:[%s1194 + $0x28] sm:$0xff]
      %v1201 = vld [vmem:[%s1194 + $0x30] sm:$0xff]
      %v1202 = vld [vmem:[%s1194 + $0x38] sm:$0xff]
      %v1203 = vld [vmem:[%s1194 + $0x40] sm:$0xff]
      %v1204 = vld [vmem:[%s1194 + $0x48] sm:$0xff]
      %v1205 = vld [vmem:[%s1194 + $0x50] sm:$0xff]
      %v1206 = vld [vmem:[%s1194 + $0x58] sm:$0xff]
      %v1207 = vld [vmem:[%s1194 + $0x60] sm:$0xff]
      %v1208 = vld [vmem:[%s1194 + $0x68] sm:$0xff]
      %v1209 = vld [vmem:[%s1194 + $0x70] sm:$0xff]
      %v1210 = vld [vmem:[%s1194 + $0x78] sm:$0xff]
      %v1211 = vld [vmem:[%s1194 + $0x80] sm:$0xff]
      %v1212 = vld [vmem:[%s1194 + $0x88] sm:$0xff]
      %v1213 = vrot.slane %v995, 2
      %v1214 = vrot.slane %v997, 2
      %v1215 = vsel %vm616, %v1213, %v1214
      %v1216 = vrot.slane %v996, 2
      %v1217 = vrot.slane %v998, 2
      %v1218 = vsel %vm616, %v1216, %v1217
      %v1220 = vsel %vm452, %v1218, 0
      %1222 = vmatprep.subr.mxu0 0.0
      %1223 = vmatpush1.msra.mxu0 %v1195
      %1224 = vmatprep.subr.mxu0 0.0
      %1225 = vmatpush1.msra.mxu0 %v1196
      %1226 = vmatprep.subr.mxu0 0.0
      %1227 = vmatpush1.msra.mxu0 %v1197
      %1228 = vmatprep.subr.mxu0 0.0
      %1229 = vmatpush1.msra.mxu0 %v1198
      %1230 = vmatprep.subr.mxu0 0.0
      %1231 = vmatpush1.msra.mxu0 %v1199
      %1232 = vmatprep.subr.mxu0 0.0
      %1233 = vmatpush1.msra.mxu0 %v1200
      %1234 = vmatprep.subr.mxu0 0.0
      %1235 = vmatpush1.msra.mxu0 %v1201
      %1236 = vmatprep.subr.mxu0 0.0
      %1237 = vmatpush1.msra.mxu0 %v1202
      %1238 = vmatprep.subr.mxu0 0.0
      %1239 = vmatpush1.msra.mxu0 %v1203
      %1240 = vmatprep.subr.mxu0 0.0
      %1241 = vmatpush1.msra.mxu0 %v1204
      %1242 = vmatprep.subr.mxu0 0.0
      %1243 = vmatpush1.msra.mxu0 %v1205
      %1244 = vmatprep.subr.mxu0 0.0
      %1245 = vmatpush1.msra.mxu0 %v1206
      %1246 = vmatprep.subr.mxu0 0.0
      %1247 = vmatpush1.msra.mxu0 %v1207
      %1248 = vmatprep.subr.mxu0 0.0
      %1249 = vmatpush1.msra.mxu0 %v1208
      %1250 = vmatprep.subr.mxu0 0.0
      %1251 = vmatpush1.msra.mxu0 %v1209
      %1252 = vmatprep.subr.mxu0 0.0
      %1253 = vmatpush1.msra.mxu0 %v1210
      %1254 = vmatprep.subr.mxu0 0.0
      %1255 = vmatpush1.msra.mxu0 %v1211
      %1256 = vmatprep.subr.mxu0 0.0
      %1257 = vmatpush1.msra.mxu0 %v1212
      %1258 = vmatprep.subr.mxu0 0.0
      %1259 = vmatpush1.msra.mxu0 0.0
      %1260 = vmatprep.subr.mxu0 0.0
      %1261 = vmatpush1.msra.mxu0 0.0
      %1262 = vmatprep.subr.mxu0 0.0
      %1263 = vmatpush1.msra.mxu0 0.0
      %1264 = vmatprep.subr.mxu0 0.0
      %1265 = vmatpush1.msra.mxu0 0.0
      %1266 = vmatprep.subr.mxu0 0.0
      %1267 = vmatpush1.msra.mxu0 0.0
      %1268 = vmatprep.subr.mxu0 0.0
      %1269 = vmatpush1.msra.mxu0 0.0
      %1270 = vmatprep.subr.mxu0 0.0
      %1271 = vmatpush1.msra.mxu0 0.0
      %1272 = vmatprep.subr.mxu0 0.0
      %1273 = vmatpush1.msra.mxu0 0.0
      %1274 = vmatprep.subr.mxu0 0.0
      %1275 = vmatpush1.msra.mxu0 0.0
      %1276 = vmatprep.subr.mxu0 0.0
      %1277 = vmatpush1.msra.mxu0 0.0
      %1278 = vmatprep.subr.mxu0 0.0
      %1279 = vmatpush1.msra.mxu0 0.0
      %1280 = vmatprep.subr.mxu0 0.0
      %1281 = vmatpush1.msra.mxu0 0.0
      %1282 = vmatprep.subr.mxu0 0.0
      %1283 = vmatpush1.msra.mxu0 0.0
      %1284 = vmatprep.subr.mxu0 0.0
      %1285 = vmatpush1.msra.mxu0 0.0
      %1286 = vmatprep.mubr.f32.mxu0 %v1220
      %1287 = vmatmul.mubr.f32.gmra.mrb[0].mxu0 %v1215
      %v1288 = vpop.f32.mrb[0].mxu0
      %v1289 = vadd.f32 0.0, %v1288
      %v1290 = vpop.f32.mrb[0].mxu0
      %1291 = vdwg.mxu0
      %v1292 = vadd.f32 %v1193, %v1289
      %v1293 = vld [vmem:[%s4] sm:$0x1]
      %v1295 = vlaneseq
      %v1296 = vshrl.u32 %v1295, 7
      %v1297 = vsub.s32 0, %v1296
      %v1298 = vrot.slane %v1293, %v1297
      %v1300 = vadd.f32 %v1292, %v1298
      %v1301 = vld [vmem:[%s390] sm:$0xff]
      %v1302 = vadd.f32 %v1300, %v1301
      %v1303 = vmax.f32 %v1302, 0.0
      %1304 = vst [vmem:[%s398] sm:$0xff] %v1303
      %p1305 = scmp.lt.s32.totalorder %s21, 1
      %s1306 = scalar_select %p1305, %s21, 1
      %p1307 = scmp.lt.s32.totalorder %s22, 7
      %s1308 = scalar_select %p1307, %s22, 7
      %s1309 = smul.addr %s1306, 8
      %s1310 = sadd.s32 %s1308, %s1309
      %s1311 = smul.addr %s1310, 8
      %s1312 = scalar_lea.vmem %s6, %s1311
      // Predicated region
      $region45: #{residual_block3d_forward.3} parent=43 // pred_check
        %p1313 = pneg %p207
      $region46: #{residual_block3d_forward.3} parent=43 // pred_check_branch
        %1315 = sbr.rel (%p1313) target = $region48
      $region47: #{residual_block3d_forward.3} parent=43 // pred_region
        _
      $region48: #{residual_block3d_forward.3} parent=43 // pred_fallthru
        _
    $region44: #{residual_block3d_forward.3} parent=5 // pred_fallthru
      _
    %p1316 = scmp.le.s32.totalorder 2, %s12
    // Predicated region
    $region49: #{residual_block3d_forward.3} parent=5 // pred_check
      %p1317 = pneg %p1316
    $region50: #{residual_block3d_forward.3} parent=5 // pred_check_branch
      %1319 = sbr.rel (%p1317) target = $region52
    $region51: #{residual_block3d_forward.3} parent=5 // pred_region
      %s1320 = ssub.s32 %s12, 2
      // Predicated region
      $region53: #{residual_block3d_forward.3} parent=51 // pred_check
        %p1321 = pneg %p213
      $region54: #{residual_block3d_forward.3} parent=51 // pred_check_branch
        %1323 = sbr.rel (%p1321) target = $region56
      $region55: #{residual_block3d_forward.3} parent=51 // pred_region
        %p1324 = scmp.lt.s32.totalorder %s23, 1
        %s1325 = scalar_select %p1324, %s23, 1
        %p1326 = scmp.lt.s32.totalorder %s24, 7
        %s1327 = scalar_select %p1326, %s24, 7
        %s1328 = smul.addr %s1325, 8
        %s1329 = sadd.s32 %s1327, %s1328
        %s1330 = smul.addr %s1329, 8
        %s1331 = scalar_lea.vmem %s6, %s1330
      $region56: #{residual_block3d_forward.3} parent=51 // pred_fallthru
        _
    $region52: #{residual_block3d_forward.3} parent=5 // pred_fallthru
      _
  $region6: #{residual_block3d_forward.3} parent=0 // loop_footer
    %s16 = sadd.s32 1, %s12
  $region7: #{residual_block3d_forward.3} parent=0 // loop_footer_branch
    %11 = sbr.rel target = $region3
  $region8: #{residual_block3d_forward.3} parent=0 // loop_exit
    _

</llo_original>
